<compile_context>
chip_gen: v6e
topology: v6e:2x2x1
jax: 0.10.0
libtpu: 0.0.40
codegen_flags: <defaults>
</compile_context>

<pallas_src>
import functools

import jax
import jax.numpy as jnp
from jax.experimental import pallas as pl
from jax.experimental.pallas import tpu as pltpu

EPS = 1e-5

_COMPILER_PARAMS = pltpu.CompilerParams(
    # batch grid axis is independent work -> shard across the 2 TensorCores on v7x
    dimension_semantics=("parallel",),
    # explicit scoped-VMEM cap with headroom; per-image tiles stay far below this on
    # v5e/v6e (128 MiB physical) and v7x (64 MiB physical / 32 MiB default scoped).
    vmem_limit_bytes=32 * 1024 * 1024,
)


def _zero_halo_border(pad_ref, H, W, C):
    """Zero only the 1-pixel border of a (1, H+2, W+2, C) VMEM scratch (4 thin writes)."""
    zr = jnp.zeros((1, 1, W + 2, C), jnp.float32)
    zc = jnp.zeros((1, H + 2, 1, C), jnp.float32)
    pad_ref[:, 0:1, :, :] = zr
    pad_ref[:, H + 1:H + 2, :, :] = zr
    pad_ref[:, :, 0:1, :] = zc
    pad_ref[:, :, W + 1:W + 2, :] = zc


def _im2col_3x3(xp, H, W, C):
    """(1, H+2, W+2, C) padded tile -> (H*W, 9*C) im2col patch (single fat contraction)."""
    cols = [xp[:, kh:kh + H, kw:kw + W, :] for kh in range(3) for kw in range(3)]
    return jnp.concatenate(cols, axis=-1).reshape(H * W, 9 * C)


def _store_stats(st_ref, y, Cout):
    """Per-tile partial BN statistics: [sum, sum-of-squares] over the tile rows."""
    st_ref[:, 0:1, :] = jnp.sum(y, axis=0, keepdims=True).reshape(1, 1, Cout)
    st_ref[:, 1:2, :] = jnp.sum(y * y, axis=0, keepdims=True).reshape(1, 1, Cout)


def _make_conv1_skip_kernel(H, W, Cin, Cout, has_skip):
    HW = H * W

    def kernel(*refs):
        if has_skip:
            x_ref, w1_ref, ws_ref, y1_ref, st1_ref, s_ref, sts_ref, xpad = refs
        else:
            x_ref, w1_ref, y1_ref, st1_ref, xpad = refs

        # Build the zero-padded tile in VMEM (no wrapper-side jnp.pad).
        _zero_halo_border(xpad, H, W, Cin)
        xpad[:, 1:H + 1, 1:W + 1, :] = x_ref[...]

        # conv1: ONE MXU contraction in bf16, f32 accumulation. Bias omitted (cancels in BN).
        patch = _im2col_3x3(xpad[...], H, W, Cin).astype(jnp.bfloat16)
        y1 = jnp.dot(patch, w1_ref[...], preferred_element_type=jnp.float32)  # (HW, Cout) f32
        y1_ref[...] = y1.reshape(1, HW, Cout)
        _store_stats(st1_ref, y1, Cout)

        if has_skip:
            # 1x1 projection skip (stride 1): a plain (HW, Cin) @ (Cin, Cout) matmul.
            xc = x_ref[...].reshape(HW, Cin).astype(jnp.bfloat16)
            s = jnp.dot(xc, ws_ref[...], preferred_element_type=jnp.float32)
            s_ref[...] = s.reshape(1, HW, Cout)
            _store_stats(sts_ref, s, Cout)

    return kernel


def _make_conv2_kernel(H, W, Cout):
    HW = H * W

    def kernel(y1_ref, a1_ref, c1_ref, w2_ref, y2_ref, st2_ref, hpad):
        # Folded BN1 (one mul + one add per element) + ReLU, in f32.
        h = jnp.maximum(y1_ref[...].reshape(HW, Cout) * a1_ref[...] + c1_ref[...], 0.0)

        _zero_halo_border(hpad, H, W, Cout)
        hpad[:, 1:H + 1, 1:W + 1, :] = h.reshape(1, H, W, Cout)

        patch = _im2col_3x3(hpad[...], H, W, Cout).astype(jnp.bfloat16)
        y2 = jnp.dot(patch, w2_ref[...], preferred_element_type=jnp.float32)
        y2_ref[...] = y2.reshape(1, HW, Cout)
        _store_stats(st2_ref, y2, Cout)

    return kernel


def _make_finalize_kernel(HW, Cout, has_skip):
    def kernel(*refs):
        if has_skip:
            y2_ref, a2_ref, c2_ref, s_ref, as_ref, cs_ref, out_ref = refs
        else:
            y2_ref, a2_ref, c2_ref, x_ref, out_ref = refs

        main = y2_ref[...].reshape(HW, Cout) * a2_ref[...] + c2_ref[...]   # folded BN2
        if has_skip:
            skip = s_ref[...].reshape(HW, Cout) * as_ref[...] + cs_ref[...]  # folded BN_skip
        else:
            skip = x_ref[...].reshape(HW, Cout)   # identity skip (Cin == Cout)
        out_ref[...] = jnp.maximum(main + skip, 0.0).reshape(1, HW, Cout)

    return kernel


def _fold_bn(partial_stats, count, gamma, beta, eps=EPS):
    """Reduce per-tile [sum, sumsq] partials -> folded per-channel scale/shift (y*a + c)."""
    tot = jnp.sum(partial_stats, axis=0)                    # (2, C)
    mean = tot[0] / count
    var = tot[1] / count - mean * mean                      # biased variance (PyTorch BN)
    a = gamma.reshape(-1) * jax.lax.rsqrt(var + eps)
    c = beta.reshape(-1) - mean * a
    return (a.reshape(1, -1).astype(jnp.float32),
            c.reshape(1, -1).astype(jnp.float32))


@functools.partial(jax.jit, static_argnames=("stride",))
def residual_block(x_nchw, params, stride=1):
    """Pallas ResidualBlock forward. x_nchw: (N, Cin, H, W) f32 -> (N, Cout, H, W) f32."""
    if stride != 1:
        # TODO(synk): stride != 1 (downsampling conv) not implemented in the Pallas kernels.
        raise NotImplementedError("Only stride=1 is implemented.")

    x = jnp.transpose(x_nchw, (0, 2, 3, 1)).astype(jnp.float32)      # NCHW -> NHWC
    N, H, W, Cin = x.shape
    Cout = params["w1"].shape[-1]
    HW = H * W
    has_skip = (Cin != Cout) or (stride != 1)
    if not has_skip and Cin != Cout:
        raise ValueError("identity skip requires Cin == Cout")
    count = float(N * HW)

    # im2col-flattened weights, bf16 for the MXU (accumulation stays f32 in-kernel).
    w1p = params["w1"].reshape(9 * Cin, Cout).astype(jnp.bfloat16)
    w2p = params["w2"].reshape(9 * Cout, Cout).astype(jnp.bfloat16)

    full = lambda shape: pl.BlockSpec(shape, lambda n: (0,) * len(shape))
    tile3 = lambda d1, d2: pl.BlockSpec((1, d1, d2), lambda n: (n, 0, 0))
    act = lambda: jax.ShapeDtypeStruct((N, HW, Cout), jnp.float32)
    stat = lambda: jax.ShapeDtypeStruct((N, 2, Cout), jnp.float32)

    # ---- pass 1: conv1 (+ 1x1 skip conv) and partial BN statistics -------------------
    in1 = [x, w1p]
    in1_specs = [pl.BlockSpec((1, H, W, Cin), lambda n: (n, 0, 0, 0)),
                 full((9 * Cin, Cout))]
    out1_shape = [act(), stat()]
    out1_specs = [tile3(HW, Cout), tile3(2, Cout)]
    if has_skip:
        in1.append(params["ws"].astype(jnp.bfloat16))
        in1_specs.append(full((Cin, Cout)))
        out1_shape += [act(), stat()]
        out1_specs += [tile3(HW, Cout), tile3(2, Cout)]

    res1 = pl.pallas_call(
        _make_conv1_skip_kernel(H, W, Cin, Cout, has_skip),
        grid=(N,),
        in_specs=in1_specs,
        out_specs=tuple(out1_specs),
        out_shape=tuple(out1_shape),
        scratch_shapes=[pltpu.VMEM((1, H + 2, W + 2, Cin), jnp.float32)],
        compiler_params=_COMPILER_PARAMS,
    )(*in1)
    if has_skip:
        y1, st1, s_raw, st_s = res1
    else:
        y1, st1 = res1

    a1, c1 = _fold_bn(st1, count, params["g1"], params["bt1"])

    # ---- pass 2: folded BN1 + ReLU -> conv2, with partial BN statistics --------------
    y2, st2 = pl.pallas_call(
        _make_conv2_kernel(H, W, Cout),
        grid=(N,),
        in_specs=[tile3(HW, Cout), full((1, Cout)), full((1, Cout)), full((9 * Cout, Cout))],
        out_specs=(tile3(HW, Cout), tile3(2, Cout)),
        out_shape=(act(), stat()),
        scratch_shapes=[pltpu.VMEM((1, H + 2, W + 2, Cout), jnp.float32)],
        compiler_params=_COMPILER_PARAMS,
    )(y1, a1, c1, w2p)

    a2, c2 = _fold_bn(st2, count, params["g2"], params["bt2"])

    # ---- pass 3: folded BN2 + folded BN_skip + add + ReLU -----------------------------
    if has_skip:
        a_s, c_s = _fold_bn(st_s, count, params["gs"], params["bts"])
        in3 = [y2, a2, c2, s_raw, a_s, c_s]
        in3_specs = [tile3(HW, Cout), full((1, Cout)), full((1, Cout)),
                     tile3(HW, Cout), full((1, Cout)), full((1, Cout))]
    else:
        in3 = [y2, a2, c2, x.reshape(N, HW, Cin)]
        in3_specs = [tile3(HW, Cout), full((1, Cout)), full((1, Cout)), tile3(HW, Cin)]

    out_flat = pl.pallas_call(
        _make_finalize_kernel(HW, Cout, has_skip),
        grid=(N,),
        in_specs=in3_specs,
        out_specs=tile3(HW, Cout),
        out_shape=act(),
        compiler_params=_COMPILER_PARAMS,
    )(*in3)

    # NOTE: with tiny Cout (=8 here) the (HW, Cout) stores are lane-masked; real ResNet
    # channel counts (>=128) make them lane-dense.
    # TODO(synk): fold W into the lane dim (W*Cout-wide stores) for small-channel cases.
    out = out_flat.reshape(N, H, W, Cout)
    return jnp.transpose(out, (0, 3, 1, 2))                           # NHWC -> NCHW


# ---------------- pure-JAX reference (for correctness check) ----------------
def reference(x_nchw, params):
    x = jnp.transpose(x_nchw, (0, 2, 3, 1))
    Cin = x.shape[-1]
    Cout = params["w1"].shape[-1]

    def conv(h, w_hwio, b, pad):
        y = jax.lax.conv_general_dilated(
            h, w_hwio, window_strides=(1, 1),
            padding=((pad, pad), (pad, pad)),
            dimension_numbers=("NHWC", "HWIO", "NHWC"))
        return y + b.reshape(1, 1, 1, -1)

    def bn(y, g, bt):
        m = jnp.mean(y, axis=(0, 1, 2))
        v = jnp.mean((y - m) ** 2, axis=(0, 1, 2))
        return (y - m) * jax.lax.rsqrt(v + EPS) * g.reshape(-1) + bt.reshape(-1)

    h = jax.nn.relu(bn(conv(x, params["w1"], params["b1"], 1), params["g1"], params["bt1"]))
    h = bn(conv(h, params["w2"], params["b2"], 1), params["g2"], params["bt2"])
    if Cin != Cout:
        s = bn(conv(x, params["ws"].reshape(1, 1, Cin, Cout), params["bs"], 0),
               params["gs"], params["bts"])
    else:
        s = x
    return jnp.transpose(jax.nn.relu(h + s), (0, 3, 1, 2))


if __name__ == "__main__":
    N, Cin, Cout, H, W = 2, 4, 8, 16, 16

    key = jax.random.PRNGKey(0)
    ks = jax.random.split(key, 16)

    def rnd(k, shape, scale=0.1):
        return (jax.random.normal(k, shape) * scale).astype(jnp.float32)

    params = {
        "w1": rnd(ks[0], (3, 3, Cin, Cout)),   # HWIO
        "b1": rnd(ks[1], (1, Cout)),           # biases cancel under batch-stat BN
        "g1": (1.0 + rnd(ks[2], (1, Cout))).astype(jnp.float32),
        "bt1": rnd(ks[3], (1, Cout)),
        "w2": rnd(ks[4], (3, 3, Cout, Cout)),
        "b2": rnd(ks[5], (1, Cout)),
        "g2": (1.0 + rnd(ks[6], (1, Cout))).astype(jnp.float32),
        "bt2": rnd(ks[7], (1, Cout)),
        "ws": rnd(ks[8], (Cin, Cout)),          # 1x1 projection
        "bs": rnd(ks[9], (1, Cout)),
        "gs": (1.0 + rnd(ks[10], (1, Cout))).astype(jnp.float32),
        "bts": rnd(ks[11], (1, Cout)),
    }
    x = jax.random.normal(ks[12], (N, Cin, H, W), dtype=jnp.float32)  # PyTorch-style NCHW

    out = residual_block(x, params, stride=1)
    out = jax.block_until_ready(out)

    ref = jax.block_until_ready(reference(x, params))
    max_err = float(jnp.max(jnp.abs(out - ref)))
    assert out.shape == (N, Cout, H, W), out.shape
    assert max_err < 5e-2, f"max abs error too large: {max_err}"

    print("KERNEL_OK")
</pallas_src>

<mosaic_0001>
module attributes {stable_mosaic.version = 11 : i64} {
  func.func @kernel(%arg0: i32, %arg1: memref<1x256x8xf32, #tpu.memory_space<vmem>>, %arg2: memref<1x8xf32, #tpu.memory_space<vmem>>, %arg3: memref<1x8xf32, #tpu.memory_space<vmem>>, %arg4: memref<72x8xbf16, #tpu.memory_space<vmem>>, %arg5: memref<1x256x8xf32, #tpu.memory_space<vmem>>, %arg6: memref<1x2x8xf32, #tpu.memory_space<vmem>>, %arg7: memref<1x18x18x8xf32, #tpu.memory_space<vmem>>) attributes {dimension_semantics = [#tpu.dimension_semantics<parallel>], iteration_bounds = array<i64: 2>, scalar_prefetch = 0 : i64, scratch_operands = 1 : i64, tpu.core_type = #tpu.core_type<tc>, window_params = [{transform_indices = @transform_0, window_bounds = array<i64: 1, 256, 8>}, {pipeline_mode = #tpu.pipeline_mode<synchronous>, transform_indices = @transform_1, window_bounds = array<i64: 1, 8>}, {pipeline_mode = #tpu.pipeline_mode<synchronous>, transform_indices = @transform_2, window_bounds = array<i64: 1, 8>}, {pipeline_mode = #tpu.pipeline_mode<synchronous>, transform_indices = @transform_3, window_bounds = array<i64: 72, 8>}, {transform_indices = @transform_4, window_bounds = array<i64: 1, 256, 8>}, {transform_indices = @transform_5, window_bounds = array<i64: 1, 2, 8>}]} {
    %c0 = arith.constant 0 : index
    %c0_0 = arith.constant 0 : index
    %c0_1 = arith.constant 0 : index
    %0 = vector.load %arg1[%c0, %c0_0, %c0_1] : memref<1x256x8xf32, #tpu.memory_space<vmem>>, vector<1x256x8xf32>
    %1 = vector.shape_cast %0 : vector<1x256x8xf32> to vector<256x8xf32>
    %c0_2 = arith.constant 0 : index
    %c0_3 = arith.constant 0 : index
    %2 = vector.load %arg2[%c0_2, %c0_3] : memref<1x8xf32, #tpu.memory_space<vmem>>, vector<1x8xf32>
    %3 = vector.broadcast %2 : vector<1x8xf32> to vector<256x8xf32>
    %4 = arith.mulf %1, %3 : vector<256x8xf32>
    %c0_4 = arith.constant 0 : index
    %c0_5 = arith.constant 0 : index
    %5 = vector.load %arg3[%c0_4, %c0_5] : memref<1x8xf32, #tpu.memory_space<vmem>>, vector<1x8xf32>
    %6 = vector.broadcast %5 : vector<1x8xf32> to vector<256x8xf32>
    %7 = arith.addf %4, %6 : vector<256x8xf32>
    %cst = arith.constant 0.000000e+00 : f32
    %8 = vector.broadcast %cst : f32 to vector<256x8xf32>
    %9 = arith.maximumf %7, %8 : vector<256x8xf32>
    %cst_6 = arith.constant 0.000000e+00 : f32
    %10 = vector.broadcast %cst_6 : f32 to vector<1x1x18x8xf32>
    %cst_7 = arith.constant 0.000000e+00 : f32
    %11 = vector.broadcast %cst_7 : f32 to vector<1x18x1x8xf32>
    %c0_8 = arith.constant 0 : index
    %c0_9 = arith.constant 0 : index
    %c0_10 = arith.constant 0 : index
    %c0_11 = arith.constant 0 : index
    %12 = vector.load %arg7[%c0_8, %c0_9, %c0_10, %c0_11] : memref<1x18x18x8xf32, #tpu.memory_space<vmem>>, vector<1x1x18x8xf32>
    tpu.vector_store %arg7[%c0_8, %c0_9, %c0_10, %c0_11], %10 {strides = array<i32>} : memref<1x18x18x8xf32, #tpu.memory_space<vmem>>, vector<1x1x18x8xf32>,
    %c0_12 = arith.constant 0 : index
    %c17 = arith.constant 17 : index
    %c0_13 = arith.constant 0 : index
    %c0_14 = arith.constant 0 : index
    %13 = vector.load %arg7[%c0_12, %c17, %c0_13, %c0_14] : memref<1x18x18x8xf32, #tpu.memory_space<vmem>>, vector<1x1x18x8xf32>
    tpu.vector_store %arg7[%c0_12, %c17, %c0_13, %c0_14], %10 {strides = array<i32>} : memref<1x18x18x8xf32, #tpu.memory_space<vmem>>, vector<1x1x18x8xf32>,
    %c0_15 = arith.constant 0 : index
    %c0_16 = arith.constant 0 : index
    %c0_17 = arith.constant 0 : index
    %c0_18 = arith.constant 0 : index
    %14 = vector.load %arg7[%c0_15, %c0_16, %c0_17, %c0_18] : memref<1x18x18x8xf32, #tpu.memory_space<vmem>>, vector<1x18x1x8xf32>
    tpu.vector_store %arg7[%c0_15, %c0_16, %c0_17, %c0_18], %11 {strides = array<i32>} : memref<1x18x18x8xf32, #tpu.memory_space<vmem>>, vector<1x18x1x8xf32>,
    %c0_19 = arith.constant 0 : index
    %c0_20 = arith.constant 0 : index
    %c17_21 = arith.constant 17 : index
    %c0_22 = arith.constant 0 : index
    %15 = vector.load %arg7[%c0_19, %c0_20, %c17_21, %c0_22] : memref<1x18x18x8xf32, #tpu.memory_space<vmem>>, vector<1x18x1x8xf32>
    tpu.vector_store %arg7[%c0_19, %c0_20, %c17_21, %c0_22], %11 {strides = array<i32>} : memref<1x18x18x8xf32, #tpu.memory_space<vmem>>, vector<1x18x1x8xf32>,
    %16 = vector.shape_cast %9 : vector<256x8xf32> to vector<1x16x16x8xf32>
    %c0_23 = arith.constant 0 : index
    %c1 = arith.constant 1 : index
    %c1_24 = arith.constant 1 : index
    %c0_25 = arith.constant 0 : index
    %17 = vector.load %arg7[%c0_23, %c1, %c1_24, %c0_25] : memref<1x18x18x8xf32, #tpu.memory_space<vmem>>, vector<1x16x16x8xf32>
    tpu.vector_store %arg7[%c0_23, %c1, %c1_24, %c0_25], %16 {strides = array<i32>} : memref<1x18x18x8xf32, #tpu.memory_space<vmem>>, vector<1x16x16x8xf32>,
    %c0_26 = arith.constant 0 : index
    %c0_27 = arith.constant 0 : index
    %c0_28 = arith.constant 0 : index
    %c0_29 = arith.constant 0 : index
    %18 = vector.load %arg7[%c0_26, %c0_27, %c0_28, %c0_29] : memref<1x18x18x8xf32, #tpu.memory_space<vmem>>, vector<1x18x18x8xf32>
    %19 = vector.extract_strided_slice %18 {offsets = [0, 0, 0, 0], sizes = [1, 16, 16, 8], strides = [1, 1, 1, 1]} : vector<1x18x18x8xf32> to vector<1x16x16x8xf32>
    %20 = vector.extract_strided_slice %18 {offsets = [0, 0, 1, 0], sizes = [1, 16, 16, 8], strides = [1, 1, 1, 1]} : vector<1x18x18x8xf32> to vector<1x16x16x8xf32>
    %21 = vector.extract_strided_slice %18 {offsets = [0, 0, 2, 0], sizes = [1, 16, 16, 8], strides = [1, 1, 1, 1]} : vector<1x18x18x8xf32> to vector<1x16x16x8xf32>
    %22 = vector.extract_strided_slice %18 {offsets = [0, 1, 0, 0], sizes = [1, 16, 16, 8], strides = [1, 1, 1, 1]} : vector<1x18x18x8xf32> to vector<1x16x16x8xf32>
    %23 = vector.extract_strided_slice %18 {offsets = [0, 1, 1, 0], sizes = [1, 16, 16, 8], strides = [1, 1, 1, 1]} : vector<1x18x18x8xf32> to vector<1x16x16x8xf32>
    %24 = vector.extract_strided_slice %18 {offsets = [0, 1, 2, 0], sizes = [1, 16, 16, 8], strides = [1, 1, 1, 1]} : vector<1x18x18x8xf32> to vector<1x16x16x8xf32>
    %25 = vector.extract_strided_slice %18 {offsets = [0, 2, 0, 0], sizes = [1, 16, 16, 8], strides = [1, 1, 1, 1]} : vector<1x18x18x8xf32> to vector<1x16x16x8xf32>
    %26 = vector.extract_strided_slice %18 {offsets = [0, 2, 1, 0], sizes = [1, 16, 16, 8], strides = [1, 1, 1, 1]} : vector<1x18x18x8xf32> to vector<1x16x16x8xf32>
    %27 = vector.extract_strided_slice %18 {offsets = [0, 2, 2, 0], sizes = [1, 16, 16, 8], strides = [1, 1, 1, 1]} : vector<1x18x18x8xf32> to vector<1x16x16x8xf32>
    %28 = tpu.concatenate %19, %20, %21, %22, %23, %24, %25, %26, %27 in 3 : vector<1x16x16x8xf32>, vector<1x16x16x8xf32>, vector<1x16x16x8xf32>, vector<1x16x16x8xf32>, vector<1x16x16x8xf32>, vector<1x16x16x8xf32>, vector<1x16x16x8xf32>, vector<1x16x16x8xf32>, vector<1x16x16x8xf32> -> vector<1x16x16x72xf32>
    %29 = vector.shape_cast %28 : vector<1x16x16x72xf32> to vector<256x72xf32>
    %30 = arith.truncf %29 : vector<256x72xf32> to vector<256x72xbf16>
    %c0_30 = arith.constant 0 : index
    %c0_31 = arith.constant 0 : index
    %31 = vector.load %arg4[%c0_30, %c0_31] : memref<72x8xbf16, #tpu.memory_space<vmem>>, vector<72x8xbf16>
    %cst_32 = arith.constant dense<0.000000e+00> : vector<256x8xf32>
    %32 = tpu.matmul %30, %31, %cst_32 {dimension_numbers = #tpu.dot_dimension_numbers<[1], [0], [0], [1], [0, 0, 1, 1], [], []>} : vector<256x72xbf16>, vector<72x8xbf16>, vector<256x8xf32> -> vector<256x8xf32>
    %33 = vector.shape_cast %32 : vector<256x8xf32> to vector<1x256x8xf32>
    %c0_33 = arith.constant 0 : index
    %c0_34 = arith.constant 0 : index
    %c0_35 = arith.constant 0 : index
    %34 = vector.load %arg5[%c0_33, %c0_34, %c0_35] : memref<1x256x8xf32, #tpu.memory_space<vmem>>, vector<1x256x8xf32>
    tpu.vector_store %arg5[%c0_33, %c0_34, %c0_35], %33 {strides = array<i32>} : memref<1x256x8xf32, #tpu.memory_space<vmem>>, vector<1x256x8xf32>,
    %cst_36 = arith.constant dense<0.000000e+00> : vector<8xf32>
    %35 = vector.multi_reduction <add>, %32, %cst_36 [0] : vector<256x8xf32> to vector<8xf32>
    %36 = vector.shape_cast %35 : vector<8xf32> to vector<1x8xf32>
    %37 = vector.shape_cast %36 : vector<1x8xf32> to vector<1x1x8xf32>
    %c0_37 = arith.constant 0 : index
    %c0_38 = arith.constant 0 : index
    %c0_39 = arith.constant 0 : index
    %38 = vector.load %arg6[%c0_37, %c0_38, %c0_39] : memref<1x2x8xf32, #tpu.memory_space<vmem>>, vector<1x1x8xf32>
    tpu.vector_store %arg6[%c0_37, %c0_38, %c0_39], %37 {strides = array<i32>} : memref<1x2x8xf32, #tpu.memory_space<vmem>>, vector<1x1x8xf32>,
    %39 = arith.mulf %32, %32 : vector<256x8xf32>
    %cst_40 = arith.constant dense<0.000000e+00> : vector<8xf32>
    %40 = vector.multi_reduction <add>, %39, %cst_40 [0] : vector<256x8xf32> to vector<8xf32>
    %41 = vector.shape_cast %40 : vector<8xf32> to vector<1x8xf32>
    %42 = vector.shape_cast %41 : vector<1x8xf32> to vector<1x1x8xf32>
    %c0_41 = arith.constant 0 : index
    %c1_42 = arith.constant 1 : index
    %c0_43 = arith.constant 0 : index
    %43 = vector.load %arg6[%c0_41, %c1_42, %c0_43] : memref<1x2x8xf32, #tpu.memory_space<vmem>>, vector<1x1x8xf32>
    tpu.vector_store %arg6[%c0_41, %c1_42, %c0_43], %42 {strides = array<i32>} : memref<1x2x8xf32, #tpu.memory_space<vmem>>, vector<1x1x8xf32>,
    return
  }
  func.func @transform_0(%arg0: i32) -> (i32, i32, i32) {
    %c0_i32 = arith.constant 0 : i32
    %c0_i32_0 = arith.constant 0 : i32
    %c0_i32_1 = arith.constant 0 : i32
    return %arg0, %c0_i32, %c0_i32_0 : i32, i32, i32
  }
  func.func @transform_1(%arg0: i32) -> (i32, i32) {
    %c0_i32 = arith.constant 0 : i32
    %c0_i32_0 = arith.constant 0 : i32
    %c0_i32_1 = arith.constant 0 : i32
    return %c0_i32, %c0_i32_0 : i32, i32
  }
  func.func @transform_2(%arg0: i32) -> (i32, i32) {
    %c0_i32 = arith.constant 0 : i32
    %c0_i32_0 = arith.constant 0 : i32
    %c0_i32_1 = arith.constant 0 : i32
    return %c0_i32, %c0_i32_0 : i32, i32
  }
  func.func @transform_3(%arg0: i32) -> (i32, i32) {
    %c0_i32 = arith.constant 0 : i32
    %c0_i32_0 = arith.constant 0 : i32
    %c0_i32_1 = arith.constant 0 : i32
    return %c0_i32, %c0_i32_0 : i32, i32
  }
  func.func @transform_4(%arg0: i32) -> (i32, i32, i32) {
    %c0_i32 = arith.constant 0 : i32
    %c0_i32_0 = arith.constant 0 : i32
    %c0_i32_1 = arith.constant 0 : i32
    return %arg0, %c0_i32, %c0_i32_0 : i32, i32, i32
  }
  func.func @transform_5(%arg0: i32) -> (i32, i32, i32) {
    %c0_i32 = arith.constant 0 : i32
    %c0_i32_0 = arith.constant 0 : i32
    %c0_i32_1 = arith.constant 0 : i32
    return %arg0, %c0_i32, %c0_i32_0 : i32, i32, i32
  }
}

module attributes {stable_mosaic.version = 11 : i64} {
  func.func @kernel(%arg0: i32, %arg1: memref<1x16x16x4xf32, #tpu.memory_space<vmem>>, %arg2: memref<36x8xbf16, #tpu.memory_space<vmem>>, %arg3: memref<4x8xbf16, #tpu.memory_space<vmem>>, %arg4: memref<1x256x8xf32, #tpu.memory_space<vmem>>, %arg5: memref<1x2x8xf32, #tpu.memory_space<vmem>>, %arg6: memref<1x256x8xf32, #tpu.memory_space<vmem>>, %arg7: memref<1x2x8xf32, #tpu.memory_space<vmem>>, %arg8: memref<1x18x18x4xf32, #tpu.memory_space<vmem>>) attributes {dimension_semantics = [#tpu.dimension_semantics<parallel>], iteration_bounds = array<i64: 2>, scalar_prefetch = 0 : i64, scratch_operands = 1 : i64, tpu.core_type = #tpu.core_type<tc>, window_params = [{transform_indices = @transform_0, window_bounds = array<i64: 1, 16, 16, 4>}, {pipeline_mode = #tpu.pipeline_mode<synchronous>, transform_indices = @transform_1, window_bounds = array<i64: 36, 8>}, {pipeline_mode = #tpu.pipeline_mode<synchronous>, transform_indices = @transform_2, window_bounds = array<i64: 4, 8>}, {transform_indices = @transform_3, window_bounds = array<i64: 1, 256, 8>}, {transform_indices = @transform_4, window_bounds = array<i64: 1, 2, 8>}, {transform_indices = @transform_5, window_bounds = array<i64: 1, 256, 8>}, {transform_indices = @transform_6, window_bounds = array<i64: 1, 2, 8>}]} {
    %cst = arith.constant 0.000000e+00 : f32
    %0 = vector.broadcast %cst : f32 to vector<1x1x18x4xf32>
    %cst_0 = arith.constant 0.000000e+00 : f32
    %1 = vector.broadcast %cst_0 : f32 to vector<1x18x1x4xf32>
    %c0 = arith.constant 0 : index
    %c0_1 = arith.constant 0 : index
    %c0_2 = arith.constant 0 : index
    %c0_3 = arith.constant 0 : index
    %2 = vector.load %arg8[%c0, %c0_1, %c0_2, %c0_3] : memref<1x18x18x4xf32, #tpu.memory_space<vmem>>, vector<1x1x18x4xf32>
    tpu.vector_store %arg8[%c0, %c0_1, %c0_2, %c0_3], %0 {strides = array<i32>} : memref<1x18x18x4xf32, #tpu.memory_space<vmem>>, vector<1x1x18x4xf32>,
    %c0_4 = arith.constant 0 : index
    %c17 = arith.constant 17 : index
    %c0_5 = arith.constant 0 : index
    %c0_6 = arith.constant 0 : index
    %3 = vector.load %arg8[%c0_4, %c17, %c0_5, %c0_6] : memref<1x18x18x4xf32, #tpu.memory_space<vmem>>, vector<1x1x18x4xf32>
    tpu.vector_store %arg8[%c0_4, %c17, %c0_5, %c0_6], %0 {strides = array<i32>} : memref<1x18x18x4xf32, #tpu.memory_space<vmem>>, vector<1x1x18x4xf32>,
    %c0_7 = arith.constant 0 : index
    %c0_8 = arith.constant 0 : index
    %c0_9 = arith.constant 0 : index
    %c0_10 = arith.constant 0 : index
    %4 = vector.load %arg8[%c0_7, %c0_8, %c0_9, %c0_10] : memref<1x18x18x4xf32, #tpu.memory_space<vmem>>, vector<1x18x1x4xf32>
    tpu.vector_store %arg8[%c0_7, %c0_8, %c0_9, %c0_10], %1 {strides = array<i32>} : memref<1x18x18x4xf32, #tpu.memory_space<vmem>>, vector<1x18x1x4xf32>,
    %c0_11 = arith.constant 0 : index
    %c0_12 = arith.constant 0 : index
    %c17_13 = arith.constant 17 : index
    %c0_14 = arith.constant 0 : index
    %5 = vector.load %arg8[%c0_11, %c0_12, %c17_13, %c0_14] : memref<1x18x18x4xf32, #tpu.memory_space<vmem>>, vector<1x18x1x4xf32>
    tpu.vector_store %arg8[%c0_11, %c0_12, %c17_13, %c0_14], %1 {strides = array<i32>} : memref<1x18x18x4xf32, #tpu.memory_space<vmem>>, vector<1x18x1x4xf32>,
    %c0_15 = arith.constant 0 : index
    %c0_16 = arith.constant 0 : index
    %c0_17 = arith.constant 0 : index
    %c0_18 = arith.constant 0 : index
    %6 = vector.load %arg1[%c0_15, %c0_16, %c0_17, %c0_18] : memref<1x16x16x4xf32, #tpu.memory_space<vmem>>, vector<1x16x16x4xf32>
    %c0_19 = arith.constant 0 : index
    %c1 = arith.constant 1 : index
    %c1_20 = arith.constant 1 : index
    %c0_21 = arith.constant 0 : index
    %7 = vector.load %arg8[%c0_19, %c1, %c1_20, %c0_21] : memref<1x18x18x4xf32, #tpu.memory_space<vmem>>, vector<1x16x16x4xf32>
    tpu.vector_store %arg8[%c0_19, %c1, %c1_20, %c0_21], %6 {strides = array<i32>} : memref<1x18x18x4xf32, #tpu.memory_space<vmem>>, vector<1x16x16x4xf32>,
    %c0_22 = arith.constant 0 : index
    %c0_23 = arith.constant 0 : index
    %c0_24 = arith.constant 0 : index
    %c0_25 = arith.constant 0 : index
    %8 = vector.load %arg8[%c0_22, %c0_23, %c0_24, %c0_25] : memref<1x18x18x4xf32, #tpu.memory_space<vmem>>, vector<1x18x18x4xf32>
    %9 = vector.extract_strided_slice %8 {offsets = [0, 0, 0, 0], sizes = [1, 16, 16, 4], strides = [1, 1, 1, 1]} : vector<1x18x18x4xf32> to vector<1x16x16x4xf32>
    %10 = vector.extract_strided_slice %8 {offsets = [0, 0, 1, 0], sizes = [1, 16, 16, 4], strides = [1, 1, 1, 1]} : vector<1x18x18x4xf32> to vector<1x16x16x4xf32>
    %11 = vector.extract_strided_slice %8 {offsets = [0, 0, 2, 0], sizes = [1, 16, 16, 4], strides = [1, 1, 1, 1]} : vector<1x18x18x4xf32> to vector<1x16x16x4xf32>
    %12 = vector.extract_strided_slice %8 {offsets = [0, 1, 0, 0], sizes = [1, 16, 16, 4], strides = [1, 1, 1, 1]} : vector<1x18x18x4xf32> to vector<1x16x16x4xf32>
    %13 = vector.extract_strided_slice %8 {offsets = [0, 1, 1, 0], sizes = [1, 16, 16, 4], strides = [1, 1, 1, 1]} : vector<1x18x18x4xf32> to vector<1x16x16x4xf32>
    %14 = vector.extract_strided_slice %8 {offsets = [0, 1, 2, 0], sizes = [1, 16, 16, 4], strides = [1, 1, 1, 1]} : vector<1x18x18x4xf32> to vector<1x16x16x4xf32>
    %15 = vector.extract_strided_slice %8 {offsets = [0, 2, 0, 0], sizes = [1, 16, 16, 4], strides = [1, 1, 1, 1]} : vector<1x18x18x4xf32> to vector<1x16x16x4xf32>
    %16 = vector.extract_strided_slice %8 {offsets = [0, 2, 1, 0], sizes = [1, 16, 16, 4], strides = [1, 1, 1, 1]} : vector<1x18x18x4xf32> to vector<1x16x16x4xf32>
    %17 = vector.extract_strided_slice %8 {offsets = [0, 2, 2, 0], sizes = [1, 16, 16, 4], strides = [1, 1, 1, 1]} : vector<1x18x18x4xf32> to vector<1x16x16x4xf32>
    %18 = tpu.concatenate %9, %10, %11, %12, %13, %14, %15, %16, %17 in 3 : vector<1x16x16x4xf32>, vector<1x16x16x4xf32>, vector<1x16x16x4xf32>, vector<1x16x16x4xf32>, vector<1x16x16x4xf32>, vector<1x16x16x4xf32>, vector<1x16x16x4xf32>, vector<1x16x16x4xf32>, vector<1x16x16x4xf32> -> vector<1x16x16x36xf32>
    %19 = vector.shape_cast %18 : vector<1x16x16x36xf32> to vector<256x36xf32>
    %20 = arith.truncf %19 : vector<256x36xf32> to vector<256x36xbf16>
    %c0_26 = arith.constant 0 : index
    %c0_27 = arith.constant 0 : index
    %21 = vector.load %arg2[%c0_26, %c0_27] : memref<36x8xbf16, #tpu.memory_space<vmem>>, vector<36x8xbf16>
    %cst_28 = arith.constant dense<0.000000e+00> : vector<256x8xf32>
    %22 = tpu.matmul %20, %21, %cst_28 {dimension_numbers = #tpu.dot_dimension_numbers<[1], [0], [0], [1], [0, 0, 1, 1], [], []>} : vector<256x36xbf16>, vector<36x8xbf16>, vector<256x8xf32> -> vector<256x8xf32>
    %23 = vector.shape_cast %22 : vector<256x8xf32> to vector<1x256x8xf32>
    %c0_29 = arith.constant 0 : index
    %c0_30 = arith.constant 0 : index
    %c0_31 = arith.constant 0 : index
    %24 = vector.load %arg4[%c0_29, %c0_30, %c0_31] : memref<1x256x8xf32, #tpu.memory_space<vmem>>, vector<1x256x8xf32>
    tpu.vector_store %arg4[%c0_29, %c0_30, %c0_31], %23 {strides = array<i32>} : memref<1x256x8xf32, #tpu.memory_space<vmem>>, vector<1x256x8xf32>,
    %cst_32 = arith.constant dense<0.000000e+00> : vector<8xf32>
    %25 = vector.multi_reduction <add>, %22, %cst_32 [0] : vector<256x8xf32> to vector<8xf32>
    %26 = vector.shape_cast %25 : vector<8xf32> to vector<1x8xf32>
    %27 = vector.shape_cast %26 : vector<1x8xf32> to vector<1x1x8xf32>
    %c0_33 = arith.constant 0 : index
    %c0_34 = arith.constant 0 : index
    %c0_35 = arith.constant 0 : index
    %28 = vector.load %arg5[%c0_33, %c0_34, %c0_35] : memref<1x2x8xf32, #tpu.memory_space<vmem>>, vector<1x1x8xf32>
    tpu.vector_store %arg5[%c0_33, %c0_34, %c0_35], %27 {strides = array<i32>} : memref<1x2x8xf32, #tpu.memory_space<vmem>>, vector<1x1x8xf32>,
    %29 = arith.mulf %22, %22 : vector<256x8xf32>
    %cst_36 = arith.constant dense<0.000000e+00> : vector<8xf32>
    %30 = vector.multi_reduction <add>, %29, %cst_36 [0] : vector<256x8xf32> to vector<8xf32>
    %31 = vector.shape_cast %30 : vector<8xf32> to vector<1x8xf32>
    %32 = vector.shape_cast %31 : vector<1x8xf32> to vector<1x1x8xf32>
    %c0_37 = arith.constant 0 : index
    %c1_38 = arith.constant 1 : index
    %c0_39 = arith.constant 0 : index
    %33 = vector.load %arg5[%c0_37, %c1_38, %c0_39] : memref<1x2x8xf32, #tpu.memory_space<vmem>>, vector<1x1x8xf32>
    tpu.vector_store %arg5[%c0_37, %c1_38, %c0_39], %32 {strides = array<i32>} : memref<1x2x8xf32, #tpu.memory_space<vmem>>, vector<1x1x8xf32>,
    %c0_40 = arith.constant 0 : index
    %c0_41 = arith.constant 0 : index
    %c0_42 = arith.constant 0 : index
    %c0_43 = arith.constant 0 : index
    %34 = vector.load %arg1[%c0_40, %c0_41, %c0_42, %c0_43] : memref<1x16x16x4xf32, #tpu.memory_space<vmem>>, vector<1x16x16x4xf32>
    %35 = vector.shape_cast %34 : vector<1x16x16x4xf32> to vector<256x4xf32>
    %36 = arith.truncf %35 : vector<256x4xf32> to vector<256x4xbf16>
    %c0_44 = arith.constant 0 : index
    %c0_45 = arith.constant 0 : index
    %37 = vector.load %arg3[%c0_44, %c0_45] : memref<4x8xbf16, #tpu.memory_space<vmem>>, vector<4x8xbf16>
    %cst_46 = arith.constant dense<0.000000e+00> : vector<256x8xf32>
    %38 = tpu.matmul %36, %37, %cst_46 {dimension_numbers = #tpu.dot_dimension_numbers<[1], [0], [0], [1], [0, 0, 1, 1], [], []>} : vector<256x4xbf16>, vector<4x8xbf16>, vector<256x8xf32> -> vector<256x8xf32>
    %39 = vector.shape_cast %38 : vector<256x8xf32> to vector<1x256x8xf32>
    %c0_47 = arith.constant 0 : index
    %c0_48 = arith.constant 0 : index
    %c0_49 = arith.constant 0 : index
    %40 = vector.load %arg6[%c0_47, %c0_48, %c0_49] : memref<1x256x8xf32, #tpu.memory_space<vmem>>, vector<1x256x8xf32>
    tpu.vector_store %arg6[%c0_47, %c0_48, %c0_49], %39 {strides = array<i32>} : memref<1x256x8xf32, #tpu.memory_space<vmem>>, vector<1x256x8xf32>,
    %cst_50 = arith.constant dense<0.000000e+00> : vector<8xf32>
    %41 = vector.multi_reduction <add>, %38, %cst_50 [0] : vector<256x8xf32> to vector<8xf32>
    %42 = vector.shape_cast %41 : vector<8xf32> to vector<1x8xf32>
    %43 = vector.shape_cast %42 : vector<1x8xf32> to vector<1x1x8xf32>
    %c0_51 = arith.constant 0 : index
    %c0_52 = arith.constant 0 : index
    %c0_53 = arith.constant 0 : index
    %44 = vector.load %arg7[%c0_51, %c0_52, %c0_53] : memref<1x2x8xf32, #tpu.memory_space<vmem>>, vector<1x1x8xf32>
    tpu.vector_store %arg7[%c0_51, %c0_52, %c0_53], %43 {strides = array<i32>} : memref<1x2x8xf32, #tpu.memory_space<vmem>>, vector<1x1x8xf32>,
    %45 = arith.mulf %38, %38 : vector<256x8xf32>
    %cst_54 = arith.constant dense<0.000000e+00> : vector<8xf32>
    %46 = vector.multi_reduction <add>, %45, %cst_54 [0] : vector<256x8xf32> to vector<8xf32>
    %47 = vector.shape_cast %46 : vector<8xf32> to vector<1x8xf32>
    %48 = vector.shape_cast %47 : vector<1x8xf32> to vector<1x1x8xf32>
    %c0_55 = arith.constant 0 : index
    %c1_56 = arith.constant 1 : index
    %c0_57 = arith.constant 0 : index
    %49 = vector.load %arg7[%c0_55, %c1_56, %c0_57] : memref<1x2x8xf32, #tpu.memory_space<vmem>>, vector<1x1x8xf32>
    tpu.vector_store %arg7[%c0_55, %c1_56, %c0_57], %48 {strides = array<i32>} : memref<1x2x8xf32, #tpu.memory_space<vmem>>, vector<1x1x8xf32>,
    return
  }
  func.func @transform_0(%arg0: i32) -> (i32, i32, i32, i32) {
    %c0_i32 = arith.constant 0 : i32
    %c0_i32_0 = arith.constant 0 : i32
    %c0_i32_1 = arith.constant 0 : i32
    %c0_i32_2 = arith.constant 0 : i32
    return %arg0, %c0_i32, %c0_i32_0, %c0_i32_1 : i32, i32, i32, i32
  }
  func.func @transform_1(%arg0: i32) -> (i32, i32) {
    %c0_i32 = arith.constant 0 : i32
    %c0_i32_0 = arith.constant 0 : i32
    %c0_i32_1 = arith.constant 0 : i32
    return %c0_i32, %c0_i32_0 : i32, i32
  }
  func.func @transform_2(%arg0: i32) -> (i32, i32) {
    %c0_i32 = arith.constant 0 : i32
    %c0_i32_0 = arith.constant 0 : i32
    %c0_i32_1 = arith.constant 0 : i32
    return %c0_i32, %c0_i32_0 : i32, i32
  }
  func.func @transform_3(%arg0: i32) -> (i32, i32, i32) {
    %c0_i32 = arith.constant 0 : i32
    %c0_i32_0 = arith.constant 0 : i32
    %c0_i32_1 = arith.constant 0 : i32
    return %arg0, %c0_i32, %c0_i32_0 : i32, i32, i32
  }
  func.func @transform_4(%arg0: i32) -> (i32, i32, i32) {
    %c0_i32 = arith.constant 0 : i32
    %c0_i32_0 = arith.constant 0 : i32
    %c0_i32_1 = arith.constant 0 : i32
    return %arg0, %c0_i32, %c0_i32_0 : i32, i32, i32
  }
  func.func @transform_5(%arg0: i32) -> (i32, i32, i32) {
    %c0_i32 = arith.constant 0 : i32
    %c0_i32_0 = arith.constant 0 : i32
    %c0_i32_1 = arith.constant 0 : i32
    return %arg0, %c0_i32, %c0_i32_0 : i32, i32, i32
  }
  func.func @transform_6(%arg0: i32) -> (i32, i32, i32) {
    %c0_i32 = arith.constant 0 : i32
    %c0_i32_0 = arith.constant 0 : i32
    %c0_i32_1 = arith.constant 0 : i32
    return %arg0, %c0_i32, %c0_i32_0 : i32, i32, i32
  }
}

module attributes {stable_mosaic.version = 11 : i64} {
  func.func @kernel(%arg0: i32, %arg1: memref<1x256x8xf32, #tpu.memory_space<vmem>>, %arg2: memref<1x8xf32, #tpu.memory_space<vmem>>, %arg3: memref<1x8xf32, #tpu.memory_space<vmem>>, %arg4: memref<1x256x8xf32, #tpu.memory_space<vmem>>, %arg5: memref<1x8xf32, #tpu.memory_space<vmem>>, %arg6: memref<1x8xf32, #tpu.memory_space<vmem>>, %arg7: memref<1x256x8xf32, #tpu.memory_space<vmem>>) attributes {dimension_semantics = [#tpu.dimension_semantics<parallel>], iteration_bounds = array<i64: 2>, scalar_prefetch = 0 : i64, scratch_operands = 0 : i64, tpu.core_type = #tpu.core_type<tc>, window_params = [{transform_indices = @transform_0, window_bounds = array<i64: 1, 256, 8>}, {pipeline_mode = #tpu.pipeline_mode<synchronous>, transform_indices = @transform_1, window_bounds = array<i64: 1, 8>}, {pipeline_mode = #tpu.pipeline_mode<synchronous>, transform_indices = @transform_2, window_bounds = array<i64: 1, 8>}, {transform_indices = @transform_3, window_bounds = array<i64: 1, 256, 8>}, {pipeline_mode = #tpu.pipeline_mode<synchronous>, transform_indices = @transform_4, window_bounds = array<i64: 1, 8>}, {pipeline_mode = #tpu.pipeline_mode<synchronous>, transform_indices = @transform_5, window_bounds = array<i64: 1, 8>}, {transform_indices = @transform_6, window_bounds = array<i64: 1, 256, 8>}]} {
    %c0 = arith.constant 0 : index
    %c0_0 = arith.constant 0 : index
    %c0_1 = arith.constant 0 : index
    %0 = vector.load %arg1[%c0, %c0_0, %c0_1] : memref<1x256x8xf32, #tpu.memory_space<vmem>>, vector<1x256x8xf32>
    %1 = vector.shape_cast %0 : vector<1x256x8xf32> to vector<256x8xf32>
    %c0_2 = arith.constant 0 : index
    %c0_3 = arith.constant 0 : index
    %2 = vector.load %arg2[%c0_2, %c0_3] : memref<1x8xf32, #tpu.memory_space<vmem>>, vector<1x8xf32>
    %3 = vector.broadcast %2 : vector<1x8xf32> to vector<256x8xf32>
    %4 = arith.mulf %1, %3 : vector<256x8xf32>
    %c0_4 = arith.constant 0 : index
    %c0_5 = arith.constant 0 : index
    %5 = vector.load %arg3[%c0_4, %c0_5] : memref<1x8xf32, #tpu.memory_space<vmem>>, vector<1x8xf32>
    %6 = vector.broadcast %5 : vector<1x8xf32> to vector<256x8xf32>
    %7 = arith.addf %4, %6 : vector<256x8xf32>
    %c0_6 = arith.constant 0 : index
    %c0_7 = arith.constant 0 : index
    %c0_8 = arith.constant 0 : index
    %8 = vector.load %arg4[%c0_6, %c0_7, %c0_8] : memref<1x256x8xf32, #tpu.memory_space<vmem>>, vector<1x256x8xf32>
    %9 = vector.shape_cast %8 : vector<1x256x8xf32> to vector<256x8xf32>
    %c0_9 = arith.constant 0 : index
    %c0_10 = arith.constant 0 : index
    %10 = vector.load %arg5[%c0_9, %c0_10] : memref<1x8xf32, #tpu.memory_space<vmem>>, vector<1x8xf32>
    %11 = vector.broadcast %10 : vector<1x8xf32> to vector<256x8xf32>
    %12 = arith.mulf %9, %11 : vector<256x8xf32>
    %c0_11 = arith.constant 0 : index
    %c0_12 = arith.constant 0 : index
    %13 = vector.load %arg6[%c0_11, %c0_12] : memref<1x8xf32, #tpu.memory_space<vmem>>, vector<1x8xf32>
    %14 = vector.broadcast %13 : vector<1x8xf32> to vector<256x8xf32>
    %15 = arith.addf %12, %14 : vector<256x8xf32>
    %16 = arith.addf %7, %15 : vector<256x8xf32>
    %cst = arith.constant 0.000000e+00 : f32
    %17 = vector.broadcast %cst : f32 to vector<256x8xf32>
    %18 = arith.maximumf %16, %17 : vector<256x8xf32>
    %19 = vector.shape_cast %18 : vector<256x8xf32> to vector<1x256x8xf32>
    %c0_13 = arith.constant 0 : index
    %c0_14 = arith.constant 0 : index
    %c0_15 = arith.constant 0 : index
    %20 = vector.load %arg7[%c0_13, %c0_14, %c0_15] : memref<1x256x8xf32, #tpu.memory_space<vmem>>, vector<1x256x8xf32>
    tpu.vector_store %arg7[%c0_13, %c0_14, %c0_15], %19 {strides = array<i32>} : memref<1x256x8xf32, #tpu.memory_space<vmem>>, vector<1x256x8xf32>,
    return
  }
  func.func @transform_0(%arg0: i32) -> (i32, i32, i32) {
    %c0_i32 = arith.constant 0 : i32
    %c0_i32_0 = arith.constant 0 : i32
    %c0_i32_1 = arith.constant 0 : i32
    return %arg0, %c0_i32, %c0_i32_0 : i32, i32, i32
  }
  func.func @transform_1(%arg0: i32) -> (i32, i32) {
    %c0_i32 = arith.constant 0 : i32
    %c0_i32_0 = arith.constant 0 : i32
    %c0_i32_1 = arith.constant 0 : i32
    return %c0_i32, %c0_i32_0 : i32, i32
  }
  func.func @transform_2(%arg0: i32) -> (i32, i32) {
    %c0_i32 = arith.constant 0 : i32
    %c0_i32_0 = arith.constant 0 : i32
    %c0_i32_1 = arith.constant 0 : i32
    return %c0_i32, %c0_i32_0 : i32, i32
  }
  func.func @transform_3(%arg0: i32) -> (i32, i32, i32) {
    %c0_i32 = arith.constant 0 : i32
    %c0_i32_0 = arith.constant 0 : i32
    %c0_i32_1 = arith.constant 0 : i32
    return %arg0, %c0_i32, %c0_i32_0 : i32, i32, i32
  }
  func.func @transform_4(%arg0: i32) -> (i32, i32) {
    %c0_i32 = arith.constant 0 : i32
    %c0_i32_0 = arith.constant 0 : i32
    %c0_i32_1 = arith.constant 0 : i32
    return %c0_i32, %c0_i32_0 : i32, i32
  }
  func.func @transform_5(%arg0: i32) -> (i32, i32) {
    %c0_i32 = arith.constant 0 : i32
    %c0_i32_0 = arith.constant 0 : i32
    %c0_i32_1 = arith.constant 0 : i32
    return %c0_i32, %c0_i32_0 : i32, i32
  }
  func.func @transform_6(%arg0: i32) -> (i32, i32, i32) {
    %c0_i32 = arith.constant 0 : i32
    %c0_i32_0 = arith.constant 0 : i32
    %c0_i32_1 = arith.constant 0 : i32
    return %arg0, %c0_i32, %c0_i32_0 : i32, i32, i32
  }
}

</mosaic_0001>

<llo_original>
// kernel: residual_block.5
$region0: #{residual_block.5}
  #allocation0 [shape = 'u32[]', space=smem, size = 0x4, offset = 0x4, fixed_abs, tag = 'smem constant byte address 0x4 - core index']
  #allocation1 [shape = 'u32[144,128]{1,0:T(1,128)}', space=vmem, size = 0x12000, scoped, tag = 'internal scratch']
  %s0 = inlined_call_operand.vmem [shape: f32[2,256,8], index: 0, kind: input, shape index: {}]
  %s1 = inlined_call_operand.vmem [shape: f32[1,8], index: 1, kind: input, shape index: {}]
  %s2 = inlined_call_operand.vmem [shape: f32[1,8], index: 2, kind: input, shape index: {}]
  %s3 = inlined_call_operand.vmem [shape: f32[2,256,8], index: 3, kind: input, shape index: {}]
  %s4 = inlined_call_operand.vmem [shape: f32[1,8], index: 4, kind: input, shape index: {}]
  %s5 = inlined_call_operand.vmem [shape: f32[1,8], index: 5, kind: input, shape index: {}]
  %s6 = inlined_call_operand.vmem [shape: f32[2,256,8], index: 6, kind: output, shape index: {}]
  %s7 = sld [smem:[#allocation0]]
  $region57: #{residual_block.5} parent=0
    _
  %s9 = ssub.s32 1, %s7
  %s10 = scalar_select 0, %s9, %s7
  loop: start=0, step=1, limit=4
  $region2: #{residual_block.5} parent=0 // loop_pre_header
    _
  $region3: #{residual_block.5} parent=0 // loop_header
    %s12 = sphi 0, %s16
    %p13 = scmp.ge.s32.totalorder %s12, 4
    %s22 = sphi 0, %s24
    %s25 = sphi 0, %s22
    %s26 = sphi 0, %s25
    %s42 = sphi 0, %s26
    %s46 = sphi 0, %s46
    %s48 = sphi 0, %s46
    %s49 = sphi 0, %s48
    %s63 = sphi 0, %s49
    %s67 = sphi 0, %s67
    %s69 = sphi 0, %s67
    %s70 = sphi 0, %s69
    %s84 = sphi 0, %s70
    %s90 = sphi 0, %s92
    %s93 = sphi 0, %s90
    %s94 = sphi 0, %s93
    %s110 = sphi 0, %s94
    %s114 = sphi 0, %s114
    %s116 = sphi 0, %s114
    %s117 = sphi 0, %s116
    %s131 = sphi 0, %s117
    %s135 = sphi 0, %s135
    %s137 = sphi 0, %s135
    %s138 = sphi 0, %s137
    %s152 = sphi 0, %s138
    %s158 = sphi 0, %s160
    %s161 = sphi 0, %s158
    %s162 = sphi 0, %s161
    %s178 = sphi 0, %s162
  $region4: #{residual_block.5} parent=0 // loop_header_branch
    %15 = sbr.rel (%p13) target = $region8
  $region5: #{residual_block.5} parent=0 // loop_body
    %s17 = ssub.s32 %s12, 1
    %s18 = ssub.s32 %s12, 2
    %s19 = sadd.s32 %s12, 1
    %s20 = ssub.s32 %s12, %s19
    %p21 = scmp.eq.s32.totalorder %s20, 0
    %s23 = sadd.s32 %s22, 1
    %s24 = scalar_select %p21, %s22, %s23
    %p27 = pneg %p21
    %p28 = scmp.eq.s32.totalorder %s12, 1
    %p29 = por %p27, %p28
    %p30 = scmp.ne.s32.totalorder %s22, %s25
    %p31 = scmp.eq.s32.totalorder %s12, 0
    %p32 = por %p30, %p31
    %p33 = scmp.ne.s32.totalorder %s22, %s25
    %p34 = scmp.eq.s32.totalorder %s17, 1
    %p35 = por %p33, %p34
    %p36 = scmp.ne.s32.totalorder %s25, %s26
    %p37 = scmp.eq.s32.totalorder %s17, 0
    %p38 = por %p36, %p37
    %p39 = scmp.ne.s32.totalorder %s25, %s26
    %p40 = scmp.eq.s32.totalorder %s18, 1
    %p41 = por %p39, %p40
    %p43 = scmp.ne.s32.totalorder %s26, %s42
    %p44 = scmp.eq.s32.totalorder %s18, 0
    %p45 = por %p43, %p44
    %s47 = sadd.s32 %s46, 1
    %p50 = scmp.eq.s32.totalorder %s12, 1
    %p51 = scmp.ne.s32.totalorder %s46, %s48
    %p52 = scmp.eq.s32.totalorder %s12, 0
    %p53 = por %p51, %p52
    %p54 = scmp.ne.s32.totalorder %s46, %s48
    %p55 = scmp.eq.s32.totalorder %s17, 1
    %p56 = por %p54, %p55
    %p57 = scmp.ne.s32.totalorder %s48, %s49
    %p58 = scmp.eq.s32.totalorder %s17, 0
    %p59 = por %p57, %p58
    %p60 = scmp.ne.s32.totalorder %s48, %s49
    %p61 = scmp.eq.s32.totalorder %s18, 1
    %p62 = por %p60, %p61
    %p64 = scmp.ne.s32.totalorder %s49, %s63
    %p65 = scmp.eq.s32.totalorder %s18, 0
    %p66 = por %p64, %p65
    %s68 = sadd.s32 %s67, 1
    %p71 = scmp.eq.s32.totalorder %s12, 1
    %p72 = scmp.ne.s32.totalorder %s67, %s69
    %p73 = scmp.eq.s32.totalorder %s12, 0
    %p74 = por %p72, %p73
    %p75 = scmp.ne.s32.totalorder %s67, %s69
    %p76 = scmp.eq.s32.totalorder %s17, 1
    %p77 = por %p75, %p76
    %p78 = scmp.ne.s32.totalorder %s69, %s70
    %p79 = scmp.eq.s32.totalorder %s17, 0
    %p80 = por %p78, %p79
    %p81 = scmp.ne.s32.totalorder %s69, %s70
    %p82 = scmp.eq.s32.totalorder %s18, 1
    %p83 = por %p81, %p82
    %p85 = scmp.ne.s32.totalorder %s70, %s84
    %p86 = scmp.eq.s32.totalorder %s18, 0
    %p87 = por %p85, %p86
    %s88 = ssub.s32 %s12, %s19
    %p89 = scmp.eq.s32.totalorder %s88, 0
    %s91 = sadd.s32 %s90, 1
    %s92 = scalar_select %p89, %s90, %s91
    %p95 = pneg %p89
    %p96 = scmp.eq.s32.totalorder %s12, 1
    %p97 = por %p95, %p96
    %p98 = scmp.ne.s32.totalorder %s90, %s93
    %p99 = scmp.eq.s32.totalorder %s12, 0
    %p100 = por %p98, %p99
    %p101 = scmp.ne.s32.totalorder %s90, %s93
    %p102 = scmp.eq.s32.totalorder %s17, 1
    %p103 = por %p101, %p102
    %p104 = scmp.ne.s32.totalorder %s93, %s94
    %p105 = scmp.eq.s32.totalorder %s17, 0
    %p106 = por %p104, %p105
    %p107 = scmp.ne.s32.totalorder %s93, %s94
    %p108 = scmp.eq.s32.totalorder %s18, 1
    %p109 = por %p107, %p108
    %p111 = scmp.ne.s32.totalorder %s94, %s110
    %p112 = scmp.eq.s32.totalorder %s18, 0
    %p113 = por %p111, %p112
    %s115 = sadd.s32 %s114, 1
    %p118 = scmp.eq.s32.totalorder %s12, 1
    %p119 = scmp.ne.s32.totalorder %s114, %s116
    %p120 = scmp.eq.s32.totalorder %s12, 0
    %p121 = por %p119, %p120
    %p122 = scmp.ne.s32.totalorder %s114, %s116
    %p123 = scmp.eq.s32.totalorder %s17, 1
    %p124 = por %p122, %p123
    %p125 = scmp.ne.s32.totalorder %s116, %s117
    %p126 = scmp.eq.s32.totalorder %s17, 0
    %p127 = por %p125, %p126
    %p128 = scmp.ne.s32.totalorder %s116, %s117
    %p129 = scmp.eq.s32.totalorder %s18, 1
    %p130 = por %p128, %p129
    %p132 = scmp.ne.s32.totalorder %s117, %s131
    %p133 = scmp.eq.s32.totalorder %s18, 0
    %p134 = por %p132, %p133
    %s136 = sadd.s32 %s135, 1
    %p139 = scmp.eq.s32.totalorder %s12, 1
    %p140 = scmp.ne.s32.totalorder %s135, %s137
    %p141 = scmp.eq.s32.totalorder %s12, 0
    %p142 = por %p140, %p141
    %p143 = scmp.ne.s32.totalorder %s135, %s137
    %p144 = scmp.eq.s32.totalorder %s17, 1
    %p145 = por %p143, %p144
    %p146 = scmp.ne.s32.totalorder %s137, %s138
    %p147 = scmp.eq.s32.totalorder %s17, 0
    %p148 = por %p146, %p147
    %p149 = scmp.ne.s32.totalorder %s137, %s138
    %p150 = scmp.eq.s32.totalorder %s18, 1
    %p151 = por %p149, %p150
    %p153 = scmp.ne.s32.totalorder %s138, %s152
    %p154 = scmp.eq.s32.totalorder %s18, 0
    %p155 = por %p153, %p154
    %s156 = ssub.s32 %s12, %s19
    %p157 = scmp.eq.s32.totalorder %s156, 0
    %s159 = sadd.s32 %s158, 1
    %s160 = scalar_select %p157, %s158, %s159
    %p163 = pneg %p157
    %p164 = scmp.eq.s32.totalorder %s12, 1
    %p165 = por %p163, %p164
    %p166 = scmp.ne.s32.totalorder %s158, %s161
    %p167 = scmp.eq.s32.totalorder %s12, 0
    %p168 = por %p166, %p167
    %p169 = scmp.ne.s32.totalorder %s158, %s161
    %p170 = scmp.eq.s32.totalorder %s17, 1
    %p171 = por %p169, %p170
    %p172 = scmp.ne.s32.totalorder %s161, %s162
    %p173 = scmp.eq.s32.totalorder %s17, 0
    %p174 = por %p172, %p173
    %p175 = scmp.ne.s32.totalorder %s161, %s162
    %p176 = scmp.eq.s32.totalorder %s18, 1
    %p177 = por %p175, %p176
    %p179 = scmp.ne.s32.totalorder %s162, %s178
    %p180 = scmp.eq.s32.totalorder %s18, 0
    %p181 = por %p179, %p180
    %p182 = scmp.le.s32.totalorder 1, %s12
    %p183 = scmp.lt.s32.totalorder %s12, 3
    %p184 = pnand %p182, %p183
    %p185 = pneg %p184
    // Predicated region
    $region9: #{residual_block.5} parent=5 // pred_check
      _
    $region10: #{residual_block.5} parent=5 // pred_check_branch
      %187 = sbr.rel (%p184) target = $region12
    $region11: #{residual_block.5} parent=5 // pred_region
      %s188 = ssub.s32 %s12, 1
      // Predicated region
      $region13: #{residual_block.5} parent=11 // pred_check
        %p189 = pneg %p59
      $region14: #{residual_block.5} parent=11 // pred_check_branch
        %191 = sbr.rel (%p189) target = $region16
      $region15: #{residual_block.5} parent=11 // pred_region
        _
      $region16: #{residual_block.5} parent=11 // pred_fallthru
        _
      // Predicated region
      $region17: #{residual_block.5} parent=11 // pred_check
        %p192 = pneg %p80
      $region18: #{residual_block.5} parent=11 // pred_check_branch
        %194 = sbr.rel (%p192) target = $region20
      $region19: #{residual_block.5} parent=11 // pred_region
        _
      $region20: #{residual_block.5} parent=11 // pred_fallthru
        _
      // Predicated region
      $region21: #{residual_block.5} parent=11 // pred_check
        %p195 = pneg %p127
      $region22: #{residual_block.5} parent=11 // pred_check_branch
        %197 = sbr.rel (%p195) target = $region24
      $region23: #{residual_block.5} parent=11 // pred_region
        _
      $region24: #{residual_block.5} parent=11 // pred_fallthru
        _
      // Predicated region
      $region25: #{residual_block.5} parent=11 // pred_check
        %p198 = pneg %p148
      $region26: #{residual_block.5} parent=11 // pred_check_branch
        %200 = sbr.rel (%p198) target = $region28
      $region27: #{residual_block.5} parent=11 // pred_region
        _
      $region28: #{residual_block.5} parent=11 // pred_fallthru
        _
    $region12: #{residual_block.5} parent=5 // pred_fallthru
      _
    %p201 = scmp.lt.s32.totalorder %s12, 2
    // Predicated region
    $region29: #{residual_block.5} parent=5 // pred_check
      %p202 = pneg %p201
    $region30: #{residual_block.5} parent=5 // pred_check_branch
      %204 = sbr.rel (%p202) target = $region32
    $region31: #{residual_block.5} parent=5 // pred_region
      // Predicated region
      $region33: #{residual_block.5} parent=31 // pred_check
        %p205 = pneg %p32
      $region34: #{residual_block.5} parent=31 // pred_check_branch
        %207 = sbr.rel (%p205) target = $region36
      $region35: #{residual_block.5} parent=31 // pred_region
        %p208 = scmp.lt.s32.totalorder %s12, 1
        %s209 = scalar_select %p208, %s12, 1
        %s210 = smul.addr %s209, 32
        %s211 = smul.addr %s210, 8
        %s212 = scalar_lea.vmem %s0, %s211
      $region36: #{residual_block.5} parent=31 // pred_fallthru
        _
      // Predicated region
      $region37: #{residual_block.5} parent=31 // pred_check
        %p213 = pneg %p100
      $region38: #{residual_block.5} parent=31 // pred_check_branch
        %215 = sbr.rel (%p213) target = $region40
      $region39: #{residual_block.5} parent=31 // pred_region
        %p216 = scmp.lt.s32.totalorder %s12, 1
        %s217 = scalar_select %p216, %s12, 1
        %s218 = smul.addr %s217, 32
        %s219 = smul.addr %s218, 8
        %s220 = scalar_lea.vmem %s3, %s219
      $region40: #{residual_block.5} parent=31 // pred_fallthru
        _
    $region32: #{residual_block.5} parent=5 // pred_fallthru
      _
    %p221 = scmp.le.s32.totalorder 1, %s12
    %p222 = scmp.lt.s32.totalorder %s12, 3
    %p223 = pnand %p221, %p222
    %p224 = pneg %p223
    // Predicated region
    $region41: #{residual_block.5} parent=5 // pred_check
      _
    $region42: #{residual_block.5} parent=5 // pred_check_branch
      %226 = sbr.rel (%p223) target = $region44
    $region43: #{residual_block.5} parent=5 // pred_region
      %s227 = ssub.s32 %s12, 1
      %p228 = scmp.lt.s32.totalorder %s17, 1
      %s229 = scalar_select %p228, %s17, 1
      %s230 = smul.addr %s229, 32
      %s231 = smul.addr %s230, 8
      %s232 = scalar_lea.vmem %s0, %s231
      %p233 = pneg %p38
      %p234 = pneg %p35
      %p235 = pneg %p59
      %p236 = pneg %p56
      %p237 = pneg %p80
      %p238 = pneg %p77
      %p239 = scmp.lt.s32.totalorder %s17, 1
      %s240 = scalar_select %p239, %s17, 1
      %s241 = smul.addr %s240, 32
      %s242 = smul.addr %s241, 8
      %s243 = scalar_lea.vmem %s3, %s242
      %p244 = pneg %p106
      %p245 = pneg %p103
      %p246 = pneg %p127
      %p247 = pneg %p124
      %p248 = pneg %p148
      %p249 = pneg %p145
      %p250 = pneg %p174
      %p251 = pneg %p171
      %p252 = scmp.lt.s32.totalorder %s17, 1
      %s253 = scalar_select %p252, %s17, 1
      %s254 = smul.addr %s253, 32
      %s255 = smul.addr %s254, 8
      %s256 = scalar_lea.vmem %s6, %s255
      %p257 = scmp.lt.s32.totalorder %s17, 1
      %s258 = scalar_select %p257, %s17, 1
      %s259 = smul.addr %s258, 32
      %s260 = smul.addr %s259, 8
      %s261 = scalar_lea.vmem %s0, %s260
      %p262 = scmp.lt.s32.totalorder %s17, 1
      %s263 = scalar_select %p262, %s17, 1
      %s264 = smul.addr %s263, 32
      %s265 = smul.addr %s264, 8
      %s266 = scalar_lea.vmem %s3, %s265
      %p267 = scmp.lt.s32.totalorder %s17, 1
      %s268 = scalar_select %p267, %s17, 1
      %s269 = smul.addr %s268, 32
      %s270 = smul.addr %s269, 8
      %s271 = scalar_lea.vmem %s6, %s270
      %v272 = vld [vmem:[%s261] sm:$0xff]
      %v273 = vld [vmem:[%s261 + $0x8] sm:$0xff]
      %v274 = vld [vmem:[%s261 + $0x10] sm:$0xff]
      %v275 = vld [vmem:[%s261 + $0x18] sm:$0xff]
      %v276 = vld [vmem:[%s261 + $0x20] sm:$0xff]
      %v277 = vld [vmem:[%s261 + $0x28] sm:$0xff]
      %v278 = vld [vmem:[%s261 + $0x30] sm:$0xff]
      %v279 = vld [vmem:[%s261 + $0x38] sm:$0xff]
      %v280 = vld [vmem:[%s261 + $0x40] sm:$0xff]
      %v281 = vld [vmem:[%s261 + $0x48] sm:$0xff]
      %v282 = vld [vmem:[%s261 + $0x50] sm:$0xff]
      %v283 = vld [vmem:[%s261 + $0x58] sm:$0xff]
      %v284 = vld [vmem:[%s261 + $0x60] sm:$0xff]
      %v285 = vld [vmem:[%s261 + $0x68] sm:$0xff]
      %v286 = vld [vmem:[%s261 + $0x70] sm:$0xff]
      %v287 = vld [vmem:[%s261 + $0x78] sm:$0xff]
      %v288 = vld [vmem:[%s261 + $0x80] sm:$0xff]
      %v289 = vld [vmem:[%s261 + $0x88] sm:$0xff]
      %v290 = vld [vmem:[%s261 + $0x90] sm:$0xff]
      %v291 = vld [vmem:[%s261 + $0x98] sm:$0xff]
      %v292 = vld [vmem:[%s261 + $0xa0] sm:$0xff]
      %v293 = vld [vmem:[%s261 + $0xa8] sm:$0xff]
      %v294 = vld [vmem:[%s261 + $0xb0] sm:$0xff]
      %v295 = vld [vmem:[%s261 + $0xb8] sm:$0xff]
      %v296 = vld [vmem:[%s261 + $0xc0] sm:$0xff]
      %v297 = vld [vmem:[%s261 + $0xc8] sm:$0xff]
      %v298 = vld [vmem:[%s261 + $0xd0] sm:$0xff]
      %v299 = vld [vmem:[%s261 + $0xd8] sm:$0xff]
      %v300 = vld [vmem:[%s261 + $0xe0] sm:$0xff]
      %v301 = vld [vmem:[%s261 + $0xe8] sm:$0xff]
      %v302 = vld [vmem:[%s261 + $0xf0] sm:$0xff]
      %v303 = vld [vmem:[%s261 + $0xf8] sm:$0xff]
      %v304 = vld [vmem:[%s1] sm:$0x1]
      %v306 = vlaneseq
      %v307 = vshrl.u32 %v306, 7
      %v308 = vsub.s32 0, %v307
      %v309 = vrot.slane %v304, %v308
      %v311 = vmul.f32 %v272, %v309
      %v312 = vmul.f32 %v273, %v309
      %v313 = vmul.f32 %v274, %v309
      %v314 = vmul.f32 %v275, %v309
      %v315 = vmul.f32 %v276, %v309
      %v316 = vmul.f32 %v277, %v309
      %v317 = vmul.f32 %v278, %v309
      %v318 = vmul.f32 %v279, %v309
      %v319 = vmul.f32 %v280, %v309
      %v320 = vmul.f32 %v281, %v309
      %v321 = vmul.f32 %v282, %v309
      %v322 = vmul.f32 %v283, %v309
      %v323 = vmul.f32 %v284, %v309
      %v324 = vmul.f32 %v285, %v309
      %v325 = vmul.f32 %v286, %v309
      %v326 = vmul.f32 %v287, %v309
      %v327 = vmul.f32 %v288, %v309
      %v328 = vmul.f32 %v289, %v309
      %v329 = vmul.f32 %v290, %v309
      %v330 = vmul.f32 %v291, %v309
      %v331 = vmul.f32 %v292, %v309
      %v332 = vmul.f32 %v293, %v309
      %v333 = vmul.f32 %v294, %v309
      %v334 = vmul.f32 %v295, %v309
      %v335 = vmul.f32 %v296, %v309
      %v336 = vmul.f32 %v297, %v309
      %v337 = vmul.f32 %v298, %v309
      %v338 = vmul.f32 %v299, %v309
      %v339 = vmul.f32 %v300, %v309
      %v340 = vmul.f32 %v301, %v309
      %v341 = vmul.f32 %v302, %v309
      %v342 = vmul.f32 %v303, %v309
      %v343 = vld [vmem:[%s2] sm:$0x1]
      %v345 = vlaneseq
      %v346 = vshrl.u32 %v345, 7
      %v347 = vsub.s32 0, %v346
      %v348 = vrot.slane %v343, %v347
      %v350 = vadd.f32 %v311, %v348
      %v351 = vadd.f32 %v312, %v348
      %v352 = vadd.f32 %v313, %v348
      %v353 = vadd.f32 %v314, %v348
      %v354 = vadd.f32 %v315, %v348
      %v355 = vadd.f32 %v316, %v348
      %v356 = vadd.f32 %v317, %v348
      %v357 = vadd.f32 %v318, %v348
      %v358 = vadd.f32 %v319, %v348
      %v359 = vadd.f32 %v320, %v348
      %v360 = vadd.f32 %v321, %v348
      %v361 = vadd.f32 %v322, %v348
      %v362 = vadd.f32 %v323, %v348
      %v363 = vadd.f32 %v324, %v348
      %v364 = vadd.f32 %v325, %v348
      %v365 = vadd.f32 %v326, %v348
      %v366 = vadd.f32 %v327, %v348
      %v367 = vadd.f32 %v328, %v348
      %v368 = vadd.f32 %v329, %v348
      %v369 = vadd.f32 %v330, %v348
      %v370 = vadd.f32 %v331, %v348
      %v371 = vadd.f32 %v332, %v348
      %v372 = vadd.f32 %v333, %v348
      %v373 = vadd.f32 %v334, %v348
      %v374 = vadd.f32 %v335, %v348
      %v375 = vadd.f32 %v336, %v348
      %v376 = vadd.f32 %v337, %v348
      %v377 = vadd.f32 %v338, %v348
      %v378 = vadd.f32 %v339, %v348
      %v379 = vadd.f32 %v340, %v348
      %v380 = vadd.f32 %v341, %v348
      %v381 = vadd.f32 %v342, %v348
      %v382 = vld [vmem:[%s266] sm:$0xff]
      %v383 = vld [vmem:[%s266 + $0x8] sm:$0xff]
      %v384 = vld [vmem:[%s266 + $0x10] sm:$0xff]
      %v385 = vld [vmem:[%s266 + $0x18] sm:$0xff]
      %v386 = vld [vmem:[%s266 + $0x20] sm:$0xff]
      %v387 = vld [vmem:[%s266 + $0x28] sm:$0xff]
      %v388 = vld [vmem:[%s266 + $0x30] sm:$0xff]
      %v389 = vld [vmem:[%s266 + $0x38] sm:$0xff]
      %v390 = vld [vmem:[%s266 + $0x40] sm:$0xff]
      %v391 = vld [vmem:[%s266 + $0x48] sm:$0xff]
      %v392 = vld [vmem:[%s266 + $0x50] sm:$0xff]
      %v393 = vld [vmem:[%s266 + $0x58] sm:$0xff]
      %v394 = vld [vmem:[%s266 + $0x60] sm:$0xff]
      %v395 = vld [vmem:[%s266 + $0x68] sm:$0xff]
      %v396 = vld [vmem:[%s266 + $0x70] sm:$0xff]
      %v397 = vld [vmem:[%s266 + $0x78] sm:$0xff]
      %v398 = vld [vmem:[%s266 + $0x80] sm:$0xff]
      %v399 = vld [vmem:[%s266 + $0x88] sm:$0xff]
      %v400 = vld [vmem:[%s266 + $0x90] sm:$0xff]
      %v401 = vld [vmem:[%s266 + $0x98] sm:$0xff]
      %v402 = vld [vmem:[%s266 + $0xa0] sm:$0xff]
      %v403 = vld [vmem:[%s266 + $0xa8] sm:$0xff]
      %v404 = vld [vmem:[%s266 + $0xb0] sm:$0xff]
      %v405 = vld [vmem:[%s266 + $0xb8] sm:$0xff]
      %v406 = vld [vmem:[%s266 + $0xc0] sm:$0xff]
      %v407 = vld [vmem:[%s266 + $0xc8] sm:$0xff]
      %v408 = vld [vmem:[%s266 + $0xd0] sm:$0xff]
      %v409 = vld [vmem:[%s266 + $0xd8] sm:$0xff]
      %v410 = vld [vmem:[%s266 + $0xe0] sm:$0xff]
      %v411 = vld [vmem:[%s266 + $0xe8] sm:$0xff]
      %v412 = vld [vmem:[%s266 + $0xf0] sm:$0xff]
      %v413 = vld [vmem:[%s266 + $0xf8] sm:$0xff]
      %v414 = vld [vmem:[%s4] sm:$0x1]
      %v416 = vlaneseq
      %v417 = vshrl.u32 %v416, 7
      %v418 = vsub.s32 0, %v417
      %v419 = vrot.slane %v414, %v418
      %v421 = vmul.f32 %v382, %v419
      %v422 = vmul.f32 %v383, %v419
      %v423 = vmul.f32 %v384, %v419
      %v424 = vmul.f32 %v385, %v419
      %v425 = vmul.f32 %v386, %v419
      %v426 = vmul.f32 %v387, %v419
      %v427 = vmul.f32 %v388, %v419
      %v428 = vmul.f32 %v389, %v419
      %v429 = vmul.f32 %v390, %v419
      %v430 = vmul.f32 %v391, %v419
      %v431 = vmul.f32 %v392, %v419
      %v432 = vmul.f32 %v393, %v419
      %v433 = vmul.f32 %v394, %v419
      %v434 = vmul.f32 %v395, %v419
      %v435 = vmul.f32 %v396, %v419
      %v436 = vmul.f32 %v397, %v419
      %v437 = vmul.f32 %v398, %v419
      %v438 = vmul.f32 %v399, %v419
      %v439 = vmul.f32 %v400, %v419
      %v440 = vmul.f32 %v401, %v419
      %v441 = vmul.f32 %v402, %v419
      %v442 = vmul.f32 %v403, %v419
      %v443 = vmul.f32 %v404, %v419
      %v444 = vmul.f32 %v405, %v419
      %v445 = vmul.f32 %v406, %v419
      %v446 = vmul.f32 %v407, %v419
      %v447 = vmul.f32 %v408, %v419
      %v448 = vmul.f32 %v409, %v419
      %v449 = vmul.f32 %v410, %v419
      %v450 = vmul.f32 %v411, %v419
      %v451 = vmul.f32 %v412, %v419
      %v452 = vmul.f32 %v413, %v419
      %v453 = vld [vmem:[%s5] sm:$0x1]
      %v455 = vlaneseq
      %v456 = vshrl.u32 %v455, 7
      %v457 = vsub.s32 0, %v456
      %v458 = vrot.slane %v453, %v457
      %v460 = vadd.f32 %v421, %v458
      %v461 = vadd.f32 %v422, %v458
      %v462 = vadd.f32 %v423, %v458
      %v463 = vadd.f32 %v424, %v458
      %v464 = vadd.f32 %v425, %v458
      %v465 = vadd.f32 %v426, %v458
      %v466 = vadd.f32 %v427, %v458
      %v467 = vadd.f32 %v428, %v458
      %v468 = vadd.f32 %v429, %v458
      %v469 = vadd.f32 %v430, %v458
      %v470 = vadd.f32 %v431, %v458
      %v471 = vadd.f32 %v432, %v458
      %v472 = vadd.f32 %v433, %v458
      %v473 = vadd.f32 %v434, %v458
      %v474 = vadd.f32 %v435, %v458
      %v475 = vadd.f32 %v436, %v458
      %v476 = vadd.f32 %v437, %v458
      %v477 = vadd.f32 %v438, %v458
      %v478 = vadd.f32 %v439, %v458
      %v479 = vadd.f32 %v440, %v458
      %v480 = vadd.f32 %v441, %v458
      %v481 = vadd.f32 %v442, %v458
      %v482 = vadd.f32 %v443, %v458
      %v483 = vadd.f32 %v444, %v458
      %v484 = vadd.f32 %v445, %v458
      %v485 = vadd.f32 %v446, %v458
      %v486 = vadd.f32 %v447, %v458
      %v487 = vadd.f32 %v448, %v458
      %v488 = vadd.f32 %v449, %v458
      %v489 = vadd.f32 %v450, %v458
      %v490 = vadd.f32 %v451, %v458
      %v491 = vadd.f32 %v452, %v458
      %v492 = vadd.f32 %v350, %v460
      %v493 = vadd.f32 %v351, %v461
      %v494 = vadd.f32 %v352, %v462
      %v495 = vadd.f32 %v353, %v463
      %v496 = vadd.f32 %v354, %v464
      %v497 = vadd.f32 %v355, %v465
      %v498 = vadd.f32 %v356, %v466
      %v499 = vadd.f32 %v357, %v467
      %v500 = vadd.f32 %v358, %v468
      %v501 = vadd.f32 %v359, %v469
      %v502 = vadd.f32 %v360, %v470
      %v503 = vadd.f32 %v361, %v471
      %v504 = vadd.f32 %v362, %v472
      %v505 = vadd.f32 %v363, %v473
      %v506 = vadd.f32 %v364, %v474
      %v507 = vadd.f32 %v365, %v475
      %v508 = vadd.f32 %v366, %v476
      %v509 = vadd.f32 %v367, %v477
      %v510 = vadd.f32 %v368, %v478
      %v511 = vadd.f32 %v369, %v479
      %v512 = vadd.f32 %v370, %v480
      %v513 = vadd.f32 %v371, %v481
      %v514 = vadd.f32 %v372, %v482
      %v515 = vadd.f32 %v373, %v483
      %v516 = vadd.f32 %v374, %v484
      %v517 = vadd.f32 %v375, %v485
      %v518 = vadd.f32 %v376, %v486
      %v519 = vadd.f32 %v377, %v487
      %v520 = vadd.f32 %v378, %v488
      %v521 = vadd.f32 %v379, %v489
      %v522 = vadd.f32 %v380, %v490
      %v523 = vadd.f32 %v381, %v491
      %v524 = vmax.f32 %v492, 0.0
      %v525 = vmax.f32 %v493, 0.0
      %v526 = vmax.f32 %v494, 0.0
      %v527 = vmax.f32 %v495, 0.0
      %v528 = vmax.f32 %v496, 0.0
      %v529 = vmax.f32 %v497, 0.0
      %v530 = vmax.f32 %v498, 0.0
      %v531 = vmax.f32 %v499, 0.0
      %v532 = vmax.f32 %v500, 0.0
      %v533 = vmax.f32 %v501, 0.0
      %v534 = vmax.f32 %v502, 0.0
      %v535 = vmax.f32 %v503, 0.0
      %v536 = vmax.f32 %v504, 0.0
      %v537 = vmax.f32 %v505, 0.0
      %v538 = vmax.f32 %v506, 0.0
      %v539 = vmax.f32 %v507, 0.0
      %v540 = vmax.f32 %v508, 0.0
      %v541 = vmax.f32 %v509, 0.0
      %v542 = vmax.f32 %v510, 0.0
      %v543 = vmax.f32 %v511, 0.0
      %v544 = vmax.f32 %v512, 0.0
      %v545 = vmax.f32 %v513, 0.0
      %v546 = vmax.f32 %v514, 0.0
      %v547 = vmax.f32 %v515, 0.0
      %v548 = vmax.f32 %v516, 0.0
      %v549 = vmax.f32 %v517, 0.0
      %v550 = vmax.f32 %v518, 0.0
      %v551 = vmax.f32 %v519, 0.0
      %v552 = vmax.f32 %v520, 0.0
      %v553 = vmax.f32 %v521, 0.0
      %v554 = vmax.f32 %v522, 0.0
      %v555 = vmax.f32 %v523, 0.0
      %vm556 = vcmask 64512
      %557 = vst.msk [vmem:[%s271] sm:$0xff] %vm556, %v524
      %558 = vst.msk [vmem:[%s271 + $0x8] sm:$0xff] %vm556, %v525
      %559 = vst.msk [vmem:[%s271 + $0x10] sm:$0xff] %vm556, %v526
      %560 = vst.msk [vmem:[%s271 + $0x18] sm:$0xff] %vm556, %v527
      %561 = vst.msk [vmem:[%s271 + $0x20] sm:$0xff] %vm556, %v528
      %562 = vst.msk [vmem:[%s271 + $0x28] sm:$0xff] %vm556, %v529
      %563 = vst.msk [vmem:[%s271 + $0x30] sm:$0xff] %vm556, %v530
      %564 = vst.msk [vmem:[%s271 + $0x38] sm:$0xff] %vm556, %v531
      %565 = vst.msk [vmem:[%s271 + $0x40] sm:$0xff] %vm556, %v532
      %566 = vst.msk [vmem:[%s271 + $0x48] sm:$0xff] %vm556, %v533
      %567 = vst.msk [vmem:[%s271 + $0x50] sm:$0xff] %vm556, %v534
      %568 = vst.msk [vmem:[%s271 + $0x58] sm:$0xff] %vm556, %v535
      %569 = vst.msk [vmem:[%s271 + $0x60] sm:$0xff] %vm556, %v536
      %570 = vst.msk [vmem:[%s271 + $0x68] sm:$0xff] %vm556, %v537
      %571 = vst.msk [vmem:[%s271 + $0x70] sm:$0xff] %vm556, %v538
      %572 = vst.msk [vmem:[%s271 + $0x78] sm:$0xff] %vm556, %v539
      %573 = vst.msk [vmem:[%s271 + $0x80] sm:$0xff] %vm556, %v540
      %574 = vst.msk [vmem:[%s271 + $0x88] sm:$0xff] %vm556, %v541
      %575 = vst.msk [vmem:[%s271 + $0x90] sm:$0xff] %vm556, %v542
      %576 = vst.msk [vmem:[%s271 + $0x98] sm:$0xff] %vm556, %v543
      %577 = vst.msk [vmem:[%s271 + $0xa0] sm:$0xff] %vm556, %v544
      %578 = vst.msk [vmem:[%s271 + $0xa8] sm:$0xff] %vm556, %v545
      %579 = vst.msk [vmem:[%s271 + $0xb0] sm:$0xff] %vm556, %v546
      %580 = vst.msk [vmem:[%s271 + $0xb8] sm:$0xff] %vm556, %v547
      %581 = vst.msk [vmem:[%s271 + $0xc0] sm:$0xff] %vm556, %v548
      %582 = vst.msk [vmem:[%s271 + $0xc8] sm:$0xff] %vm556, %v549
      %583 = vst.msk [vmem:[%s271 + $0xd0] sm:$0xff] %vm556, %v550
      %584 = vst.msk [vmem:[%s271 + $0xd8] sm:$0xff] %vm556, %v551
      %585 = vst.msk [vmem:[%s271 + $0xe0] sm:$0xff] %vm556, %v552
      %586 = vst.msk [vmem:[%s271 + $0xe8] sm:$0xff] %vm556, %v553
      %587 = vst.msk [vmem:[%s271 + $0xf0] sm:$0xff] %vm556, %v554
      %588 = vst.msk [vmem:[%s271 + $0xf8] sm:$0xff] %vm556, %v555
      %p589 = scmp.lt.s32.totalorder %s17, 1
      %s590 = scalar_select %p589, %s17, 1
      %s591 = smul.addr %s590, 32
      %s592 = smul.addr %s591, 8
      %s593 = scalar_lea.vmem %s6, %s592
      // Predicated region
      $region45: #{residual_block.5} parent=43 // pred_check
        %p594 = pneg %p171
      $region46: #{residual_block.5} parent=43 // pred_check_branch
        %596 = sbr.rel (%p594) target = $region48
      $region47: #{residual_block.5} parent=43 // pred_region
        _
      $region48: #{residual_block.5} parent=43 // pred_fallthru
        _
    $region44: #{residual_block.5} parent=5 // pred_fallthru
      _
    %p597 = scmp.le.s32.totalorder 2, %s12
    // Predicated region
    $region49: #{residual_block.5} parent=5 // pred_check
      %p598 = pneg %p597
    $region50: #{residual_block.5} parent=5 // pred_check_branch
      %600 = sbr.rel (%p598) target = $region52
    $region51: #{residual_block.5} parent=5 // pred_region
      %s601 = ssub.s32 %s12, 2
      // Predicated region
      $region53: #{residual_block.5} parent=51 // pred_check
        %p602 = pneg %p177
      $region54: #{residual_block.5} parent=51 // pred_check_branch
        %604 = sbr.rel (%p602) target = $region56
      $region55: #{residual_block.5} parent=51 // pred_region
        %p605 = scmp.lt.s32.totalorder %s18, 1
        %s606 = scalar_select %p605, %s18, 1
        %s607 = smul.addr %s606, 32
        %s608 = smul.addr %s607, 8
        %s609 = scalar_lea.vmem %s6, %s608
      $region56: #{residual_block.5} parent=51 // pred_fallthru
        _
    $region52: #{residual_block.5} parent=5 // pred_fallthru
      _
  $region6: #{residual_block.5} parent=0 // loop_footer
    %s16 = sadd.s32 1, %s12
  $region7: #{residual_block.5} parent=0 // loop_footer_branch
    %11 = sbr.rel target = $region3
  $region8: #{residual_block.5} parent=0 // loop_exit
    _

// kernel: residual_block.4
$region0: #{residual_block.4}
  #allocation0 [shape = 'u32[]', space=smem, size = 0x4, offset = 0x4, fixed_abs, tag = 'smem constant byte address 0x4 - core index']
  #allocation1 [shape = 'u32[144,128]{1,0:T(1,128)}', space=vmem, size = 0x12000, scoped, tag = 'internal scratch']
  #allocation2 [shape = 'f32[1,18,18,8]{3,2,1,0:T(8,128)}', space=vmem, size = 0x36000, scoped, tag = 'scratch operand']
  %s0 = inlined_call_operand.vmem [shape: f32[2,256,8], index: 0, kind: input, shape index: {}]
  %s1 = inlined_call_operand.vmem [shape: f32[1,8], index: 1, kind: input, shape index: {}]
  %s2 = inlined_call_operand.vmem [shape: f32[1,8], index: 2, kind: input, shape index: {}]
  %s3 = inlined_call_operand.vmem [shape: bf16[72,8], index: 3, kind: input, shape index: {}]
  %s4 = inlined_call_operand.vmem [shape: f32[2,256,8], index: 4, kind: output, shape index: {0}]
  %s5 = inlined_call_operand.vmem [shape: f32[2,2,8], index: 5, kind: output, shape index: {1}]
  %6 = xla_tuple %s4, %s5
  %s7 = sld [smem:[#allocation0]]
  $region57: #{residual_block.4} parent=0
    _
  %s9 = ssub.s32 1, %s7
  %s10 = scalar_select 0, %s9, %s7
  loop: start=0, step=1, limit=4
  $region2: #{residual_block.4} parent=0 // loop_pre_header
    _
  $region3: #{residual_block.4} parent=0 // loop_header
    %s12 = sphi 0, %s16
    %p13 = scmp.ge.s32.totalorder %s12, 4
    %s22 = sphi 0, %s24
    %s25 = sphi 0, %s22
    %s26 = sphi 0, %s25
    %s42 = sphi 0, %s26
    %s46 = sphi 0, %s46
    %s48 = sphi 0, %s46
    %s49 = sphi 0, %s48
    %s63 = sphi 0, %s49
    %s67 = sphi 0, %s67
    %s69 = sphi 0, %s67
    %s70 = sphi 0, %s69
    %s84 = sphi 0, %s70
    %s88 = sphi 0, %s88
    %s90 = sphi 0, %s88
    %s91 = sphi 0, %s90
    %s105 = sphi 0, %s91
    %s111 = sphi 0, %s113
    %s114 = sphi 0, %s111
    %s115 = sphi 0, %s114
    %s131 = sphi 0, %s115
    %s137 = sphi 0, %s139
    %s140 = sphi 0, %s137
    %s141 = sphi 0, %s140
    %s157 = sphi 0, %s141
  $region4: #{residual_block.4} parent=0 // loop_header_branch
    %15 = sbr.rel (%p13) target = $region8
  $region5: #{residual_block.4} parent=0 // loop_body
    %s17 = ssub.s32 %s12, 1
    %s18 = ssub.s32 %s12, 2
    %s19 = sadd.s32 %s12, 1
    %s20 = ssub.s32 %s12, %s19
    %p21 = scmp.eq.s32.totalorder %s20, 0
    %s23 = sadd.s32 %s22, 1
    %s24 = scalar_select %p21, %s22, %s23
    %p27 = pneg %p21
    %p28 = scmp.eq.s32.totalorder %s12, 1
    %p29 = por %p27, %p28
    %p30 = scmp.ne.s32.totalorder %s22, %s25
    %p31 = scmp.eq.s32.totalorder %s12, 0
    %p32 = por %p30, %p31
    %p33 = scmp.ne.s32.totalorder %s22, %s25
    %p34 = scmp.eq.s32.totalorder %s17, 1
    %p35 = por %p33, %p34
    %p36 = scmp.ne.s32.totalorder %s25, %s26
    %p37 = scmp.eq.s32.totalorder %s17, 0
    %p38 = por %p36, %p37
    %p39 = scmp.ne.s32.totalorder %s25, %s26
    %p40 = scmp.eq.s32.totalorder %s18, 1
    %p41 = por %p39, %p40
    %p43 = scmp.ne.s32.totalorder %s26, %s42
    %p44 = scmp.eq.s32.totalorder %s18, 0
    %p45 = por %p43, %p44
    %s47 = sadd.s32 %s46, 1
    %p50 = scmp.eq.s32.totalorder %s12, 1
    %p51 = scmp.ne.s32.totalorder %s46, %s48
    %p52 = scmp.eq.s32.totalorder %s12, 0
    %p53 = por %p51, %p52
    %p54 = scmp.ne.s32.totalorder %s46, %s48
    %p55 = scmp.eq.s32.totalorder %s17, 1
    %p56 = por %p54, %p55
    %p57 = scmp.ne.s32.totalorder %s48, %s49
    %p58 = scmp.eq.s32.totalorder %s17, 0
    %p59 = por %p57, %p58
    %p60 = scmp.ne.s32.totalorder %s48, %s49
    %p61 = scmp.eq.s32.totalorder %s18, 1
    %p62 = por %p60, %p61
    %p64 = scmp.ne.s32.totalorder %s49, %s63
    %p65 = scmp.eq.s32.totalorder %s18, 0
    %p66 = por %p64, %p65
    %s68 = sadd.s32 %s67, 1
    %p71 = scmp.eq.s32.totalorder %s12, 1
    %p72 = scmp.ne.s32.totalorder %s67, %s69
    %p73 = scmp.eq.s32.totalorder %s12, 0
    %p74 = por %p72, %p73
    %p75 = scmp.ne.s32.totalorder %s67, %s69
    %p76 = scmp.eq.s32.totalorder %s17, 1
    %p77 = por %p75, %p76
    %p78 = scmp.ne.s32.totalorder %s69, %s70
    %p79 = scmp.eq.s32.totalorder %s17, 0
    %p80 = por %p78, %p79
    %p81 = scmp.ne.s32.totalorder %s69, %s70
    %p82 = scmp.eq.s32.totalorder %s18, 1
    %p83 = por %p81, %p82
    %p85 = scmp.ne.s32.totalorder %s70, %s84
    %p86 = scmp.eq.s32.totalorder %s18, 0
    %p87 = por %p85, %p86
    %s89 = sadd.s32 %s88, 1
    %p92 = scmp.eq.s32.totalorder %s12, 1
    %p93 = scmp.ne.s32.totalorder %s88, %s90
    %p94 = scmp.eq.s32.totalorder %s12, 0
    %p95 = por %p93, %p94
    %p96 = scmp.ne.s32.totalorder %s88, %s90
    %p97 = scmp.eq.s32.totalorder %s17, 1
    %p98 = por %p96, %p97
    %p99 = scmp.ne.s32.totalorder %s90, %s91
    %p100 = scmp.eq.s32.totalorder %s17, 0
    %p101 = por %p99, %p100
    %p102 = scmp.ne.s32.totalorder %s90, %s91
    %p103 = scmp.eq.s32.totalorder %s18, 1
    %p104 = por %p102, %p103
    %p106 = scmp.ne.s32.totalorder %s91, %s105
    %p107 = scmp.eq.s32.totalorder %s18, 0
    %p108 = por %p106, %p107
    %s109 = ssub.s32 %s12, %s19
    %p110 = scmp.eq.s32.totalorder %s109, 0
    %s112 = sadd.s32 %s111, 1
    %s113 = scalar_select %p110, %s111, %s112
    %p116 = pneg %p110
    %p117 = scmp.eq.s32.totalorder %s12, 1
    %p118 = por %p116, %p117
    %p119 = scmp.ne.s32.totalorder %s111, %s114
    %p120 = scmp.eq.s32.totalorder %s12, 0
    %p121 = por %p119, %p120
    %p122 = scmp.ne.s32.totalorder %s111, %s114
    %p123 = scmp.eq.s32.totalorder %s17, 1
    %p124 = por %p122, %p123
    %p125 = scmp.ne.s32.totalorder %s114, %s115
    %p126 = scmp.eq.s32.totalorder %s17, 0
    %p127 = por %p125, %p126
    %p128 = scmp.ne.s32.totalorder %s114, %s115
    %p129 = scmp.eq.s32.totalorder %s18, 1
    %p130 = por %p128, %p129
    %p132 = scmp.ne.s32.totalorder %s115, %s131
    %p133 = scmp.eq.s32.totalorder %s18, 0
    %p134 = por %p132, %p133
    %s135 = ssub.s32 %s12, %s19
    %p136 = scmp.eq.s32.totalorder %s135, 0
    %s138 = sadd.s32 %s137, 1
    %s139 = scalar_select %p136, %s137, %s138
    %p142 = pneg %p136
    %p143 = scmp.eq.s32.totalorder %s12, 1
    %p144 = por %p142, %p143
    %p145 = scmp.ne.s32.totalorder %s137, %s140
    %p146 = scmp.eq.s32.totalorder %s12, 0
    %p147 = por %p145, %p146
    %p148 = scmp.ne.s32.totalorder %s137, %s140
    %p149 = scmp.eq.s32.totalorder %s17, 1
    %p150 = por %p148, %p149
    %p151 = scmp.ne.s32.totalorder %s140, %s141
    %p152 = scmp.eq.s32.totalorder %s17, 0
    %p153 = por %p151, %p152
    %p154 = scmp.ne.s32.totalorder %s140, %s141
    %p155 = scmp.eq.s32.totalorder %s18, 1
    %p156 = por %p154, %p155
    %p158 = scmp.ne.s32.totalorder %s141, %s157
    %p159 = scmp.eq.s32.totalorder %s18, 0
    %p160 = por %p158, %p159
    %p161 = scmp.le.s32.totalorder 1, %s12
    %p162 = scmp.lt.s32.totalorder %s12, 3
    %p163 = pnand %p161, %p162
    %p164 = pneg %p163
    // Predicated region
    $region9: #{residual_block.4} parent=5 // pred_check
      _
    $region10: #{residual_block.4} parent=5 // pred_check_branch
      %166 = sbr.rel (%p163) target = $region12
    $region11: #{residual_block.4} parent=5 // pred_region
      %s167 = ssub.s32 %s12, 1
      // Predicated region
      $region13: #{residual_block.4} parent=11 // pred_check
        %p168 = pneg %p59
      $region14: #{residual_block.4} parent=11 // pred_check_branch
        %170 = sbr.rel (%p168) target = $region16
      $region15: #{residual_block.4} parent=11 // pred_region
        _
      $region16: #{residual_block.4} parent=11 // pred_fallthru
        _
      // Predicated region
      $region17: #{residual_block.4} parent=11 // pred_check
        %p171 = pneg %p80
      $region18: #{residual_block.4} parent=11 // pred_check_branch
        %173 = sbr.rel (%p171) target = $region20
      $region19: #{residual_block.4} parent=11 // pred_region
        _
      $region20: #{residual_block.4} parent=11 // pred_fallthru
        _
      // Predicated region
      $region21: #{residual_block.4} parent=11 // pred_check
        %p174 = pneg %p101
      $region22: #{residual_block.4} parent=11 // pred_check_branch
        %176 = sbr.rel (%p174) target = $region24
      $region23: #{residual_block.4} parent=11 // pred_region
        _
      $region24: #{residual_block.4} parent=11 // pred_fallthru
        _
    $region12: #{residual_block.4} parent=5 // pred_fallthru
      _
    %p177 = scmp.lt.s32.totalorder %s12, 2
    // Predicated region
    $region25: #{residual_block.4} parent=5 // pred_check
      %p178 = pneg %p177
    $region26: #{residual_block.4} parent=5 // pred_check_branch
      %180 = sbr.rel (%p178) target = $region28
    $region27: #{residual_block.4} parent=5 // pred_region
      // Predicated region
      $region29: #{residual_block.4} parent=27 // pred_check
        %p181 = pneg %p32
      $region30: #{residual_block.4} parent=27 // pred_check_branch
        %183 = sbr.rel (%p181) target = $region32
      $region31: #{residual_block.4} parent=27 // pred_region
        %p184 = scmp.lt.s32.totalorder %s12, 1
        %s185 = scalar_select %p184, %s12, 1
        %s186 = smul.addr %s185, 32
        %s187 = smul.addr %s186, 8
        %s188 = scalar_lea.vmem %s0, %s187
      $region32: #{residual_block.4} parent=27 // pred_fallthru
        _
    $region28: #{residual_block.4} parent=5 // pred_fallthru
      _
    %p189 = scmp.le.s32.totalorder 1, %s12
    %p190 = scmp.lt.s32.totalorder %s12, 3
    %p191 = pnand %p189, %p190
    %p192 = pneg %p191
    // Predicated region
    $region33: #{residual_block.4} parent=5 // pred_check
      _
    $region34: #{residual_block.4} parent=5 // pred_check_branch
      %194 = sbr.rel (%p191) target = $region36
    $region35: #{residual_block.4} parent=5 // pred_region
      %s195 = ssub.s32 %s12, 1
      %p196 = scmp.lt.s32.totalorder %s17, 1
      %s197 = scalar_select %p196, %s17, 1
      %s198 = smul.addr %s197, 32
      %s199 = smul.addr %s198, 8
      %s200 = scalar_lea.vmem %s0, %s199
      %p201 = pneg %p38
      %p202 = pneg %p35
      %p203 = pneg %p59
      %p204 = pneg %p56
      %p205 = pneg %p80
      %p206 = pneg %p77
      %p207 = pneg %p101
      %p208 = pneg %p98
      %p209 = pneg %p127
      %p210 = pneg %p124
      %p211 = scmp.lt.s32.totalorder %s17, 1
      %s212 = scalar_select %p211, %s17, 1
      %s213 = smul.addr %s212, 32
      %s214 = smul.addr %s213, 8
      %s215 = scalar_lea.vmem %s4, %s214
      %p216 = pneg %p153
      %p217 = pneg %p150
      %p218 = scmp.lt.s32.totalorder %s17, 1
      %s219 = scalar_select %p218, %s17, 1
      %s220 = smul.addr %s219, 2
      %s221 = scalar_lea.vmem %s5, %s220
      %p222 = scmp.lt.s32.totalorder %s17, 1
      %s223 = scalar_select %p222, %s17, 1
      %s224 = smul.addr %s223, 32
      %s225 = smul.addr %s224, 8
      %s226 = scalar_lea.vmem %s0, %s225
      %p227 = scmp.lt.s32.totalorder %s17, 1
      %s228 = scalar_select %p227, %s17, 1
      %s229 = smul.addr %s228, 32
      %s230 = smul.addr %s229, 8
      %s231 = scalar_lea.vmem %s4, %s230
      %p232 = scmp.lt.s32.totalorder %s17, 1
      %s233 = scalar_select %p232, %s17, 1
      %s234 = smul.addr %s233, 2
      %s235 = scalar_lea.vmem %s5, %s234
      %v237 = vld [vmem:[%s226] sm:$0xff]
      %v238 = vld [vmem:[%s226 + $0x8] sm:$0xff]
      %v239 = vld [vmem:[%s226 + $0x10] sm:$0xff]
      %v240 = vld [vmem:[%s226 + $0x18] sm:$0xff]
      %v241 = vld [vmem:[%s226 + $0x20] sm:$0xff]
      %v242 = vld [vmem:[%s226 + $0x28] sm:$0xff]
      %v243 = vld [vmem:[%s226 + $0x30] sm:$0xff]
      %v244 = vld [vmem:[%s226 + $0x38] sm:$0xff]
      %v245 = vld [vmem:[%s226 + $0x40] sm:$0xff]
      %v246 = vld [vmem:[%s226 + $0x48] sm:$0xff]
      %v247 = vld [vmem:[%s226 + $0x50] sm:$0xff]
      %v248 = vld [vmem:[%s226 + $0x58] sm:$0xff]
      %v249 = vld [vmem:[%s226 + $0x60] sm:$0xff]
      %v250 = vld [vmem:[%s226 + $0x68] sm:$0xff]
      %v251 = vld [vmem:[%s226 + $0x70] sm:$0xff]
      %v252 = vld [vmem:[%s226 + $0x78] sm:$0xff]
      %v253 = vld [vmem:[%s226 + $0x80] sm:$0xff]
      %v254 = vld [vmem:[%s226 + $0x88] sm:$0xff]
      %v255 = vld [vmem:[%s226 + $0x90] sm:$0xff]
      %v256 = vld [vmem:[%s226 + $0x98] sm:$0xff]
      %v257 = vld [vmem:[%s226 + $0xa0] sm:$0xff]
      %v258 = vld [vmem:[%s226 + $0xa8] sm:$0xff]
      %v259 = vld [vmem:[%s226 + $0xb0] sm:$0xff]
      %v260 = vld [vmem:[%s226 + $0xb8] sm:$0xff]
      %v261 = vld [vmem:[%s226 + $0xc0] sm:$0xff]
      %v262 = vld [vmem:[%s226 + $0xc8] sm:$0xff]
      %v263 = vld [vmem:[%s226 + $0xd0] sm:$0xff]
      %v264 = vld [vmem:[%s226 + $0xd8] sm:$0xff]
      %v265 = vld [vmem:[%s226 + $0xe0] sm:$0xff]
      %v266 = vld [vmem:[%s226 + $0xe8] sm:$0xff]
      %v267 = vld [vmem:[%s226 + $0xf0] sm:$0xff]
      %v268 = vld [vmem:[%s226 + $0xf8] sm:$0xff]
      %v269 = vld [vmem:[%s1] sm:$0x1]
      %v271 = vlaneseq
      %v272 = vshrl.u32 %v271, 7
      %v273 = vsub.s32 0, %v272
      %v274 = vrot.slane %v269, %v273
      %v276 = vmul.f32 %v237, %v274
      %v277 = vmul.f32 %v238, %v274
      %v278 = vmul.f32 %v239, %v274
      %v279 = vmul.f32 %v240, %v274
      %v280 = vmul.f32 %v241, %v274
      %v281 = vmul.f32 %v242, %v274
      %v282 = vmul.f32 %v243, %v274
      %v283 = vmul.f32 %v244, %v274
      %v284 = vmul.f32 %v245, %v274
      %v285 = vmul.f32 %v246, %v274
      %v286 = vmul.f32 %v247, %v274
      %v287 = vmul.f32 %v248, %v274
      %v288 = vmul.f32 %v249, %v274
      %v289 = vmul.f32 %v250, %v274
      %v290 = vmul.f32 %v251, %v274
      %v291 = vmul.f32 %v252, %v274
      %v292 = vmul.f32 %v253, %v274
      %v293 = vmul.f32 %v254, %v274
      %v294 = vmul.f32 %v255, %v274
      %v295 = vmul.f32 %v256, %v274
      %v296 = vmul.f32 %v257, %v274
      %v297 = vmul.f32 %v258, %v274
      %v298 = vmul.f32 %v259, %v274
      %v299 = vmul.f32 %v260, %v274
      %v300 = vmul.f32 %v261, %v274
      %v301 = vmul.f32 %v262, %v274
      %v302 = vmul.f32 %v263, %v274
      %v303 = vmul.f32 %v264, %v274
      %v304 = vmul.f32 %v265, %v274
      %v305 = vmul.f32 %v266, %v274
      %v306 = vmul.f32 %v267, %v274
      %v307 = vmul.f32 %v268, %v274
      %v308 = vld [vmem:[%s2] sm:$0x1]
      %v310 = vlaneseq
      %v311 = vshrl.u32 %v310, 7
      %v312 = vsub.s32 0, %v311
      %v313 = vrot.slane %v308, %v312
      %v315 = vadd.f32 %v276, %v313
      %v316 = vadd.f32 %v277, %v313
      %v317 = vadd.f32 %v278, %v313
      %v318 = vadd.f32 %v279, %v313
      %v319 = vadd.f32 %v280, %v313
      %v320 = vadd.f32 %v281, %v313
      %v321 = vadd.f32 %v282, %v313
      %v322 = vadd.f32 %v283, %v313
      %v323 = vadd.f32 %v284, %v313
      %v324 = vadd.f32 %v285, %v313
      %v325 = vadd.f32 %v286, %v313
      %v326 = vadd.f32 %v287, %v313
      %v327 = vadd.f32 %v288, %v313
      %v328 = vadd.f32 %v289, %v313
      %v329 = vadd.f32 %v290, %v313
      %v330 = vadd.f32 %v291, %v313
      %v331 = vadd.f32 %v292, %v313
      %v332 = vadd.f32 %v293, %v313
      %v333 = vadd.f32 %v294, %v313
      %v334 = vadd.f32 %v295, %v313
      %v335 = vadd.f32 %v296, %v313
      %v336 = vadd.f32 %v297, %v313
      %v337 = vadd.f32 %v298, %v313
      %v338 = vadd.f32 %v299, %v313
      %v339 = vadd.f32 %v300, %v313
      %v340 = vadd.f32 %v301, %v313
      %v341 = vadd.f32 %v302, %v313
      %v342 = vadd.f32 %v303, %v313
      %v343 = vadd.f32 %v304, %v313
      %v344 = vadd.f32 %v305, %v313
      %v345 = vadd.f32 %v306, %v313
      %v346 = vadd.f32 %v307, %v313
      %v347 = vmax.f32 %v315, 0.0
      %v348 = vmax.f32 %v316, 0.0
      %v349 = vmax.f32 %v317, 0.0
      %v350 = vmax.f32 %v318, 0.0
      %v351 = vmax.f32 %v319, 0.0
      %v352 = vmax.f32 %v320, 0.0
      %v353 = vmax.f32 %v321, 0.0
      %v354 = vmax.f32 %v322, 0.0
      %v355 = vmax.f32 %v323, 0.0
      %v356 = vmax.f32 %v324, 0.0
      %v357 = vmax.f32 %v325, 0.0
      %v358 = vmax.f32 %v326, 0.0
      %v359 = vmax.f32 %v327, 0.0
      %v360 = vmax.f32 %v328, 0.0
      %v361 = vmax.f32 %v329, 0.0
      %v362 = vmax.f32 %v330, 0.0
      %v363 = vmax.f32 %v331, 0.0
      %v364 = vmax.f32 %v332, 0.0
      %v365 = vmax.f32 %v333, 0.0
      %v366 = vmax.f32 %v334, 0.0
      %v367 = vmax.f32 %v335, 0.0
      %v368 = vmax.f32 %v336, 0.0
      %v369 = vmax.f32 %v337, 0.0
      %v370 = vmax.f32 %v338, 0.0
      %v371 = vmax.f32 %v339, 0.0
      %v372 = vmax.f32 %v340, 0.0
      %v373 = vmax.f32 %v341, 0.0
      %v374 = vmax.f32 %v342, 0.0
      %v375 = vmax.f32 %v343, 0.0
      %v376 = vmax.f32 %v344, 0.0
      %v377 = vmax.f32 %v345, 0.0
      %v378 = vmax.f32 %v346, 0.0
      %vm379 = vcmask 64512
      %380 = vst.msk [vmem:[#allocation2] sm:$0xff] %vm379, 0.0
      %381 = vst.msk [vmem:[#allocation2 + $0x8] sm:$0xff] %vm379, 0.0
      %vm382 = vcmask 58368
      %383 = vst.msk [vmem:[#allocation2 + $0x10] sm:$0x3] %vm382, 0.0
      %s384 = scalar_lea.vmem [#allocation2], 408
      %385 = vst.msk [vmem:[%s384] sm:$0xff] %vm379, 0.0
      %386 = vst.msk [vmem:[%s384 + $0x8] sm:$0xff] %vm379, 0.0
      %387 = vst.msk [vmem:[%s384 + $0x10] sm:$0x3] %vm382, 0.0
      %vm388 = vcmask 57344
      %389 = vst.msk [vmem:[#allocation2] sm:$0x1] %vm388, 0.0
      %390 = vst.msk [vmem:[#allocation2 + $0x18] sm:$0x1] %vm388, 0.0
      %391 = vst.msk [vmem:[#allocation2 + $0x30] sm:$0x1] %vm388, 0.0
      %392 = vst.msk [vmem:[#allocation2 + $0x48] sm:$0x1] %vm388, 0.0
      %393 = vst.msk [vmem:[#allocation2 + $0x60] sm:$0x1] %vm388, 0.0
      %394 = vst.msk [vmem:[#allocation2 + $0x78] sm:$0x1] %vm388, 0.0
      %395 = vst.msk [vmem:[#allocation2 + $0x90] sm:$0x1] %vm388, 0.0
      %396 = vst.msk [vmem:[#allocation2 + $0xa8] sm:$0x1] %vm388, 0.0
      %397 = vst.msk [vmem:[#allocation2 + $0xc0] sm:$0x1] %vm388, 0.0
      %398 = vst.msk [vmem:[#allocation2 + $0xd8] sm:$0x1] %vm388, 0.0
      %399 = vst.msk [vmem:[#allocation2 + $0xf0] sm:$0x1] %vm388, 0.0
      %400 = vst.msk [vmem:[#allocation2 + $0x108] sm:$0x1] %vm388, 0.0
      %401 = vst.msk [vmem:[#allocation2 + $0x120] sm:$0x1] %vm388, 0.0
      %402 = vst.msk [vmem:[#allocation2 + $0x138] sm:$0x1] %vm388, 0.0
      %403 = vst.msk [vmem:[#allocation2 + $0x150] sm:$0x1] %vm388, 0.0
      %404 = vst.msk [vmem:[#allocation2 + $0x168] sm:$0x1] %vm388, 0.0
      %405 = vst.msk [vmem:[#allocation2 + $0x180] sm:$0x1] %vm388, 0.0
      %406 = vst.msk [vmem:[#allocation2 + $0x198] sm:$0x1] %vm388, 0.0
      %407 = vst.msk [vmem:[#allocation2 + $0x11] sm:$0x1] %vm388, 0.0
      %408 = vst.msk [vmem:[#allocation2 + $0x29] sm:$0x1] %vm388, 0.0
      %409 = vst.msk [vmem:[#allocation2 + $0x41] sm:$0x1] %vm388, 0.0
      %410 = vst.msk [vmem:[#allocation2 + $0x59] sm:$0x1] %vm388, 0.0
      %411 = vst.msk [vmem:[#allocation2 + $0x71] sm:$0x1] %vm388, 0.0
      %412 = vst.msk [vmem:[#allocation2 + $0x89] sm:$0x1] %vm388, 0.0
      %413 = vst.msk [vmem:[#allocation2 + $0xa1] sm:$0x1] %vm388, 0.0
      %414 = vst.msk [vmem:[#allocation2 + $0xb9] sm:$0x1] %vm388, 0.0
      %415 = vst.msk [vmem:[#allocation2 + $0xd1] sm:$0x1] %vm388, 0.0
      %416 = vst.msk [vmem:[#allocation2 + $0xe9] sm:$0x1] %vm388, 0.0
      %417 = vst.msk [vmem:[#allocation2 + $0x101] sm:$0x1] %vm388, 0.0
      %418 = vst.msk [vmem:[#allocation2 + $0x119] sm:$0x1] %vm388, 0.0
      %419 = vst.msk [vmem:[#allocation2 + $0x131] sm:$0x1] %vm388, 0.0
      %420 = vst.msk [vmem:[#allocation2 + $0x149] sm:$0x1] %vm388, 0.0
      %421 = vst.msk [vmem:[#allocation2 + $0x161] sm:$0x1] %vm388, 0.0
      %422 = vst.msk [vmem:[#allocation2 + $0x179] sm:$0x1] %vm388, 0.0
      %423 = vst.msk [vmem:[#allocation2 + $0x191] sm:$0x1] %vm388, 0.0
      %424 = vst.msk [vmem:[#allocation2 + $0x1a9] sm:$0x1] %vm388, 0.0
      %s425 = scalar_lea.vmem [#allocation2], 24
      %426 = vst.msk [vmem:[%s425 + $0x1] sm:$0xff] %vm379, %v347
      %427 = vst.msk [vmem:[%s425 + $0x9] sm:$0xff] %vm379, %v348
      %428 = vst.msk [vmem:[%s425 + $0x19] sm:$0xff] %vm379, %v349
      %429 = vst.msk [vmem:[%s425 + $0x21] sm:$0xff] %vm379, %v350
      %430 = vst.msk [vmem:[%s425 + $0x31] sm:$0xff] %vm379, %v351
      %431 = vst.msk [vmem:[%s425 + $0x39] sm:$0xff] %vm379, %v352
      %432 = vst.msk [vmem:[%s425 + $0x49] sm:$0xff] %vm379, %v353
      %433 = vst.msk [vmem:[%s425 + $0x51] sm:$0xff] %vm379, %v354
      %434 = vst.msk [vmem:[%s425 + $0x61] sm:$0xff] %vm379, %v355
      %435 = vst.msk [vmem:[%s425 + $0x69] sm:$0xff] %vm379, %v356
      %436 = vst.msk [vmem:[%s425 + $0x79] sm:$0xff] %vm379, %v357
      %437 = vst.msk [vmem:[%s425 + $0x81] sm:$0xff] %vm379, %v358
      %438 = vst.msk [vmem:[%s425 + $0x91] sm:$0xff] %vm379, %v359
      %439 = vst.msk [vmem:[%s425 + $0x99] sm:$0xff] %vm379, %v360
      %440 = vst.msk [vmem:[%s425 + $0xa9] sm:$0xff] %vm379, %v361
      %441 = vst.msk [vmem:[%s425 + $0xb1] sm:$0xff] %vm379, %v362
      %442 = vst.msk [vmem:[%s425 + $0xc1] sm:$0xff] %vm379, %v363
      %443 = vst.msk [vmem:[%s425 + $0xc9] sm:$0xff] %vm379, %v364
      %444 = vst.msk [vmem:[%s425 + $0xd9] sm:$0xff] %vm379, %v365
      %445 = vst.msk [vmem:[%s425 + $0xe1] sm:$0xff] %vm379, %v366
      %446 = vst.msk [vmem:[%s425 + $0xf1] sm:$0xff] %vm379, %v367
      %447 = vst.msk [vmem:[%s425 + $0xf9] sm:$0xff] %vm379, %v368
      %448 = vst.msk [vmem:[%s425 + $0x109] sm:$0xff] %vm379, %v369
      %449 = vst.msk [vmem:[%s425 + $0x111] sm:$0xff] %vm379, %v370
      %450 = vst.msk [vmem:[%s425 + $0x121] sm:$0xff] %vm379, %v371
      %451 = vst.msk [vmem:[%s425 + $0x129] sm:$0xff] %vm379, %v372
      %452 = vst.msk [vmem:[%s425 + $0x139] sm:$0xff] %vm379, %v373
      %453 = vst.msk [vmem:[%s425 + $0x141] sm:$0xff] %vm379, %v374
      %454 = vst.msk [vmem:[%s425 + $0x151] sm:$0xff] %vm379, %v375
      %455 = vst.msk [vmem:[%s425 + $0x159] sm:$0xff] %vm379, %v376
      %456 = vst.msk [vmem:[%s425 + $0x169] sm:$0xff] %vm379, %v377
      %457 = vst.msk [vmem:[%s425 + $0x171] sm:$0xff] %vm379, %v378
      %v458 = vld [vmem:[#allocation2] sm:$0xff]
      %v459 = vld [vmem:[#allocation2 + $0x8] sm:$0xff]
      %v460 = vld [vmem:[#allocation2 + $0x10] sm:$0x3]
      %v461 = vld [vmem:[#allocation2 + $0x18] sm:$0xff]
      %v462 = vld [vmem:[#allocation2 + $0x20] sm:$0xff]
      %v463 = vld [vmem:[#allocation2 + $0x28] sm:$0x3]
      %v464 = vld [vmem:[#allocation2 + $0x30] sm:$0xff]
      %v465 = vld [vmem:[#allocation2 + $0x38] sm:$0xff]
      %v466 = vld [vmem:[#allocation2 + $0x40] sm:$0x3]
      %v467 = vld [vmem:[#allocation2 + $0x48] sm:$0xff]
      %v468 = vld [vmem:[#allocation2 + $0x50] sm:$0xff]
      %v469 = vld [vmem:[#allocation2 + $0x58] sm:$0x3]
      %v470 = vld [vmem:[#allocation2 + $0x60] sm:$0xff]
      %v471 = vld [vmem:[#allocation2 + $0x68] sm:$0xff]
      %v472 = vld [vmem:[#allocation2 + $0x70] sm:$0x3]
      %v473 = vld [vmem:[#allocation2 + $0x78] sm:$0xff]
      %v474 = vld [vmem:[#allocation2 + $0x80] sm:$0xff]
      %v475 = vld [vmem:[#allocation2 + $0x88] sm:$0x3]
      %v476 = vld [vmem:[#allocation2 + $0x90] sm:$0xff]
      %v477 = vld [vmem:[#allocation2 + $0x98] sm:$0xff]
      %v478 = vld [vmem:[#allocation2 + $0xa0] sm:$0x3]
      %v479 = vld [vmem:[#allocation2 + $0xa8] sm:$0xff]
      %v480 = vld [vmem:[#allocation2 + $0xb0] sm:$0xff]
      %v481 = vld [vmem:[#allocation2 + $0xb8] sm:$0x3]
      %v482 = vld [vmem:[#allocation2 + $0xc0] sm:$0xff]
      %v483 = vld [vmem:[#allocation2 + $0xc8] sm:$0xff]
      %v484 = vld [vmem:[#allocation2 + $0xd0] sm:$0x3]
      %v485 = vld [vmem:[#allocation2 + $0xd8] sm:$0xff]
      %v486 = vld [vmem:[#allocation2 + $0xe0] sm:$0xff]
      %v487 = vld [vmem:[#allocation2 + $0xe8] sm:$0x3]
      %v488 = vld [vmem:[#allocation2 + $0xf0] sm:$0xff]
      %v489 = vld [vmem:[#allocation2 + $0xf8] sm:$0xff]
      %v490 = vld [vmem:[#allocation2 + $0x100] sm:$0x3]
      %v491 = vld [vmem:[#allocation2 + $0x108] sm:$0xff]
      %v492 = vld [vmem:[#allocation2 + $0x110] sm:$0xff]
      %v493 = vld [vmem:[#allocation2 + $0x118] sm:$0x3]
      %v494 = vld [vmem:[#allocation2 + $0x120] sm:$0xff]
      %v495 = vld [vmem:[#allocation2 + $0x128] sm:$0xff]
      %v496 = vld [vmem:[#allocation2 + $0x130] sm:$0x3]
      %v497 = vld [vmem:[#allocation2 + $0x138] sm:$0xff]
      %v498 = vld [vmem:[#allocation2 + $0x140] sm:$0xff]
      %v499 = vld [vmem:[#allocation2 + $0x148] sm:$0x3]
      %v500 = vld [vmem:[#allocation2 + $0x150] sm:$0xff]
      %v501 = vld [vmem:[#allocation2 + $0x158] sm:$0xff]
      %v502 = vld [vmem:[#allocation2 + $0x160] sm:$0x3]
      %v503 = vld [vmem:[#allocation2 + $0x168] sm:$0xff]
      %v504 = vld [vmem:[#allocation2 + $0x170] sm:$0xff]
      %v505 = vld [vmem:[#allocation2 + $0x178] sm:$0x3]
      %v506 = vld [vmem:[#allocation2 + $0x180] sm:$0xff]
      %v507 = vld [vmem:[#allocation2 + $0x188] sm:$0xff]
      %v508 = vld [vmem:[#allocation2 + $0x190] sm:$0x3]
      %v509 = vld [vmem:[#allocation2 + $0x198] sm:$0xff]
      %v510 = vld [vmem:[#allocation2 + $0x1a0] sm:$0xff]
      %v511 = vld [vmem:[#allocation2 + $0x1a8] sm:$0x3]
      %vm560 = vcmask 1046528
      %v561 = vrot.slane %v458, 1
      %v562 = vrot.slane %v459, 1
      %v563 = vsel %vm560, %v561, %v562
      %v564 = vrot.slane %v460, 1
      %v565 = vsel %vm560, %v562, %v564
      %v566 = vrot.slane %v461, 1
      %v567 = vrot.slane %v462, 1
      %v568 = vsel %vm560, %v566, %v567
      %v569 = vrot.slane %v463, 1
      %v570 = vsel %vm560, %v567, %v569
      %v571 = vrot.slane %v464, 1
      %v572 = vrot.slane %v465, 1
      %v573 = vsel %vm560, %v571, %v572
      %v574 = vrot.slane %v466, 1
      %v575 = vsel %vm560, %v572, %v574
      %v576 = vrot.slane %v467, 1
      %v577 = vrot.slane %v468, 1
      %v578 = vsel %vm560, %v576, %v577
      %v579 = vrot.slane %v469, 1
      %v580 = vsel %vm560, %v577, %v579
      %v581 = vrot.slane %v470, 1
      %v582 = vrot.slane %v471, 1
      %v583 = vsel %vm560, %v581, %v582
      %v584 = vrot.slane %v472, 1
      %v585 = vsel %vm560, %v582, %v584
      %v586 = vrot.slane %v473, 1
      %v587 = vrot.slane %v474, 1
      %v588 = vsel %vm560, %v586, %v587
      %v589 = vrot.slane %v475, 1
      %v590 = vsel %vm560, %v587, %v589
      %v591 = vrot.slane %v476, 1
      %v592 = vrot.slane %v477, 1
      %v593 = vsel %vm560, %v591, %v592
      %v594 = vrot.slane %v478, 1
      %v595 = vsel %vm560, %v592, %v594
      %v596 = vrot.slane %v479, 1
      %v597 = vrot.slane %v480, 1
      %v598 = vsel %vm560, %v596, %v597
      %v599 = vrot.slane %v481, 1
      %v600 = vsel %vm560, %v597, %v599
      %v601 = vrot.slane %v482, 1
      %v602 = vrot.slane %v483, 1
      %v603 = vsel %vm560, %v601, %v602
      %v604 = vrot.slane %v484, 1
      %v605 = vsel %vm560, %v602, %v604
      %v606 = vrot.slane %v485, 1
      %v607 = vrot.slane %v486, 1
      %v608 = vsel %vm560, %v606, %v607
      %v609 = vrot.slane %v487, 1
      %v610 = vsel %vm560, %v607, %v609
      %v611 = vrot.slane %v488, 1
      %v612 = vrot.slane %v489, 1
      %v613 = vsel %vm560, %v611, %v612
      %v614 = vrot.slane %v490, 1
      %v615 = vsel %vm560, %v612, %v614
      %v616 = vrot.slane %v491, 1
      %v617 = vrot.slane %v492, 1
      %v618 = vsel %vm560, %v616, %v617
      %v619 = vrot.slane %v493, 1
      %v620 = vsel %vm560, %v617, %v619
      %v621 = vrot.slane %v494, 1
      %v622 = vrot.slane %v495, 1
      %v623 = vsel %vm560, %v621, %v622
      %v624 = vrot.slane %v496, 1
      %v625 = vsel %vm560, %v622, %v624
      %v626 = vrot.slane %v497, 1
      %v627 = vrot.slane %v498, 1
      %v628 = vsel %vm560, %v626, %v627
      %v629 = vrot.slane %v499, 1
      %v630 = vsel %vm560, %v627, %v629
      %v631 = vrot.slane %v500, 1
      %v632 = vrot.slane %v501, 1
      %v633 = vsel %vm560, %v631, %v632
      %v634 = vrot.slane %v502, 1
      %v635 = vsel %vm560, %v632, %v634
      %v636 = vrot.slane %v503, 1
      %v637 = vrot.slane %v504, 1
      %v638 = vsel %vm560, %v636, %v637
      %v639 = vrot.slane %v505, 1
      %v640 = vsel %vm560, %v637, %v639
      %641 = vrot.lane.b32.xlu0 %v563, 8
      %v642 = vpop.permute.xlu0 %641
      %643 = vrot.lane.b32.xlu0 %v565, 8
      %v644 = vpop.permute.xlu0 %643
      %645 = vrot.lane.b32.xlu0 %v568, 8
      %v646 = vpop.permute.xlu0 %645
      %647 = vrot.lane.b32.xlu0 %v570, 8
      %v648 = vpop.permute.xlu0 %647
      %649 = vrot.lane.b32.xlu0 %v573, 8
      %v650 = vpop.permute.xlu0 %649
      %651 = vrot.lane.b32.xlu0 %v575, 8
      %v652 = vpop.permute.xlu0 %651
      %653 = vrot.lane.b32.xlu0 %v578, 8
      %v654 = vpop.permute.xlu0 %653
      %655 = vrot.lane.b32.xlu0 %v580, 8
      %v656 = vpop.permute.xlu0 %655
      %657 = vrot.lane.b32.xlu0 %v583, 8
      %v658 = vpop.permute.xlu0 %657
      %659 = vrot.lane.b32.xlu0 %v585, 8
      %v660 = vpop.permute.xlu0 %659
      %661 = vrot.lane.b32.xlu0 %v588, 8
      %v662 = vpop.permute.xlu0 %661
      %663 = vrot.lane.b32.xlu0 %v590, 8
      %v664 = vpop.permute.xlu0 %663
      %665 = vrot.lane.b32.xlu0 %v593, 8
      %v666 = vpop.permute.xlu0 %665
      %667 = vrot.lane.b32.xlu0 %v595, 8
      %v668 = vpop.permute.xlu0 %667
      %669 = vrot.lane.b32.xlu0 %v598, 8
      %v670 = vpop.permute.xlu0 %669
      %671 = vrot.lane.b32.xlu0 %v600, 8
      %v672 = vpop.permute.xlu0 %671
      %673 = vrot.lane.b32.xlu0 %v603, 8
      %v674 = vpop.permute.xlu0 %673
      %675 = vrot.lane.b32.xlu0 %v605, 8
      %v676 = vpop.permute.xlu0 %675
      %677 = vrot.lane.b32.xlu0 %v608, 8
      %v678 = vpop.permute.xlu0 %677
      %679 = vrot.lane.b32.xlu0 %v610, 8
      %v680 = vpop.permute.xlu0 %679
      %681 = vrot.lane.b32.xlu0 %v613, 8
      %v682 = vpop.permute.xlu0 %681
      %683 = vrot.lane.b32.xlu0 %v615, 8
      %v684 = vpop.permute.xlu0 %683
      %685 = vrot.lane.b32.xlu0 %v618, 8
      %v686 = vpop.permute.xlu0 %685
      %687 = vrot.lane.b32.xlu0 %v620, 8
      %v688 = vpop.permute.xlu0 %687
      %689 = vrot.lane.b32.xlu0 %v623, 8
      %v690 = vpop.permute.xlu0 %689
      %691 = vrot.lane.b32.xlu0 %v625, 8
      %v692 = vpop.permute.xlu0 %691
      %693 = vrot.lane.b32.xlu0 %v628, 8
      %v694 = vpop.permute.xlu0 %693
      %695 = vrot.lane.b32.xlu0 %v630, 8
      %v696 = vpop.permute.xlu0 %695
      %697 = vrot.lane.b32.xlu0 %v633, 8
      %v698 = vpop.permute.xlu0 %697
      %699 = vrot.lane.b32.xlu0 %v635, 8
      %v700 = vpop.permute.xlu0 %699
      %701 = vrot.lane.b32.xlu0 %v638, 8
      %v702 = vpop.permute.xlu0 %701
      %703 = vrot.lane.b32.xlu0 %v640, 8
      %v704 = vpop.permute.xlu0 %703
      %vm737 = vcmask 1045504
      %v738 = vrot.slane %v458, 2
      %v739 = vrot.slane %v459, 2
      %v740 = vsel %vm737, %v738, %v739
      %v741 = vrot.slane %v460, 2
      %v742 = vsel %vm737, %v739, %v741
      %v743 = vrot.slane %v461, 2
      %v744 = vrot.slane %v462, 2
      %v745 = vsel %vm737, %v743, %v744
      %v746 = vrot.slane %v463, 2
      %v747 = vsel %vm737, %v744, %v746
      %v748 = vrot.slane %v464, 2
      %v749 = vrot.slane %v465, 2
      %v750 = vsel %vm737, %v748, %v749
      %v751 = vrot.slane %v466, 2
      %v752 = vsel %vm737, %v749, %v751
      %v753 = vrot.slane %v467, 2
      %v754 = vrot.slane %v468, 2
      %v755 = vsel %vm737, %v753, %v754
      %v756 = vrot.slane %v469, 2
      %v757 = vsel %vm737, %v754, %v756
      %v758 = vrot.slane %v470, 2
      %v759 = vrot.slane %v471, 2
      %v760 = vsel %vm737, %v758, %v759
      %v761 = vrot.slane %v472, 2
      %v762 = vsel %vm737, %v759, %v761
      %v763 = vrot.slane %v473, 2
      %v764 = vrot.slane %v474, 2
      %v765 = vsel %vm737, %v763, %v764
      %v766 = vrot.slane %v475, 2
      %v767 = vsel %vm737, %v764, %v766
      %v768 = vrot.slane %v476, 2
      %v769 = vrot.slane %v477, 2
      %v770 = vsel %vm737, %v768, %v769
      %v771 = vrot.slane %v478, 2
      %v772 = vsel %vm737, %v769, %v771
      %v773 = vrot.slane %v479, 2
      %v774 = vrot.slane %v480, 2
      %v775 = vsel %vm737, %v773, %v774
      %v776 = vrot.slane %v481, 2
      %v777 = vsel %vm737, %v774, %v776
      %v778 = vrot.slane %v482, 2
      %v779 = vrot.slane %v483, 2
      %v780 = vsel %vm737, %v778, %v779
      %v781 = vrot.slane %v484, 2
      %v782 = vsel %vm737, %v779, %v781
      %v783 = vrot.slane %v485, 2
      %v784 = vrot.slane %v486, 2
      %v785 = vsel %vm737, %v783, %v784
      %v786 = vrot.slane %v487, 2
      %v787 = vsel %vm737, %v784, %v786
      %v788 = vrot.slane %v488, 2
      %v789 = vrot.slane %v489, 2
      %v790 = vsel %vm737, %v788, %v789
      %v791 = vrot.slane %v490, 2
      %v792 = vsel %vm737, %v789, %v791
      %v793 = vrot.slane %v491, 2
      %v794 = vrot.slane %v492, 2
      %v795 = vsel %vm737, %v793, %v794
      %v796 = vrot.slane %v493, 2
      %v797 = vsel %vm737, %v794, %v796
      %v798 = vrot.slane %v494, 2
      %v799 = vrot.slane %v495, 2
      %v800 = vsel %vm737, %v798, %v799
      %v801 = vrot.slane %v496, 2
      %v802 = vsel %vm737, %v799, %v801
      %v803 = vrot.slane %v497, 2
      %v804 = vrot.slane %v498, 2
      %v805 = vsel %vm737, %v803, %v804
      %v806 = vrot.slane %v499, 2
      %v807 = vsel %vm737, %v804, %v806
      %v808 = vrot.slane %v500, 2
      %v809 = vrot.slane %v501, 2
      %v810 = vsel %vm737, %v808, %v809
      %v811 = vrot.slane %v502, 2
      %v812 = vsel %vm737, %v809, %v811
      %v813 = vrot.slane %v503, 2
      %v814 = vrot.slane %v504, 2
      %v815 = vsel %vm737, %v813, %v814
      %v816 = vrot.slane %v505, 2
      %v817 = vsel %vm737, %v814, %v816
      %818 = vrot.lane.b32.xlu0 %v740, 16
      %v819 = vpop.permute.xlu0 %818
      %820 = vrot.lane.b32.xlu0 %v742, 16
      %v821 = vpop.permute.xlu0 %820
      %822 = vrot.lane.b32.xlu0 %v745, 16
      %v823 = vpop.permute.xlu0 %822
      %824 = vrot.lane.b32.xlu0 %v747, 16
      %v825 = vpop.permute.xlu0 %824
      %826 = vrot.lane.b32.xlu0 %v750, 16
      %v827 = vpop.permute.xlu0 %826
      %828 = vrot.lane.b32.xlu0 %v752, 16
      %v829 = vpop.permute.xlu0 %828
      %830 = vrot.lane.b32.xlu0 %v755, 16
      %v831 = vpop.permute.xlu0 %830
      %832 = vrot.lane.b32.xlu0 %v757, 16
      %v833 = vpop.permute.xlu0 %832
      %834 = vrot.lane.b32.xlu0 %v760, 16
      %v835 = vpop.permute.xlu0 %834
      %836 = vrot.lane.b32.xlu0 %v762, 16
      %v837 = vpop.permute.xlu0 %836
      %838 = vrot.lane.b32.xlu0 %v765, 16
      %v839 = vpop.permute.xlu0 %838
      %840 = vrot.lane.b32.xlu0 %v767, 16
      %v841 = vpop.permute.xlu0 %840
      %842 = vrot.lane.b32.xlu0 %v770, 16
      %v843 = vpop.permute.xlu0 %842
      %844 = vrot.lane.b32.xlu0 %v772, 16
      %v845 = vpop.permute.xlu0 %844
      %846 = vrot.lane.b32.xlu0 %v775, 16
      %v847 = vpop.permute.xlu0 %846
      %848 = vrot.lane.b32.xlu0 %v777, 16
      %v849 = vpop.permute.xlu0 %848
      %850 = vrot.lane.b32.xlu0 %v780, 16
      %v851 = vpop.permute.xlu0 %850
      %852 = vrot.lane.b32.xlu0 %v782, 16
      %v853 = vpop.permute.xlu0 %852
      %854 = vrot.lane.b32.xlu0 %v785, 16
      %v855 = vpop.permute.xlu0 %854
      %856 = vrot.lane.b32.xlu0 %v787, 16
      %v857 = vpop.permute.xlu0 %856
      %858 = vrot.lane.b32.xlu0 %v790, 16
      %v859 = vpop.permute.xlu0 %858
      %860 = vrot.lane.b32.xlu0 %v792, 16
      %v861 = vpop.permute.xlu0 %860
      %862 = vrot.lane.b32.xlu0 %v795, 16
      %v863 = vpop.permute.xlu0 %862
      %864 = vrot.lane.b32.xlu0 %v797, 16
      %v865 = vpop.permute.xlu0 %864
      %866 = vrot.lane.b32.xlu0 %v800, 16
      %v867 = vpop.permute.xlu0 %866
      %868 = vrot.lane.b32.xlu0 %v802, 16
      %v869 = vpop.permute.xlu0 %868
      %870 = vrot.lane.b32.xlu0 %v805, 16
      %v871 = vpop.permute.xlu0 %870
      %872 = vrot.lane.b32.xlu0 %v807, 16
      %v873 = vpop.permute.xlu0 %872
      %874 = vrot.lane.b32.xlu0 %v810, 16
      %v875 = vpop.permute.xlu0 %874
      %876 = vrot.lane.b32.xlu0 %v812, 16
      %v877 = vpop.permute.xlu0 %876
      %878 = vrot.lane.b32.xlu0 %v815, 16
      %v879 = vpop.permute.xlu0 %878
      %880 = vrot.lane.b32.xlu0 %v817, 16
      %v881 = vpop.permute.xlu0 %880
      %916 = vrot.lane.b32.xlu0 %v461, 24
      %v917 = vpop.permute.xlu0 %916
      %918 = vrot.lane.b32.xlu0 %v462, 24
      %v919 = vpop.permute.xlu0 %918
      %920 = vrot.lane.b32.xlu0 %v464, 24
      %v921 = vpop.permute.xlu0 %920
      %922 = vrot.lane.b32.xlu0 %v465, 24
      %v923 = vpop.permute.xlu0 %922
      %924 = vrot.lane.b32.xlu0 %v467, 24
      %v925 = vpop.permute.xlu0 %924
      %926 = vrot.lane.b32.xlu0 %v468, 24
      %v927 = vpop.permute.xlu0 %926
      %928 = vrot.lane.b32.xlu0 %v470, 24
      %v929 = vpop.permute.xlu0 %928
      %930 = vrot.lane.b32.xlu0 %v471, 24
      %v931 = vpop.permute.xlu0 %930
      %932 = vrot.lane.b32.xlu0 %v473, 24
      %v933 = vpop.permute.xlu0 %932
      %934 = vrot.lane.b32.xlu0 %v474, 24
      %v935 = vpop.permute.xlu0 %934
      %936 = vrot.lane.b32.xlu0 %v476, 24
      %v937 = vpop.permute.xlu0 %936
      %938 = vrot.lane.b32.xlu0 %v477, 24
      %v939 = vpop.permute.xlu0 %938
      %940 = vrot.lane.b32.xlu0 %v479, 24
      %v941 = vpop.permute.xlu0 %940
      %942 = vrot.lane.b32.xlu0 %v480, 24
      %v943 = vpop.permute.xlu0 %942
      %944 = vrot.lane.b32.xlu0 %v482, 24
      %v945 = vpop.permute.xlu0 %944
      %946 = vrot.lane.b32.xlu0 %v483, 24
      %v947 = vpop.permute.xlu0 %946
      %948 = vrot.lane.b32.xlu0 %v485, 24
      %v949 = vpop.permute.xlu0 %948
      %950 = vrot.lane.b32.xlu0 %v486, 24
      %v951 = vpop.permute.xlu0 %950
      %952 = vrot.lane.b32.xlu0 %v488, 24
      %v953 = vpop.permute.xlu0 %952
      %954 = vrot.lane.b32.xlu0 %v489, 24
      %v955 = vpop.permute.xlu0 %954
      %956 = vrot.lane.b32.xlu0 %v491, 24
      %v957 = vpop.permute.xlu0 %956
      %958 = vrot.lane.b32.xlu0 %v492, 24
      %v959 = vpop.permute.xlu0 %958
      %960 = vrot.lane.b32.xlu0 %v494, 24
      %v961 = vpop.permute.xlu0 %960
      %962 = vrot.lane.b32.xlu0 %v495, 24
      %v963 = vpop.permute.xlu0 %962
      %964 = vrot.lane.b32.xlu0 %v497, 24
      %v965 = vpop.permute.xlu0 %964
      %966 = vrot.lane.b32.xlu0 %v498, 24
      %v967 = vpop.permute.xlu0 %966
      %968 = vrot.lane.b32.xlu0 %v500, 24
      %v969 = vpop.permute.xlu0 %968
      %970 = vrot.lane.b32.xlu0 %v501, 24
      %v971 = vpop.permute.xlu0 %970
      %972 = vrot.lane.b32.xlu0 %v503, 24
      %v973 = vpop.permute.xlu0 %972
      %974 = vrot.lane.b32.xlu0 %v504, 24
      %v975 = vpop.permute.xlu0 %974
      %976 = vrot.lane.b32.xlu0 %v506, 24
      %v977 = vpop.permute.xlu0 %976
      %978 = vrot.lane.b32.xlu0 %v507, 24
      %v979 = vpop.permute.xlu0 %978
      %v1013 = vrot.slane %v506, 1
      %v1014 = vrot.slane %v507, 1
      %v1015 = vsel %vm560, %v1013, %v1014
      %v1016 = vrot.slane %v508, 1
      %v1017 = vsel %vm560, %v1014, %v1016
      %1018 = vrot.lane.b32.xlu0 %v568, 32
      %v1019 = vpop.permute.xlu0 %1018
      %1020 = vrot.lane.b32.xlu0 %v570, 32
      %v1021 = vpop.permute.xlu0 %1020
      %1022 = vrot.lane.b32.xlu0 %v573, 32
      %v1023 = vpop.permute.xlu0 %1022
      %1024 = vrot.lane.b32.xlu0 %v575, 32
      %v1025 = vpop.permute.xlu0 %1024
      %1026 = vrot.lane.b32.xlu0 %v578, 32
      %v1027 = vpop.permute.xlu0 %1026
      %1028 = vrot.lane.b32.xlu0 %v580, 32
      %v1029 = vpop.permute.xlu0 %1028
      %1030 = vrot.lane.b32.xlu0 %v583, 32
      %v1031 = vpop.permute.xlu0 %1030
      %1032 = vrot.lane.b32.xlu0 %v585, 32
      %v1033 = vpop.permute.xlu0 %1032
      %1034 = vrot.lane.b32.xlu0 %v588, 32
      %v1035 = vpop.permute.xlu0 %1034
      %1036 = vrot.lane.b32.xlu0 %v590, 32
      %v1037 = vpop.permute.xlu0 %1036
      %1038 = vrot.lane.b32.xlu0 %v593, 32
      %v1039 = vpop.permute.xlu0 %1038
      %1040 = vrot.lane.b32.xlu0 %v595, 32
      %v1041 = vpop.permute.xlu0 %1040
      %1042 = vrot.lane.b32.xlu0 %v598, 32
      %v1043 = vpop.permute.xlu0 %1042
      %1044 = vrot.lane.b32.xlu0 %v600, 32
      %v1045 = vpop.permute.xlu0 %1044
      %1046 = vrot.lane.b32.xlu0 %v603, 32
      %v1047 = vpop.permute.xlu0 %1046
      %1048 = vrot.lane.b32.xlu0 %v605, 32
      %v1049 = vpop.permute.xlu0 %1048
      %1050 = vrot.lane.b32.xlu0 %v608, 32
      %v1051 = vpop.permute.xlu0 %1050
      %1052 = vrot.lane.b32.xlu0 %v610, 32
      %v1053 = vpop.permute.xlu0 %1052
      %1054 = vrot.lane.b32.xlu0 %v613, 32
      %v1055 = vpop.permute.xlu0 %1054
      %1056 = vrot.lane.b32.xlu0 %v615, 32
      %v1057 = vpop.permute.xlu0 %1056
      %1058 = vrot.lane.b32.xlu0 %v618, 32
      %v1059 = vpop.permute.xlu0 %1058
      %1060 = vrot.lane.b32.xlu0 %v620, 32
      %v1061 = vpop.permute.xlu0 %1060
      %1062 = vrot.lane.b32.xlu0 %v623, 32
      %v1063 = vpop.permute.xlu0 %1062
      %1064 = vrot.lane.b32.xlu0 %v625, 32
      %v1065 = vpop.permute.xlu0 %1064
      %1066 = vrot.lane.b32.xlu0 %v628, 32
      %v1067 = vpop.permute.xlu0 %1066
      %1068 = vrot.lane.b32.xlu0 %v630, 32
      %v1069 = vpop.permute.xlu0 %1068
      %1070 = vrot.lane.b32.xlu0 %v633, 32
      %v1071 = vpop.permute.xlu0 %1070
      %1072 = vrot.lane.b32.xlu0 %v635, 32
      %v1073 = vpop.permute.xlu0 %1072
      %1074 = vrot.lane.b32.xlu0 %v638, 32
      %v1075 = vpop.permute.xlu0 %1074
      %1076 = vrot.lane.b32.xlu0 %v640, 32
      %v1077 = vpop.permute.xlu0 %1076
      %1078 = vrot.lane.b32.xlu0 %v1015, 32
      %v1079 = vpop.permute.xlu0 %1078
      %1080 = vrot.lane.b32.xlu0 %v1017, 32
      %v1081 = vpop.permute.xlu0 %1080
      %v1114 = vrot.slane %v506, 2
      %v1115 = vrot.slane %v507, 2
      %v1116 = vsel %vm737, %v1114, %v1115
      %v1117 = vrot.slane %v508, 2
      %v1118 = vsel %vm737, %v1115, %v1117
      %1119 = vrot.lane.b32.xlu0 %v745, 40
      %v1120 = vpop.permute.xlu0 %1119
      %1121 = vrot.lane.b32.xlu0 %v747, 40
      %v1122 = vpop.permute.xlu0 %1121
      %1123 = vrot.lane.b32.xlu0 %v750, 40
      %v1124 = vpop.permute.xlu0 %1123
      %1125 = vrot.lane.b32.xlu0 %v752, 40
      %v1126 = vpop.permute.xlu0 %1125
      %1127 = vrot.lane.b32.xlu0 %v755, 40
      %v1128 = vpop.permute.xlu0 %1127
      %1129 = vrot.lane.b32.xlu0 %v757, 40
      %v1130 = vpop.permute.xlu0 %1129
      %1131 = vrot.lane.b32.xlu0 %v760, 40
      %v1132 = vpop.permute.xlu0 %1131
      %1133 = vrot.lane.b32.xlu0 %v762, 40
      %v1134 = vpop.permute.xlu0 %1133
      %1135 = vrot.lane.b32.xlu0 %v765, 40
      %v1136 = vpop.permute.xlu0 %1135
      %1137 = vrot.lane.b32.xlu0 %v767, 40
      %v1138 = vpop.permute.xlu0 %1137
      %1139 = vrot.lane.b32.xlu0 %v770, 40
      %v1140 = vpop.permute.xlu0 %1139
      %1141 = vrot.lane.b32.xlu0 %v772, 40
      %v1142 = vpop.permute.xlu0 %1141
      %1143 = vrot.lane.b32.xlu0 %v775, 40
      %v1144 = vpop.permute.xlu0 %1143
      %1145 = vrot.lane.b32.xlu0 %v777, 40
      %v1146 = vpop.permute.xlu0 %1145
      %1147 = vrot.lane.b32.xlu0 %v780, 40
      %v1148 = vpop.permute.xlu0 %1147
      %1149 = vrot.lane.b32.xlu0 %v782, 40
      %v1150 = vpop.permute.xlu0 %1149
      %1151 = vrot.lane.b32.xlu0 %v785, 40
      %v1152 = vpop.permute.xlu0 %1151
      %1153 = vrot.lane.b32.xlu0 %v787, 40
      %v1154 = vpop.permute.xlu0 %1153
      %1155 = vrot.lane.b32.xlu0 %v790, 40
      %v1156 = vpop.permute.xlu0 %1155
      %1157 = vrot.lane.b32.xlu0 %v792, 40
      %v1158 = vpop.permute.xlu0 %1157
      %1159 = vrot.lane.b32.xlu0 %v795, 40
      %v1160 = vpop.permute.xlu0 %1159
      %1161 = vrot.lane.b32.xlu0 %v797, 40
      %v1162 = vpop.permute.xlu0 %1161
      %1163 = vrot.lane.b32.xlu0 %v800, 40
      %v1164 = vpop.permute.xlu0 %1163
      %1165 = vrot.lane.b32.xlu0 %v802, 40
      %v1166 = vpop.permute.xlu0 %1165
      %1167 = vrot.lane.b32.xlu0 %v805, 40
      %v1168 = vpop.permute.xlu0 %1167
      %1169 = vrot.lane.b32.xlu0 %v807, 40
      %v1170 = vpop.permute.xlu0 %1169
      %1171 = vrot.lane.b32.xlu0 %v810, 40
      %v1172 = vpop.permute.xlu0 %1171
      %1173 = vrot.lane.b32.xlu0 %v812, 40
      %v1174 = vpop.permute.xlu0 %1173
      %1175 = vrot.lane.b32.xlu0 %v815, 40
      %v1176 = vpop.permute.xlu0 %1175
      %1177 = vrot.lane.b32.xlu0 %v817, 40
      %v1178 = vpop.permute.xlu0 %1177
      %1179 = vrot.lane.b32.xlu0 %v1116, 40
      %v1180 = vpop.permute.xlu0 %1179
      %1181 = vrot.lane.b32.xlu0 %v1118, 40
      %v1182 = vpop.permute.xlu0 %1181
      %1217 = vrot.lane.b32.xlu0 %v464, 48
      %v1218 = vpop.permute.xlu0 %1217
      %1219 = vrot.lane.b32.xlu0 %v465, 48
      %v1220 = vpop.permute.xlu0 %1219
      %1221 = vrot.lane.b32.xlu0 %v467, 48
      %v1222 = vpop.permute.xlu0 %1221
      %1223 = vrot.lane.b32.xlu0 %v468, 48
      %v1224 = vpop.permute.xlu0 %1223
      %1225 = vrot.lane.b32.xlu0 %v470, 48
      %v1226 = vpop.permute.xlu0 %1225
      %1227 = vrot.lane.b32.xlu0 %v471, 48
      %v1228 = vpop.permute.xlu0 %1227
      %1229 = vrot.lane.b32.xlu0 %v473, 48
      %v1230 = vpop.permute.xlu0 %1229
      %1231 = vrot.lane.b32.xlu0 %v474, 48
      %v1232 = vpop.permute.xlu0 %1231
      %1233 = vrot.lane.b32.xlu0 %v476, 48
      %v1234 = vpop.permute.xlu0 %1233
      %1235 = vrot.lane.b32.xlu0 %v477, 48
      %v1236 = vpop.permute.xlu0 %1235
      %1237 = vrot.lane.b32.xlu0 %v479, 48
      %v1238 = vpop.permute.xlu0 %1237
      %1239 = vrot.lane.b32.xlu0 %v480, 48
      %v1240 = vpop.permute.xlu0 %1239
      %1241 = vrot.lane.b32.xlu0 %v482, 48
      %v1242 = vpop.permute.xlu0 %1241
      %1243 = vrot.lane.b32.xlu0 %v483, 48
      %v1244 = vpop.permute.xlu0 %1243
      %1245 = vrot.lane.b32.xlu0 %v485, 48
      %v1246 = vpop.permute.xlu0 %1245
      %1247 = vrot.lane.b32.xlu0 %v486, 48
      %v1248 = vpop.permute.xlu0 %1247
      %1249 = vrot.lane.b32.xlu0 %v488, 48
      %v1250 = vpop.permute.xlu0 %1249
      %1251 = vrot.lane.b32.xlu0 %v489, 48
      %v1252 = vpop.permute.xlu0 %1251
      %1253 = vrot.lane.b32.xlu0 %v491, 48
      %v1254 = vpop.permute.xlu0 %1253
      %1255 = vrot.lane.b32.xlu0 %v492, 48
      %v1256 = vpop.permute.xlu0 %1255
      %1257 = vrot.lane.b32.xlu0 %v494, 48
      %v1258 = vpop.permute.xlu0 %1257
      %1259 = vrot.lane.b32.xlu0 %v495, 48
      %v1260 = vpop.permute.xlu0 %1259
      %1261 = vrot.lane.b32.xlu0 %v497, 48
      %v1262 = vpop.permute.xlu0 %1261
      %1263 = vrot.lane.b32.xlu0 %v498, 48
      %v1264 = vpop.permute.xlu0 %1263
      %1265 = vrot.lane.b32.xlu0 %v500, 48
      %v1266 = vpop.permute.xlu0 %1265
      %1267 = vrot.lane.b32.xlu0 %v501, 48
      %v1268 = vpop.permute.xlu0 %1267
      %1269 = vrot.lane.b32.xlu0 %v503, 48
      %v1270 = vpop.permute.xlu0 %1269
      %1271 = vrot.lane.b32.xlu0 %v504, 48
      %v1272 = vpop.permute.xlu0 %1271
      %1273 = vrot.lane.b32.xlu0 %v506, 48
      %v1274 = vpop.permute.xlu0 %1273
      %1275 = vrot.lane.b32.xlu0 %v507, 48
      %v1276 = vpop.permute.xlu0 %1275
      %1277 = vrot.lane.b32.xlu0 %v509, 48
      %v1278 = vpop.permute.xlu0 %1277
      %1279 = vrot.lane.b32.xlu0 %v510, 48
      %v1280 = vpop.permute.xlu0 %1279
      %v1314 = vrot.slane %v509, 1
      %v1315 = vrot.slane %v510, 1
      %v1316 = vsel %vm560, %v1314, %v1315
      %v1317 = vrot.slane %v511, 1
      %v1318 = vsel %vm560, %v1315, %v1317
      %1319 = vrot.lane.b32.xlu0 %v573, 56
      %v1320 = vpop.permute.xlu0 %1319
      %1321 = vrot.lane.b32.xlu0 %v575, 56
      %v1322 = vpop.permute.xlu0 %1321
      %1323 = vrot.lane.b32.xlu0 %v578, 56
      %v1324 = vpop.permute.xlu0 %1323
      %1325 = vrot.lane.b32.xlu0 %v580, 56
      %v1326 = vpop.permute.xlu0 %1325
      %1327 = vrot.lane.b32.xlu0 %v583, 56
      %v1328 = vpop.permute.xlu0 %1327
      %1329 = vrot.lane.b32.xlu0 %v585, 56
      %v1330 = vpop.permute.xlu0 %1329
      %1331 = vrot.lane.b32.xlu0 %v588, 56
      %v1332 = vpop.permute.xlu0 %1331
      %1333 = vrot.lane.b32.xlu0 %v590, 56
      %v1334 = vpop.permute.xlu0 %1333
      %1335 = vrot.lane.b32.xlu0 %v593, 56
      %v1336 = vpop.permute.xlu0 %1335
      %1337 = vrot.lane.b32.xlu0 %v595, 56
      %v1338 = vpop.permute.xlu0 %1337
      %1339 = vrot.lane.b32.xlu0 %v598, 56
      %v1340 = vpop.permute.xlu0 %1339
      %1341 = vrot.lane.b32.xlu0 %v600, 56
      %v1342 = vpop.permute.xlu0 %1341
      %1343 = vrot.lane.b32.xlu0 %v603, 56
      %v1344 = vpop.permute.xlu0 %1343
      %1345 = vrot.lane.b32.xlu0 %v605, 56
      %v1346 = vpop.permute.xlu0 %1345
      %1347 = vrot.lane.b32.xlu0 %v608, 56
      %v1348 = vpop.permute.xlu0 %1347
      %1349 = vrot.lane.b32.xlu0 %v610, 56
      %v1350 = vpop.permute.xlu0 %1349
      %1351 = vrot.lane.b32.xlu0 %v613, 56
      %v1352 = vpop.permute.xlu0 %1351
      %1353 = vrot.lane.b32.xlu0 %v615, 56
      %v1354 = vpop.permute.xlu0 %1353
      %1355 = vrot.lane.b32.xlu0 %v618, 56
      %v1356 = vpop.permute.xlu0 %1355
      %1357 = vrot.lane.b32.xlu0 %v620, 56
      %v1358 = vpop.permute.xlu0 %1357
      %1359 = vrot.lane.b32.xlu0 %v623, 56
      %v1360 = vpop.permute.xlu0 %1359
      %1361 = vrot.lane.b32.xlu0 %v625, 56
      %v1362 = vpop.permute.xlu0 %1361
      %1363 = vrot.lane.b32.xlu0 %v628, 56
      %v1364 = vpop.permute.xlu0 %1363
      %1365 = vrot.lane.b32.xlu0 %v630, 56
      %v1366 = vpop.permute.xlu0 %1365
      %1367 = vrot.lane.b32.xlu0 %v633, 56
      %v1368 = vpop.permute.xlu0 %1367
      %1369 = vrot.lane.b32.xlu0 %v635, 56
      %v1370 = vpop.permute.xlu0 %1369
      %1371 = vrot.lane.b32.xlu0 %v638, 56
      %v1372 = vpop.permute.xlu0 %1371
      %1373 = vrot.lane.b32.xlu0 %v640, 56
      %v1374 = vpop.permute.xlu0 %1373
      %1375 = vrot.lane.b32.xlu0 %v1015, 56
      %v1376 = vpop.permute.xlu0 %1375
      %1377 = vrot.lane.b32.xlu0 %v1017, 56
      %v1378 = vpop.permute.xlu0 %1377
      %1379 = vrot.lane.b32.xlu0 %v1316, 56
      %v1380 = vpop.permute.xlu0 %1379
      %1381 = vrot.lane.b32.xlu0 %v1318, 56
      %v1382 = vpop.permute.xlu0 %1381
      %v1415 = vrot.slane %v509, 2
      %v1416 = vrot.slane %v510, 2
      %v1417 = vsel %vm737, %v1415, %v1416
      %v1418 = vrot.slane %v511, 2
      %v1419 = vsel %vm737, %v1416, %v1418
      %1420 = vrot.lane.b32.xlu0 %v750, 64
      %v1421 = vpop.permute.xlu0 %1420
      %1422 = vrot.lane.b32.xlu0 %v752, 64
      %v1423 = vpop.permute.xlu0 %1422
      %1424 = vrot.lane.b32.xlu0 %v755, 64
      %v1425 = vpop.permute.xlu0 %1424
      %1426 = vrot.lane.b32.xlu0 %v757, 64
      %v1427 = vpop.permute.xlu0 %1426
      %1428 = vrot.lane.b32.xlu0 %v760, 64
      %v1429 = vpop.permute.xlu0 %1428
      %1430 = vrot.lane.b32.xlu0 %v762, 64
      %v1431 = vpop.permute.xlu0 %1430
      %1432 = vrot.lane.b32.xlu0 %v765, 64
      %v1433 = vpop.permute.xlu0 %1432
      %1434 = vrot.lane.b32.xlu0 %v767, 64
      %v1435 = vpop.permute.xlu0 %1434
      %1436 = vrot.lane.b32.xlu0 %v770, 64
      %v1437 = vpop.permute.xlu0 %1436
      %1438 = vrot.lane.b32.xlu0 %v772, 64
      %v1439 = vpop.permute.xlu0 %1438
      %1440 = vrot.lane.b32.xlu0 %v775, 64
      %v1441 = vpop.permute.xlu0 %1440
      %1442 = vrot.lane.b32.xlu0 %v777, 64
      %v1443 = vpop.permute.xlu0 %1442
      %1444 = vrot.lane.b32.xlu0 %v780, 64
      %v1445 = vpop.permute.xlu0 %1444
      %1446 = vrot.lane.b32.xlu0 %v782, 64
      %v1447 = vpop.permute.xlu0 %1446
      %1448 = vrot.lane.b32.xlu0 %v785, 64
      %v1449 = vpop.permute.xlu0 %1448
      %1450 = vrot.lane.b32.xlu0 %v787, 64
      %v1451 = vpop.permute.xlu0 %1450
      %1452 = vrot.lane.b32.xlu0 %v790, 64
      %v1453 = vpop.permute.xlu0 %1452
      %1454 = vrot.lane.b32.xlu0 %v792, 64
      %v1455 = vpop.permute.xlu0 %1454
      %1456 = vrot.lane.b32.xlu0 %v795, 64
      %v1457 = vpop.permute.xlu0 %1456
      %1458 = vrot.lane.b32.xlu0 %v797, 64
      %v1459 = vpop.permute.xlu0 %1458
      %1460 = vrot.lane.b32.xlu0 %v800, 64
      %v1461 = vpop.permute.xlu0 %1460
      %1462 = vrot.lane.b32.xlu0 %v802, 64
      %v1463 = vpop.permute.xlu0 %1462
      %1464 = vrot.lane.b32.xlu0 %v805, 64
      %v1465 = vpop.permute.xlu0 %1464
      %1466 = vrot.lane.b32.xlu0 %v807, 64
      %v1467 = vpop.permute.xlu0 %1466
      %1468 = vrot.lane.b32.xlu0 %v810, 64
      %v1469 = vpop.permute.xlu0 %1468
      %1470 = vrot.lane.b32.xlu0 %v812, 64
      %v1471 = vpop.permute.xlu0 %1470
      %1472 = vrot.lane.b32.xlu0 %v815, 64
      %v1473 = vpop.permute.xlu0 %1472
      %1474 = vrot.lane.b32.xlu0 %v817, 64
      %v1475 = vpop.permute.xlu0 %1474
      %1476 = vrot.lane.b32.xlu0 %v1116, 64
      %v1477 = vpop.permute.xlu0 %1476
      %1478 = vrot.lane.b32.xlu0 %v1118, 64
      %v1479 = vpop.permute.xlu0 %1478
      %1480 = vrot.lane.b32.xlu0 %v1417, 64
      %v1481 = vpop.permute.xlu0 %1480
      %1482 = vrot.lane.b32.xlu0 %v1419, 64
      %v1483 = vpop.permute.xlu0 %1482
      %v1516 = vsel %vm379, %v458, %v642
      %v1517 = vsel %vm379, %v459, %v644
      %v1518 = vsel %vm379, %v461, %v646
      %v1519 = vsel %vm379, %v462, %v648
      %v1520 = vsel %vm379, %v464, %v650
      %v1521 = vsel %vm379, %v465, %v652
      %v1522 = vsel %vm379, %v467, %v654
      %v1523 = vsel %vm379, %v468, %v656
      %v1524 = vsel %vm379, %v470, %v658
      %v1525 = vsel %vm379, %v471, %v660
      %v1526 = vsel %vm379, %v473, %v662
      %v1527 = vsel %vm379, %v474, %v664
      %v1528 = vsel %vm379, %v476, %v666
      %v1529 = vsel %vm379, %v477, %v668
      %v1530 = vsel %vm379, %v479, %v670
      %v1531 = vsel %vm379, %v480, %v672
      %v1532 = vsel %vm379, %v482, %v674
      %v1533 = vsel %vm379, %v483, %v676
      %v1534 = vsel %vm379, %v485, %v678
      %v1535 = vsel %vm379, %v486, %v680
      %v1536 = vsel %vm379, %v488, %v682
      %v1537 = vsel %vm379, %v489, %v684
      %v1538 = vsel %vm379, %v491, %v686
      %v1539 = vsel %vm379, %v492, %v688
      %v1540 = vsel %vm379, %v494, %v690
      %v1541 = vsel %vm379, %v495, %v692
      %v1542 = vsel %vm379, %v497, %v694
      %v1543 = vsel %vm379, %v498, %v696
      %v1544 = vsel %vm379, %v500, %v698
      %v1545 = vsel %vm379, %v501, %v700
      %v1546 = vsel %vm379, %v503, %v702
      %v1547 = vsel %vm379, %v504, %v704
      %vm1548 = vcmask 130048
      %v1549 = vsel %vm1548, %v1516, %v819
      %v1550 = vsel %vm1548, %v1517, %v821
      %v1551 = vsel %vm1548, %v1518, %v823
      %v1552 = vsel %vm1548, %v1519, %v825
      %v1553 = vsel %vm1548, %v1520, %v827
      %v1554 = vsel %vm1548, %v1521, %v829
      %v1555 = vsel %vm1548, %v1522, %v831
      %v1556 = vsel %vm1548, %v1523, %v833
      %v1557 = vsel %vm1548, %v1524, %v835
      %v1558 = vsel %vm1548, %v1525, %v837
      %v1559 = vsel %vm1548, %v1526, %v839
      %v1560 = vsel %vm1548, %v1527, %v841
      %v1561 = vsel %vm1548, %v1528, %v843
      %v1562 = vsel %vm1548, %v1529, %v845
      %v1563 = vsel %vm1548, %v1530, %v847
      %v1564 = vsel %vm1548, %v1531, %v849
      %v1565 = vsel %vm1548, %v1532, %v851
      %v1566 = vsel %vm1548, %v1533, %v853
      %v1567 = vsel %vm1548, %v1534, %v855
      %v1568 = vsel %vm1548, %v1535, %v857
      %v1569 = vsel %vm1548, %v1536, %v859
      %v1570 = vsel %vm1548, %v1537, %v861
      %v1571 = vsel %vm1548, %v1538, %v863
      %v1572 = vsel %vm1548, %v1539, %v865
      %v1573 = vsel %vm1548, %v1540, %v867
      %v1574 = vsel %vm1548, %v1541, %v869
      %v1575 = vsel %vm1548, %v1542, %v871
      %v1576 = vsel %vm1548, %v1543, %v873
      %v1577 = vsel %vm1548, %v1544, %v875
      %v1578 = vsel %vm1548, %v1545, %v877
      %v1579 = vsel %vm1548, %v1546, %v879
      %v1580 = vsel %vm1548, %v1547, %v881
      %vm1581 = vcmask 195584
      %v1582 = vsel %vm1581, %v1549, %v917
      %v1583 = vsel %vm1581, %v1550, %v919
      %v1584 = vsel %vm1581, %v1551, %v921
      %v1585 = vsel %vm1581, %v1552, %v923
      %v1586 = vsel %vm1581, %v1553, %v925
      %v1587 = vsel %vm1581, %v1554, %v927
      %v1588 = vsel %vm1581, %v1555, %v929
      %v1589 = vsel %vm1581, %v1556, %v931
      %v1590 = vsel %vm1581, %v1557, %v933
      %v1591 = vsel %vm1581, %v1558, %v935
      %v1592 = vsel %vm1581, %v1559, %v937
      %v1593 = vsel %vm1581, %v1560, %v939
      %v1594 = vsel %vm1581, %v1561, %v941
      %v1595 = vsel %vm1581, %v1562, %v943
      %v1596 = vsel %vm1581, %v1563, %v945
      %v1597 = vsel %vm1581, %v1564, %v947
      %v1598 = vsel %vm1581, %v1565, %v949
      %v1599 = vsel %vm1581, %v1566, %v951
      %v1600 = vsel %vm1581, %v1567, %v953
      %v1601 = vsel %vm1581, %v1568, %v955
      %v1602 = vsel %vm1581, %v1569, %v957
      %v1603 = vsel %vm1581, %v1570, %v959
      %v1604 = vsel %vm1581, %v1571, %v961
      %v1605 = vsel %vm1581, %v1572, %v963
      %v1606 = vsel %vm1581, %v1573, %v965
      %v1607 = vsel %vm1581, %v1574, %v967
      %v1608 = vsel %vm1581, %v1575, %v969
      %v1609 = vsel %vm1581, %v1576, %v971
      %v1610 = vsel %vm1581, %v1577, %v973
      %v1611 = vsel %vm1581, %v1578, %v975
      %v1612 = vsel %vm1581, %v1579, %v977
      %v1613 = vsel %vm1581, %v1580, %v979
      %vm1614 = vcmask 261120
      %v1615 = vsel %vm1614, %v1582, %v1019
      %v1616 = vsel %vm1614, %v1583, %v1021
      %v1617 = vsel %vm1614, %v1584, %v1023
      %v1618 = vsel %vm1614, %v1585, %v1025
      %v1619 = vsel %vm1614, %v1586, %v1027
      %v1620 = vsel %vm1614, %v1587, %v1029
      %v1621 = vsel %vm1614, %v1588, %v1031
      %v1622 = vsel %vm1614, %v1589, %v1033
      %v1623 = vsel %vm1614, %v1590, %v1035
      %v1624 = vsel %vm1614, %v1591, %v1037
      %v1625 = vsel %vm1614, %v1592, %v1039
      %v1626 = vsel %vm1614, %v1593, %v1041
      %v1627 = vsel %vm1614, %v1594, %v1043
      %v1628 = vsel %vm1614, %v1595, %v1045
      %v1629 = vsel %vm1614, %v1596, %v1047
      %v1630 = vsel %vm1614, %v1597, %v1049
      %v1631 = vsel %vm1614, %v1598, %v1051
      %v1632 = vsel %vm1614, %v1599, %v1053
      %v1633 = vsel %vm1614, %v1600, %v1055
      %v1634 = vsel %vm1614, %v1601, %v1057
      %v1635 = vsel %vm1614, %v1602, %v1059
      %v1636 = vsel %vm1614, %v1603, %v1061
      %v1637 = vsel %vm1614, %v1604, %v1063
      %v1638 = vsel %vm1614, %v1605, %v1065
      %v1639 = vsel %vm1614, %v1606, %v1067
      %v1640 = vsel %vm1614, %v1607, %v1069
      %v1641 = vsel %vm1614, %v1608, %v1071
      %v1642 = vsel %vm1614, %v1609, %v1073
      %v1643 = vsel %vm1614, %v1610, %v1075
      %v1644 = vsel %vm1614, %v1611, %v1077
      %v1645 = vsel %vm1614, %v1612, %v1079
      %v1646 = vsel %vm1614, %v1613, %v1081
      %vm1647 = vcmask 326656
      %v1648 = vsel %vm1647, %v1615, %v1120
      %v1649 = vsel %vm1647, %v1616, %v1122
      %v1650 = vsel %vm1647, %v1617, %v1124
      %v1651 = vsel %vm1647, %v1618, %v1126
      %v1652 = vsel %vm1647, %v1619, %v1128
      %v1653 = vsel %vm1647, %v1620, %v1130
      %v1654 = vsel %vm1647, %v1621, %v1132
      %v1655 = vsel %vm1647, %v1622, %v1134
      %v1656 = vsel %vm1647, %v1623, %v1136
      %v1657 = vsel %vm1647, %v1624, %v1138
      %v1658 = vsel %vm1647, %v1625, %v1140
      %v1659 = vsel %vm1647, %v1626, %v1142
      %v1660 = vsel %vm1647, %v1627, %v1144
      %v1661 = vsel %vm1647, %v1628, %v1146
      %v1662 = vsel %vm1647, %v1629, %v1148
      %v1663 = vsel %vm1647, %v1630, %v1150
      %v1664 = vsel %vm1647, %v1631, %v1152
      %v1665 = vsel %vm1647, %v1632, %v1154
      %v1666 = vsel %vm1647, %v1633, %v1156
      %v1667 = vsel %vm1647, %v1634, %v1158
      %v1668 = vsel %vm1647, %v1635, %v1160
      %v1669 = vsel %vm1647, %v1636, %v1162
      %v1670 = vsel %vm1647, %v1637, %v1164
      %v1671 = vsel %vm1647, %v1638, %v1166
      %v1672 = vsel %vm1647, %v1639, %v1168
      %v1673 = vsel %vm1647, %v1640, %v1170
      %v1674 = vsel %vm1647, %v1641, %v1172
      %v1675 = vsel %vm1647, %v1642, %v1174
      %v1676 = vsel %vm1647, %v1643, %v1176
      %v1677 = vsel %vm1647, %v1644, %v1178
      %v1678 = vsel %vm1647, %v1645, %v1180
      %v1679 = vsel %vm1647, %v1646, %v1182
      %vm1680 = vcmask 392192
      %v1681 = vsel %vm1680, %v1648, %v1218
      %v1682 = vsel %vm1680, %v1649, %v1220
      %v1683 = vsel %vm1680, %v1650, %v1222
      %v1684 = vsel %vm1680, %v1651, %v1224
      %v1685 = vsel %vm1680, %v1652, %v1226
      %v1686 = vsel %vm1680, %v1653, %v1228
      %v1687 = vsel %vm1680, %v1654, %v1230
      %v1688 = vsel %vm1680, %v1655, %v1232
      %v1689 = vsel %vm1680, %v1656, %v1234
      %v1690 = vsel %vm1680, %v1657, %v1236
      %v1691 = vsel %vm1680, %v1658, %v1238
      %v1692 = vsel %vm1680, %v1659, %v1240
      %v1693 = vsel %vm1680, %v1660, %v1242
      %v1694 = vsel %vm1680, %v1661, %v1244
      %v1695 = vsel %vm1680, %v1662, %v1246
      %v1696 = vsel %vm1680, %v1663, %v1248
      %v1697 = vsel %vm1680, %v1664, %v1250
      %v1698 = vsel %vm1680, %v1665, %v1252
      %v1699 = vsel %vm1680, %v1666, %v1254
      %v1700 = vsel %vm1680, %v1667, %v1256
      %v1701 = vsel %vm1680, %v1668, %v1258
      %v1702 = vsel %vm1680, %v1669, %v1260
      %v1703 = vsel %vm1680, %v1670, %v1262
      %v1704 = vsel %vm1680, %v1671, %v1264
      %v1705 = vsel %vm1680, %v1672, %v1266
      %v1706 = vsel %vm1680, %v1673, %v1268
      %v1707 = vsel %vm1680, %v1674, %v1270
      %v1708 = vsel %vm1680, %v1675, %v1272
      %v1709 = vsel %vm1680, %v1676, %v1274
      %v1710 = vsel %vm1680, %v1677, %v1276
      %v1711 = vsel %vm1680, %v1678, %v1278
      %v1712 = vsel %vm1680, %v1679, %v1280
      %vm1713 = vcmask 457728
      %v1714 = vsel %vm1713, %v1681, %v1320
      %v1715 = vsel %vm1713, %v1682, %v1322
      %v1716 = vsel %vm1713, %v1683, %v1324
      %v1717 = vsel %vm1713, %v1684, %v1326
      %v1718 = vsel %vm1713, %v1685, %v1328
      %v1719 = vsel %vm1713, %v1686, %v1330
      %v1720 = vsel %vm1713, %v1687, %v1332
      %v1721 = vsel %vm1713, %v1688, %v1334
      %v1722 = vsel %vm1713, %v1689, %v1336
      %v1723 = vsel %vm1713, %v1690, %v1338
      %v1724 = vsel %vm1713, %v1691, %v1340
      %v1725 = vsel %vm1713, %v1692, %v1342
      %v1726 = vsel %vm1713, %v1693, %v1344
      %v1727 = vsel %vm1713, %v1694, %v1346
      %v1728 = vsel %vm1713, %v1695, %v1348
      %v1729 = vsel %vm1713, %v1696, %v1350
      %v1730 = vsel %vm1713, %v1697, %v1352
      %v1731 = vsel %vm1713, %v1698, %v1354
      %v1732 = vsel %vm1713, %v1699, %v1356
      %v1733 = vsel %vm1713, %v1700, %v1358
      %v1734 = vsel %vm1713, %v1701, %v1360
      %v1735 = vsel %vm1713, %v1702, %v1362
      %v1736 = vsel %vm1713, %v1703, %v1364
      %v1737 = vsel %vm1713, %v1704, %v1366
      %v1738 = vsel %vm1713, %v1705, %v1368
      %v1739 = vsel %vm1713, %v1706, %v1370
      %v1740 = vsel %vm1713, %v1707, %v1372
      %v1741 = vsel %vm1713, %v1708, %v1374
      %v1742 = vsel %vm1713, %v1709, %v1376
      %v1743 = vsel %vm1713, %v1710, %v1378
      %v1744 = vsel %vm1713, %v1711, %v1380
      %v1745 = vsel %vm1713, %v1712, %v1382
      %vm1746 = vcmask 523264
      %v1747 = vsel %vm1746, %v1714, %v1421
      %v1748 = vsel %vm1746, %v1715, %v1423
      %v1749 = vsel %vm1746, %v1716, %v1425
      %v1750 = vsel %vm1746, %v1717, %v1427
      %v1751 = vsel %vm1746, %v1718, %v1429
      %v1752 = vsel %vm1746, %v1719, %v1431
      %v1753 = vsel %vm1746, %v1720, %v1433
      %v1754 = vsel %vm1746, %v1721, %v1435
      %v1755 = vsel %vm1746, %v1722, %v1437
      %v1756 = vsel %vm1746, %v1723, %v1439
      %v1757 = vsel %vm1746, %v1724, %v1441
      %v1758 = vsel %vm1746, %v1725, %v1443
      %v1759 = vsel %vm1746, %v1726, %v1445
      %v1760 = vsel %vm1746, %v1727, %v1447
      %v1761 = vsel %vm1746, %v1728, %v1449
      %v1762 = vsel %vm1746, %v1729, %v1451
      %v1763 = vsel %vm1746, %v1730, %v1453
      %v1764 = vsel %vm1746, %v1731, %v1455
      %v1765 = vsel %vm1746, %v1732, %v1457
      %v1766 = vsel %vm1746, %v1733, %v1459
      %v1767 = vsel %vm1746, %v1734, %v1461
      %v1768 = vsel %vm1746, %v1735, %v1463
      %v1769 = vsel %vm1746, %v1736, %v1465
      %v1770 = vsel %vm1746, %v1737, %v1467
      %v1771 = vsel %vm1746, %v1738, %v1469
      %v1772 = vsel %vm1746, %v1739, %v1471
      %v1773 = vsel %vm1746, %v1740, %v1473
      %v1774 = vsel %vm1746, %v1741, %v1475
      %v1775 = vsel %vm1746, %v1742, %v1477
      %v1776 = vsel %vm1746, %v1743, %v1479
      %v1777 = vsel %vm1746, %v1744, %v1481
      %v1778 = vsel %vm1746, %v1745, %v1483
      %v1779 = vpack.c.bf16 %v1748, %v1747
      %v1780 = vpack.c.bf16 %v1750, %v1749
      %v1781 = vpack.c.bf16 %v1752, %v1751
      %v1782 = vpack.c.bf16 %v1754, %v1753
      %v1783 = vpack.c.bf16 %v1756, %v1755
      %v1784 = vpack.c.bf16 %v1758, %v1757
      %v1785 = vpack.c.bf16 %v1760, %v1759
      %v1786 = vpack.c.bf16 %v1762, %v1761
      %v1787 = vpack.c.bf16 %v1764, %v1763
      %v1788 = vpack.c.bf16 %v1766, %v1765
      %v1789 = vpack.c.bf16 %v1768, %v1767
      %v1790 = vpack.c.bf16 %v1770, %v1769
      %v1791 = vpack.c.bf16 %v1772, %v1771
      %v1792 = vpack.c.bf16 %v1774, %v1773
      %v1793 = vpack.c.bf16 %v1776, %v1775
      %v1794 = vpack.c.bf16 %v1778, %v1777
      %v1795 = vld [vmem:[%s3] sm:$0xf]
      %v1796 = vld [vmem:[%s3 + $0x4] sm:$0xf]
      %v1797 = vld [vmem:[%s3 + $0x8] sm:$0xf]
      %v1798 = vld [vmem:[%s3 + $0xc] sm:$0xf]
      %v1799 = vld [vmem:[%s3 + $0x10] sm:$0xf]
      %v1800 = vld [vmem:[%s3 + $0x14] sm:$0xf]
      %v1801 = vld [vmem:[%s3 + $0x18] sm:$0xf]
      %v1802 = vld [vmem:[%s3 + $0x1c] sm:$0xf]
      %v1803 = vld [vmem:[%s3 + $0x20] sm:$0xf]
      %v1813 = vunpack.c.l.b16 %v1795
      %v1814 = vunpack.c.l.b16 %v1796
      %v1815 = vunpack.c.l.b16 %v1797
      %v1816 = vunpack.c.l.b16 %v1798
      %v1817 = vunpack.c.l.b16 %v1799
      %v1818 = vunpack.c.l.b16 %v1800
      %v1819 = vunpack.c.l.b16 %v1801
      %v1820 = vunpack.c.l.b16 %v1802
      %v1821 = vunpack.c.l.b16 %v1803
      %v1822 = vpack.c.b16 %v1814, %v1813
      %v1823 = vpack.c.b16 %v1816, %v1815
      %v1824 = vpack.c.b16 %v1818, %v1817
      %v1825 = vpack.c.b16 %v1820, %v1819
      %v1826 = vpack.c.b16 %v1821, %v1821
      %vm1831 = vcmask 588800
      %v1833 = vsel %vm1831, %v1779, 0
      %v1836 = vsel %vm1831, %v1780, 0
      %v1839 = vsel %vm1831, %v1781, 0
      %v1842 = vsel %vm1831, %v1782, 0
      %v1845 = vsel %vm1831, %v1783, 0
      %v1848 = vsel %vm1831, %v1784, 0
      %v1851 = vsel %vm1831, %v1785, 0
      %v1854 = vsel %vm1831, %v1786, 0
      %v1857 = vsel %vm1831, %v1787, 0
      %v1860 = vsel %vm1831, %v1788, 0
      %v1863 = vsel %vm1831, %v1789, 0
      %v1866 = vsel %vm1831, %v1790, 0
      %v1869 = vsel %vm1831, %v1791, 0
      %v1872 = vsel %vm1831, %v1792, 0
      %v1875 = vsel %vm1831, %v1793, 0
      %v1878 = vsel %vm1831, %v1794, 0
      %vm1880 = vcmask 1043456
      %v1882 = vsel %vm1880, %v1826, 0
      %1884 = vmatprep.subr.bf16.mxu0 0
      %1885 = vmatpush1.bf16.msra.mxu0 0
      %1886 = vmatprep.subr.bf16.mxu0 0
      %1887 = vmatpush1.bf16.msra.mxu0 0
      %1888 = vmatprep.subr.bf16.mxu0 0
      %1889 = vmatpush1.bf16.msra.mxu0 0
      %1890 = vmatprep.subr.bf16.mxu0 0
      %1891 = vmatpush1.bf16.msra.mxu0 %v1882
      %1892 = vmatprep.subr.bf16.mxu0 0
      %1893 = vmatpush1.bf16.msra.mxu0 %v1825
      %1894 = vmatprep.subr.bf16.mxu0 0
      %1895 = vmatpush1.bf16.msra.mxu0 %v1824
      %1896 = vmatprep.subr.bf16.mxu0 0
      %1897 = vmatpush1.bf16.msra.mxu0 %v1823
      %1898 = vmatprep.subr.bf16.mxu0 0
      %1899 = vmatpush1.bf16.msra.mxu0 %v1822
      %1900 = vmatprep.subr.bf16.mxu0 0
      %1901 = vmatpush2.bf16.msra.mxu0 0
      %1902 = vmatprep.subr.bf16.mxu0 0
      %1903 = vmatpush2.bf16.msra.mxu0 0
      %1904 = vmatprep.subr.bf16.mxu0 0
      %1905 = vmatpush2.bf16.msra.mxu0 0
      %1906 = vmatprep.subr.bf16.mxu0 0
      %1907 = vmatpush2.bf16.msra.mxu0 0
      %1908 = vmatprep.subr.bf16.mxu0 0
      %1909 = vmatpush2.bf16.msra.mxu0 0
      %1910 = vmatprep.subr.bf16.mxu0 0
      %1911 = vmatpush2.bf16.msra.mxu0 0
      %1912 = vmatprep.subr.bf16.mxu0 0
      %1913 = vmatpush2.bf16.msra.mxu0 0
      %1914 = vmatprep.subr.bf16.mxu0 0
      %1915 = vmatpush2.bf16.msra.mxu0 0
      %1916 = vmatprep.mubr.bf16.mxu0 0
      %1917 = vmatmul.mubr.bf16.gmra.mxu0 %v1833
      %v1918 = vpop.f32.mrf.mxu0
      %v1919 = vadd.f32 0.0, %v1918
      %v1920 = vpop.f32.mrf.mxu0
      %v1921 = vpop.f32.mrf.mxu0
      %v1922 = vadd.f32 0.0, %v1921
      %v1923 = vpop.f32.mrf.mxu0
      %1924 = vmatprep.mubr.bf16.mxu0 0
      %1925 = vmatmul.mubr.bf16.gmra.mxu0 %v1836
      %v1926 = vpop.f32.mrf.mxu0
      %v1927 = vadd.f32 0.0, %v1926
      %v1928 = vpop.f32.mrf.mxu0
      %v1929 = vpop.f32.mrf.mxu0
      %v1930 = vadd.f32 0.0, %v1929
      %v1931 = vpop.f32.mrf.mxu0
      %1932 = vmatprep.mubr.bf16.mxu0 0
      %1933 = vmatmul.mubr.bf16.gmra.mxu0 %v1839
      %v1934 = vpop.f32.mrf.mxu0
      %v1935 = vadd.f32 0.0, %v1934
      %v1936 = vpop.f32.mrf.mxu0
      %v1937 = vpop.f32.mrf.mxu0
      %v1938 = vadd.f32 0.0, %v1937
      %v1939 = vpop.f32.mrf.mxu0
      %1940 = vmatprep.mubr.bf16.mxu0 0
      %1941 = vmatmul.mubr.bf16.gmra.mxu0 %v1842
      %v1942 = vpop.f32.mrf.mxu0
      %v1943 = vadd.f32 0.0, %v1942
      %v1944 = vpop.f32.mrf.mxu0
      %v1945 = vpop.f32.mrf.mxu0
      %v1946 = vadd.f32 0.0, %v1945
      %v1947 = vpop.f32.mrf.mxu0
      %1948 = vmatprep.mubr.bf16.mxu0 0
      %1949 = vmatmul.mubr.bf16.gmra.mxu0 %v1845
      %v1950 = vpop.f32.mrf.mxu0
      %v1951 = vadd.f32 0.0, %v1950
      %v1952 = vpop.f32.mrf.mxu0
      %v1953 = vpop.f32.mrf.mxu0
      %v1954 = vadd.f32 0.0, %v1953
      %v1955 = vpop.f32.mrf.mxu0
      %1956 = vmatprep.mubr.bf16.mxu0 0
      %1957 = vmatmul.mubr.bf16.gmra.mxu0 %v1848
      %v1958 = vpop.f32.mrf.mxu0
      %v1959 = vadd.f32 0.0, %v1958
      %v1960 = vpop.f32.mrf.mxu0
      %v1961 = vpop.f32.mrf.mxu0
      %v1962 = vadd.f32 0.0, %v1961
      %v1963 = vpop.f32.mrf.mxu0
      %1964 = vmatprep.mubr.bf16.mxu0 0
      %1965 = vmatmul.mubr.bf16.gmra.mxu0 %v1851
      %v1966 = vpop.f32.mrf.mxu0
      %v1967 = vadd.f32 0.0, %v1966
      %v1968 = vpop.f32.mrf.mxu0
      %v1969 = vpop.f32.mrf.mxu0
      %v1970 = vadd.f32 0.0, %v1969
      %v1971 = vpop.f32.mrf.mxu0
      %1972 = vmatprep.mubr.bf16.mxu0 0
      %1973 = vmatmul.mubr.bf16.gmra.mxu0 %v1854
      %v1974 = vpop.f32.mrf.mxu0
      %v1975 = vadd.f32 0.0, %v1974
      %v1976 = vpop.f32.mrf.mxu0
      %v1977 = vpop.f32.mrf.mxu0
      %v1978 = vadd.f32 0.0, %v1977
      %v1979 = vpop.f32.mrf.mxu0
      %1980 = vmatprep.mubr.bf16.mxu0 0
      %1981 = vmatmul.mubr.bf16.gmra.mxu0 %v1857
      %v1982 = vpop.f32.mrf.mxu0
      %v1983 = vadd.f32 0.0, %v1982
      %v1984 = vpop.f32.mrf.mxu0
      %v1985 = vpop.f32.mrf.mxu0
      %v1986 = vadd.f32 0.0, %v1985
      %v1987 = vpop.f32.mrf.mxu0
      %1988 = vmatprep.mubr.bf16.mxu0 0
      %1989 = vmatmul.mubr.bf16.gmra.mxu0 %v1860
      %v1990 = vpop.f32.mrf.mxu0
      %v1991 = vadd.f32 0.0, %v1990
      %v1992 = vpop.f32.mrf.mxu0
      %v1993 = vpop.f32.mrf.mxu0
      %v1994 = vadd.f32 0.0, %v1993
      %v1995 = vpop.f32.mrf.mxu0
      %1996 = vmatprep.mubr.bf16.mxu0 0
      %1997 = vmatmul.mubr.bf16.gmra.mxu0 %v1863
      %v1998 = vpop.f32.mrf.mxu0
      %v1999 = vadd.f32 0.0, %v1998
      %v2000 = vpop.f32.mrf.mxu0
      %v2001 = vpop.f32.mrf.mxu0
      %v2002 = vadd.f32 0.0, %v2001
      %v2003 = vpop.f32.mrf.mxu0
      %2004 = vmatprep.mubr.bf16.mxu0 0
      %2005 = vmatmul.mubr.bf16.gmra.mxu0 %v1866
      %v2006 = vpop.f32.mrf.mxu0
      %v2007 = vadd.f32 0.0, %v2006
      %v2008 = vpop.f32.mrf.mxu0
      %v2009 = vpop.f32.mrf.mxu0
      %v2010 = vadd.f32 0.0, %v2009
      %v2011 = vpop.f32.mrf.mxu0
      %2012 = vmatprep.mubr.bf16.mxu0 0
      %2013 = vmatmul.mubr.bf16.gmra.mxu0 %v1869
      %v2014 = vpop.f32.mrf.mxu0
      %v2015 = vadd.f32 0.0, %v2014
      %v2016 = vpop.f32.mrf.mxu0
      %v2017 = vpop.f32.mrf.mxu0
      %v2018 = vadd.f32 0.0, %v2017
      %v2019 = vpop.f32.mrf.mxu0
      %2020 = vmatprep.mubr.bf16.mxu0 0
      %2021 = vmatmul.mubr.bf16.gmra.mxu0 %v1872
      %v2022 = vpop.f32.mrf.mxu0
      %v2023 = vadd.f32 0.0, %v2022
      %v2024 = vpop.f32.mrf.mxu0
      %v2025 = vpop.f32.mrf.mxu0
      %v2026 = vadd.f32 0.0, %v2025
      %v2027 = vpop.f32.mrf.mxu0
      %2028 = vmatprep.mubr.bf16.mxu0 0
      %2029 = vmatmul.mubr.bf16.gmra.mxu0 %v1875
      %v2030 = vpop.f32.mrf.mxu0
      %v2031 = vadd.f32 0.0, %v2030
      %v2032 = vpop.f32.mrf.mxu0
      %v2033 = vpop.f32.mrf.mxu0
      %v2034 = vadd.f32 0.0, %v2033
      %v2035 = vpop.f32.mrf.mxu0
      %2036 = vmatprep.mubr.bf16.mxu0 0
      %2037 = vmatmul.mubr.bf16.gmra.mxu0 %v1878
      %v2038 = vpop.f32.mrf.mxu0
      %v2039 = vadd.f32 0.0, %v2038
      %v2040 = vpop.f32.mrf.mxu0
      %v2041 = vpop.f32.mrf.mxu0
      %v2042 = vadd.f32 0.0, %v2041
      %v2043 = vpop.f32.mrf.mxu0
      %2044 = vdwg.mxu0
      %2045 = vst.msk [vmem:[%s231] sm:$0xff] %vm379, %v1919
      %2046 = vst.msk [vmem:[%s231 + $0x8] sm:$0xff] %vm379, %v1922
      %2047 = vst.msk [vmem:[%s231 + $0x10] sm:$0xff] %vm379, %v1927
      %2048 = vst.msk [vmem:[%s231 + $0x18] sm:$0xff] %vm379, %v1930
      %2049 = vst.msk [vmem:[%s231 + $0x20] sm:$0xff] %vm379, %v1935
      %2050 = vst.msk [vmem:[%s231 + $0x28] sm:$0xff] %vm379, %v1938
      %2051 = vst.msk [vmem:[%s231 + $0x30] sm:$0xff] %vm379, %v1943
      %2052 = vst.msk [vmem:[%s231 + $0x38] sm:$0xff] %vm379, %v1946
      %2053 = vst.msk [vmem:[%s231 + $0x40] sm:$0xff] %vm379, %v1951
      %2054 = vst.msk [vmem:[%s231 + $0x48] sm:$0xff] %vm379, %v1954
      %2055 = vst.msk [vmem:[%s231 + $0x50] sm:$0xff] %vm379, %v1959
      %2056 = vst.msk [vmem:[%s231 + $0x58] sm:$0xff] %vm379, %v1962
      %2057 = vst.msk [vmem:[%s231 + $0x60] sm:$0xff] %vm379, %v1967
      %2058 = vst.msk [vmem:[%s231 + $0x68] sm:$0xff] %vm379, %v1970
      %2059 = vst.msk [vmem:[%s231 + $0x70] sm:$0xff] %vm379, %v1975
      %2060 = vst.msk [vmem:[%s231 + $0x78] sm:$0xff] %vm379, %v1978
      %2061 = vst.msk [vmem:[%s231 + $0x80] sm:$0xff] %vm379, %v1983
      %2062 = vst.msk [vmem:[%s231 + $0x88] sm:$0xff] %vm379, %v1986
      %2063 = vst.msk [vmem:[%s231 + $0x90] sm:$0xff] %vm379, %v1991
      %2064 = vst.msk [vmem:[%s231 + $0x98] sm:$0xff] %vm379, %v1994
      %2065 = vst.msk [vmem:[%s231 + $0xa0] sm:$0xff] %vm379, %v1999
      %2066 = vst.msk [vmem:[%s231 + $0xa8] sm:$0xff] %vm379, %v2002
      %2067 = vst.msk [vmem:[%s231 + $0xb0] sm:$0xff] %vm379, %v2007
      %2068 = vst.msk [vmem:[%s231 + $0xb8] sm:$0xff] %vm379, %v2010
      %2069 = vst.msk [vmem:[%s231 + $0xc0] sm:$0xff] %vm379, %v2015
      %2070 = vst.msk [vmem:[%s231 + $0xc8] sm:$0xff] %vm379, %v2018
      %2071 = vst.msk [vmem:[%s231 + $0xd0] sm:$0xff] %vm379, %v2023
      %2072 = vst.msk [vmem:[%s231 + $0xd8] sm:$0xff] %vm379, %v2026
      %2073 = vst.msk [vmem:[%s231 + $0xe0] sm:$0xff] %vm379, %v2031
      %2074 = vst.msk [vmem:[%s231 + $0xe8] sm:$0xff] %vm379, %v2034
      %2075 = vst.msk [vmem:[%s231 + $0xf0] sm:$0xff] %vm379, %v2039
      %2076 = vst.msk [vmem:[%s231 + $0xf8] sm:$0xff] %vm379, %v2042
      %v2077 = vsel %vm379, %v1919, 0.0
      %v2078 = vsel %vm379, %v1922, 0.0
      %v2079 = vadd.f32 %v2077, %v2078
      %v2080 = vsel %vm379, %v1927, 0.0
      %v2081 = vadd.f32 %v2079, %v2080
      %v2082 = vsel %vm379, %v1930, 0.0
      %v2083 = vadd.f32 %v2081, %v2082
      %v2084 = vsel %vm379, %v1935, 0.0
      %v2085 = vadd.f32 %v2083, %v2084
      %v2086 = vsel %vm379, %v1938, 0.0
      %v2087 = vadd.f32 %v2085, %v2086
      %v2088 = vsel %vm379, %v1943, 0.0
      %v2089 = vadd.f32 %v2087, %v2088
      %v2090 = vsel %vm379, %v1946, 0.0
      %v2091 = vadd.f32 %v2089, %v2090
      %v2092 = vsel %vm379, %v1951, 0.0
      %v2093 = vadd.f32 %v2091, %v2092
      %v2094 = vsel %vm379, %v1954, 0.0
      %v2095 = vadd.f32 %v2093, %v2094
      %v2096 = vsel %vm379, %v1959, 0.0
      %v2097 = vadd.f32 %v2095, %v2096
      %v2098 = vsel %vm379, %v1962, 0.0
      %v2099 = vadd.f32 %v2097, %v2098
      %v2100 = vsel %vm379, %v1967, 0.0
      %v2101 = vadd.f32 %v2099, %v2100
      %v2102 = vsel %vm379, %v1970, 0.0
      %v2103 = vadd.f32 %v2101, %v2102
      %v2104 = vsel %vm379, %v1975, 0.0
      %v2105 = vadd.f32 %v2103, %v2104
      %v2106 = vsel %vm379, %v1978, 0.0
      %v2107 = vadd.f32 %v2105, %v2106
      %v2108 = vsel %vm379, %v1983, 0.0
      %v2109 = vadd.f32 %v2107, %v2108
      %v2110 = vsel %vm379, %v1986, 0.0
      %v2111 = vadd.f32 %v2109, %v2110
      %v2112 = vsel %vm379, %v1991, 0.0
      %v2113 = vadd.f32 %v2111, %v2112
      %v2114 = vsel %vm379, %v1994, 0.0
      %v2115 = vadd.f32 %v2113, %v2114
      %v2116 = vsel %vm379, %v1999, 0.0
      %v2117 = vadd.f32 %v2115, %v2116
      %v2118 = vsel %vm379, %v2002, 0.0
      %v2119 = vadd.f32 %v2117, %v2118
      %v2120 = vsel %vm379, %v2007, 0.0
      %v2121 = vadd.f32 %v2119, %v2120
      %v2122 = vsel %vm379, %v2010, 0.0
      %v2123 = vadd.f32 %v2121, %v2122
      %v2124 = vsel %vm379, %v2015, 0.0
      %v2125 = vadd.f32 %v2123, %v2124
      %v2126 = vsel %vm379, %v2018, 0.0
      %v2127 = vadd.f32 %v2125, %v2126
      %v2128 = vsel %vm379, %v2023, 0.0
      %v2129 = vadd.f32 %v2127, %v2128
      %v2130 = vsel %vm379, %v2026, 0.0
      %v2131 = vadd.f32 %v2129, %v2130
      %v2132 = vsel %vm379, %v2031, 0.0
      %v2133 = vadd.f32 %v2131, %v2132
      %v2134 = vsel %vm379, %v2034, 0.0
      %v2135 = vadd.f32 %v2133, %v2134
      %v2136 = vsel %vm379, %v2039, 0.0
      %v2137 = vadd.f32 %v2135, %v2136
      %v2138 = vsel %vm379, %v2042, 0.0
      %v2139 = vadd.f32 %v2137, %v2138
      %v2140 = vrot.slane %v2139, 4
      %v2141 = vadd.f32 %v2139, %v2140
      %v2142 = vrot.slane %v2141, 2
      %v2143 = vadd.f32 %v2141, %v2142
      %v2144 = vrot.slane %v2143, 1
      %v2145 = vadd.f32 %v2143, %v2144
      %2146 = vst.msk [vmem:[%s235] sm:$0x1] %vm388, %v2145
      %v2147 = vmul.f32 %v1919, %v1919
      %v2148 = vmul.f32 %v1922, %v1922
      %v2149 = vmul.f32 %v1927, %v1927
      %v2150 = vmul.f32 %v1930, %v1930
      %v2151 = vmul.f32 %v1935, %v1935
      %v2152 = vmul.f32 %v1938, %v1938
      %v2153 = vmul.f32 %v1943, %v1943
      %v2154 = vmul.f32 %v1946, %v1946
      %v2155 = vmul.f32 %v1951, %v1951
      %v2156 = vmul.f32 %v1954, %v1954
      %v2157 = vmul.f32 %v1959, %v1959
      %v2158 = vmul.f32 %v1962, %v1962
      %v2159 = vmul.f32 %v1967, %v1967
      %v2160 = vmul.f32 %v1970, %v1970
      %v2161 = vmul.f32 %v1975, %v1975
      %v2162 = vmul.f32 %v1978, %v1978
      %v2163 = vmul.f32 %v1983, %v1983
      %v2164 = vmul.f32 %v1986, %v1986
      %v2165 = vmul.f32 %v1991, %v1991
      %v2166 = vmul.f32 %v1994, %v1994
      %v2167 = vmul.f32 %v1999, %v1999
      %v2168 = vmul.f32 %v2002, %v2002
      %v2169 = vmul.f32 %v2007, %v2007
      %v2170 = vmul.f32 %v2010, %v2010
      %v2171 = vmul.f32 %v2015, %v2015
      %v2172 = vmul.f32 %v2018, %v2018
      %v2173 = vmul.f32 %v2023, %v2023
      %v2174 = vmul.f32 %v2026, %v2026
      %v2175 = vmul.f32 %v2031, %v2031
      %v2176 = vmul.f32 %v2034, %v2034
      %v2177 = vmul.f32 %v2039, %v2039
      %v2178 = vmul.f32 %v2042, %v2042
      %v2179 = vsel %vm379, %v2147, 0.0
      %v2180 = vsel %vm379, %v2148, 0.0
      %v2181 = vadd.f32 %v2179, %v2180
      %v2182 = vsel %vm379, %v2149, 0.0
      %v2183 = vadd.f32 %v2181, %v2182
      %v2184 = vsel %vm379, %v2150, 0.0
      %v2185 = vadd.f32 %v2183, %v2184
      %v2186 = vsel %vm379, %v2151, 0.0
      %v2187 = vadd.f32 %v2185, %v2186
      %v2188 = vsel %vm379, %v2152, 0.0
      %v2189 = vadd.f32 %v2187, %v2188
      %v2190 = vsel %vm379, %v2153, 0.0
      %v2191 = vadd.f32 %v2189, %v2190
      %v2192 = vsel %vm379, %v2154, 0.0
      %v2193 = vadd.f32 %v2191, %v2192
      %v2194 = vsel %vm379, %v2155, 0.0
      %v2195 = vadd.f32 %v2193, %v2194
      %v2196 = vsel %vm379, %v2156, 0.0
      %v2197 = vadd.f32 %v2195, %v2196
      %v2198 = vsel %vm379, %v2157, 0.0
      %v2199 = vadd.f32 %v2197, %v2198
      %v2200 = vsel %vm379, %v2158, 0.0
      %v2201 = vadd.f32 %v2199, %v2200
      %v2202 = vsel %vm379, %v2159, 0.0
      %v2203 = vadd.f32 %v2201, %v2202
      %v2204 = vsel %vm379, %v2160, 0.0
      %v2205 = vadd.f32 %v2203, %v2204
      %v2206 = vsel %vm379, %v2161, 0.0
      %v2207 = vadd.f32 %v2205, %v2206
      %v2208 = vsel %vm379, %v2162, 0.0
      %v2209 = vadd.f32 %v2207, %v2208
      %v2210 = vsel %vm379, %v2163, 0.0
      %v2211 = vadd.f32 %v2209, %v2210
      %v2212 = vsel %vm379, %v2164, 0.0
      %v2213 = vadd.f32 %v2211, %v2212
      %v2214 = vsel %vm379, %v2165, 0.0
      %v2215 = vadd.f32 %v2213, %v2214
      %v2216 = vsel %vm379, %v2166, 0.0
      %v2217 = vadd.f32 %v2215, %v2216
      %v2218 = vsel %vm379, %v2167, 0.0
      %v2219 = vadd.f32 %v2217, %v2218
      %v2220 = vsel %vm379, %v2168, 0.0
      %v2221 = vadd.f32 %v2219, %v2220
      %v2222 = vsel %vm379, %v2169, 0.0
      %v2223 = vadd.f32 %v2221, %v2222
      %v2224 = vsel %vm379, %v2170, 0.0
      %v2225 = vadd.f32 %v2223, %v2224
      %v2226 = vsel %vm379, %v2171, 0.0
      %v2227 = vadd.f32 %v2225, %v2226
      %v2228 = vsel %vm379, %v2172, 0.0
      %v2229 = vadd.f32 %v2227, %v2228
      %v2230 = vsel %vm379, %v2173, 0.0
      %v2231 = vadd.f32 %v2229, %v2230
      %v2232 = vsel %vm379, %v2174, 0.0
      %v2233 = vadd.f32 %v2231, %v2232
      %v2234 = vsel %vm379, %v2175, 0.0
      %v2235 = vadd.f32 %v2233, %v2234
      %v2236 = vsel %vm379, %v2176, 0.0
      %v2237 = vadd.f32 %v2235, %v2236
      %v2238 = vsel %vm379, %v2177, 0.0
      %v2239 = vadd.f32 %v2237, %v2238
      %v2240 = vsel %vm379, %v2178, 0.0
      %v2241 = vadd.f32 %v2239, %v2240
      %v2242 = vrot.slane %v2241, 4
      %v2243 = vadd.f32 %v2241, %v2242
      %v2244 = vrot.slane %v2243, 2
      %v2245 = vadd.f32 %v2243, %v2244
      %v2246 = vrot.slane %v2245, 1
      %v2247 = vadd.f32 %v2245, %v2246
      %2248 = vst.msk [vmem:[%s235 + $0x1] sm:$0x1] %vm388, %v2247
      %p2249 = scmp.lt.s32.totalorder %s17, 1
      %s2250 = scalar_select %p2249, %s17, 1
      %s2251 = smul.addr %s2250, 32
      %s2252 = smul.addr %s2251, 8
      %s2253 = scalar_lea.vmem %s4, %s2252
      %p2254 = scmp.lt.s32.totalorder %s17, 1
      %s2255 = scalar_select %p2254, %s17, 1
      %s2256 = smul.addr %s2255, 2
      %s2257 = scalar_lea.vmem %s5, %s2256
      // Predicated region
      $region37: #{residual_block.4} parent=35 // pred_check
        %p2258 = pneg %p124
      $region38: #{residual_block.4} parent=35 // pred_check_branch
        %2260 = sbr.rel (%p2258) target = $region40
      $region39: #{residual_block.4} parent=35 // pred_region
        _
      $region40: #{residual_block.4} parent=35 // pred_fallthru
        _
      // Predicated region
      $region41: #{residual_block.4} parent=35 // pred_check
        %p2261 = pneg %p150
      $region42: #{residual_block.4} parent=35 // pred_check_branch
        %2263 = sbr.rel (%p2261) target = $region44
      $region43: #{residual_block.4} parent=35 // pred_region
        _
      $region44: #{residual_block.4} parent=35 // pred_fallthru
        _
    $region36: #{residual_block.4} parent=5 // pred_fallthru
      _
    %p2264 = scmp.le.s32.totalorder 2, %s12
    // Predicated region
    $region45: #{residual_block.4} parent=5 // pred_check
      %p2265 = pneg %p2264
    $region46: #{residual_block.4} parent=5 // pred_check_branch
      %2267 = sbr.rel (%p2265) target = $region48
    $region47: #{residual_block.4} parent=5 // pred_region
      %s2268 = ssub.s32 %s12, 2
      // Predicated region
      $region49: #{residual_block.4} parent=47 // pred_check
        %p2269 = pneg %p130
      $region50: #{residual_block.4} parent=47 // pred_check_branch
        %2271 = sbr.rel (%p2269) target = $region52
      $region51: #{residual_block.4} parent=47 // pred_region
        %p2272 = scmp.lt.s32.totalorder %s18, 1
        %s2273 = scalar_select %p2272, %s18, 1
        %s2274 = smul.addr %s2273, 32
        %s2275 = smul.addr %s2274, 8
        %s2276 = scalar_lea.vmem %s4, %s2275
      $region52: #{residual_block.4} parent=47 // pred_fallthru
        _
      // Predicated region
      $region53: #{residual_block.4} parent=47 // pred_check
        %p2277 = pneg %p156
      $region54: #{residual_block.4} parent=47 // pred_check_branch
        %2279 = sbr.rel (%p2277) target = $region56
      $region55: #{residual_block.4} parent=47 // pred_region
        %p2280 = scmp.lt.s32.totalorder %s18, 1
        %s2281 = scalar_select %p2280, %s18, 1
        %s2282 = smul.addr %s2281, 2
        %s2283 = scalar_lea.vmem %s5, %s2282
      $region56: #{residual_block.4} parent=47 // pred_fallthru
        _
    $region48: #{residual_block.4} parent=5 // pred_fallthru
      _
  $region6: #{residual_block.4} parent=0 // loop_footer
    %s16 = sadd.s32 1, %s12
  $region7: #{residual_block.4} parent=0 // loop_footer_branch
    %11 = sbr.rel target = $region3
  $region8: #{residual_block.4} parent=0 // loop_exit
    _

// kernel: residual_block.3
$region0: #{residual_block.3}
  #allocation0 [shape = 'u32[]', space=smem, size = 0x4, offset = 0x4, fixed_abs, tag = 'smem constant byte address 0x4 - core index']
  #allocation1 [shape = 'u32[144,128]{1,0:T(1,128)}', space=vmem, size = 0x12000, scoped, tag = 'internal scratch']
  #allocation2 [shape = 'f32[1,18,18,4]{3,2,1,0:T(8,128)}', space=vmem, size = 0x36000, scoped, tag = 'scratch operand']
  %s0 = inlined_call_operand.vmem [shape: f32[2,16,16,4], index: 0, kind: input, shape index: {}]
  %s1 = inlined_call_operand.vmem [shape: bf16[36,8], index: 1, kind: input, shape index: {}]
  %s2 = inlined_call_operand.vmem [shape: bf16[4,8], index: 2, kind: input, shape index: {}]
  %s3 = inlined_call_operand.vmem [shape: f32[2,256,8], index: 3, kind: output, shape index: {0}]
  %s4 = inlined_call_operand.vmem [shape: f32[2,2,8], index: 4, kind: output, shape index: {1}]
  %s5 = inlined_call_operand.vmem [shape: f32[2,256,8], index: 5, kind: output, shape index: {2}]
  %s6 = inlined_call_operand.vmem [shape: f32[2,2,8], index: 6, kind: output, shape index: {3}]
  %7 = xla_tuple %s3, %s4, %s5, %s6
  %s8 = sld [smem:[#allocation0]]
  $region69: #{residual_block.3} parent=0
    _
  %s10 = ssub.s32 1, %s8
  %s11 = scalar_select 0, %s10, %s8
  loop: start=0, step=1, limit=4
  $region2: #{residual_block.3} parent=0 // loop_pre_header
    _
  $region3: #{residual_block.3} parent=0 // loop_header
    %s13 = sphi 0, %s17
    %p14 = scmp.ge.s32.totalorder %s13, 4
    %s23 = sphi 0, %s25
    %s26 = sphi 0, %s23
    %s27 = sphi 0, %s26
    %s43 = sphi 0, %s27
    %s47 = sphi 0, %s47
    %s49 = sphi 0, %s47
    %s50 = sphi 0, %s49
    %s64 = sphi 0, %s50
    %s68 = sphi 0, %s68
    %s70 = sphi 0, %s68
    %s71 = sphi 0, %s70
    %s85 = sphi 0, %s71
    %s91 = sphi 0, %s93
    %s94 = sphi 0, %s91
    %s95 = sphi 0, %s94
    %s111 = sphi 0, %s95
    %s117 = sphi 0, %s119
    %s120 = sphi 0, %s117
    %s121 = sphi 0, %s120
    %s137 = sphi 0, %s121
    %s143 = sphi 0, %s145
    %s146 = sphi 0, %s143
    %s147 = sphi 0, %s146
    %s163 = sphi 0, %s147
    %s169 = sphi 0, %s171
    %s172 = sphi 0, %s169
    %s173 = sphi 0, %s172
    %s189 = sphi 0, %s173
  $region4: #{residual_block.3} parent=0 // loop_header_branch
    %16 = sbr.rel (%p14) target = $region8
  $region5: #{residual_block.3} parent=0 // loop_body
    %s18 = ssub.s32 %s13, 1
    %s19 = ssub.s32 %s13, 2
    %s20 = sadd.s32 %s13, 1
    %s21 = ssub.s32 %s13, %s20
    %p22 = scmp.eq.s32.totalorder %s21, 0
    %s24 = sadd.s32 %s23, 1
    %s25 = scalar_select %p22, %s23, %s24
    %p28 = pneg %p22
    %p29 = scmp.eq.s32.totalorder %s13, 1
    %p30 = por %p28, %p29
    %p31 = scmp.ne.s32.totalorder %s23, %s26
    %p32 = scmp.eq.s32.totalorder %s13, 0
    %p33 = por %p31, %p32
    %p34 = scmp.ne.s32.totalorder %s23, %s26
    %p35 = scmp.eq.s32.totalorder %s18, 1
    %p36 = por %p34, %p35
    %p37 = scmp.ne.s32.totalorder %s26, %s27
    %p38 = scmp.eq.s32.totalorder %s18, 0
    %p39 = por %p37, %p38
    %p40 = scmp.ne.s32.totalorder %s26, %s27
    %p41 = scmp.eq.s32.totalorder %s19, 1
    %p42 = por %p40, %p41
    %p44 = scmp.ne.s32.totalorder %s27, %s43
    %p45 = scmp.eq.s32.totalorder %s19, 0
    %p46 = por %p44, %p45
    %s48 = sadd.s32 %s47, 1
    %p51 = scmp.eq.s32.totalorder %s13, 1
    %p52 = scmp.ne.s32.totalorder %s47, %s49
    %p53 = scmp.eq.s32.totalorder %s13, 0
    %p54 = por %p52, %p53
    %p55 = scmp.ne.s32.totalorder %s47, %s49
    %p56 = scmp.eq.s32.totalorder %s18, 1
    %p57 = por %p55, %p56
    %p58 = scmp.ne.s32.totalorder %s49, %s50
    %p59 = scmp.eq.s32.totalorder %s18, 0
    %p60 = por %p58, %p59
    %p61 = scmp.ne.s32.totalorder %s49, %s50
    %p62 = scmp.eq.s32.totalorder %s19, 1
    %p63 = por %p61, %p62
    %p65 = scmp.ne.s32.totalorder %s50, %s64
    %p66 = scmp.eq.s32.totalorder %s19, 0
    %p67 = por %p65, %p66
    %s69 = sadd.s32 %s68, 1
    %p72 = scmp.eq.s32.totalorder %s13, 1
    %p73 = scmp.ne.s32.totalorder %s68, %s70
    %p74 = scmp.eq.s32.totalorder %s13, 0
    %p75 = por %p73, %p74
    %p76 = scmp.ne.s32.totalorder %s68, %s70
    %p77 = scmp.eq.s32.totalorder %s18, 1
    %p78 = por %p76, %p77
    %p79 = scmp.ne.s32.totalorder %s70, %s71
    %p80 = scmp.eq.s32.totalorder %s18, 0
    %p81 = por %p79, %p80
    %p82 = scmp.ne.s32.totalorder %s70, %s71
    %p83 = scmp.eq.s32.totalorder %s19, 1
    %p84 = por %p82, %p83
    %p86 = scmp.ne.s32.totalorder %s71, %s85
    %p87 = scmp.eq.s32.totalorder %s19, 0
    %p88 = por %p86, %p87
    %s89 = ssub.s32 %s13, %s20
    %p90 = scmp.eq.s32.totalorder %s89, 0
    %s92 = sadd.s32 %s91, 1
    %s93 = scalar_select %p90, %s91, %s92
    %p96 = pneg %p90
    %p97 = scmp.eq.s32.totalorder %s13, 1
    %p98 = por %p96, %p97
    %p99 = scmp.ne.s32.totalorder %s91, %s94
    %p100 = scmp.eq.s32.totalorder %s13, 0
    %p101 = por %p99, %p100
    %p102 = scmp.ne.s32.totalorder %s91, %s94
    %p103 = scmp.eq.s32.totalorder %s18, 1
    %p104 = por %p102, %p103
    %p105 = scmp.ne.s32.totalorder %s94, %s95
    %p106 = scmp.eq.s32.totalorder %s18, 0
    %p107 = por %p105, %p106
    %p108 = scmp.ne.s32.totalorder %s94, %s95
    %p109 = scmp.eq.s32.totalorder %s19, 1
    %p110 = por %p108, %p109
    %p112 = scmp.ne.s32.totalorder %s95, %s111
    %p113 = scmp.eq.s32.totalorder %s19, 0
    %p114 = por %p112, %p113
    %s115 = ssub.s32 %s13, %s20
    %p116 = scmp.eq.s32.totalorder %s115, 0
    %s118 = sadd.s32 %s117, 1
    %s119 = scalar_select %p116, %s117, %s118
    %p122 = pneg %p116
    %p123 = scmp.eq.s32.totalorder %s13, 1
    %p124 = por %p122, %p123
    %p125 = scmp.ne.s32.totalorder %s117, %s120
    %p126 = scmp.eq.s32.totalorder %s13, 0
    %p127 = por %p125, %p126
    %p128 = scmp.ne.s32.totalorder %s117, %s120
    %p129 = scmp.eq.s32.totalorder %s18, 1
    %p130 = por %p128, %p129
    %p131 = scmp.ne.s32.totalorder %s120, %s121
    %p132 = scmp.eq.s32.totalorder %s18, 0
    %p133 = por %p131, %p132
    %p134 = scmp.ne.s32.totalorder %s120, %s121
    %p135 = scmp.eq.s32.totalorder %s19, 1
    %p136 = por %p134, %p135
    %p138 = scmp.ne.s32.totalorder %s121, %s137
    %p139 = scmp.eq.s32.totalorder %s19, 0
    %p140 = por %p138, %p139
    %s141 = ssub.s32 %s13, %s20
    %p142 = scmp.eq.s32.totalorder %s141, 0
    %s144 = sadd.s32 %s143, 1
    %s145 = scalar_select %p142, %s143, %s144
    %p148 = pneg %p142
    %p149 = scmp.eq.s32.totalorder %s13, 1
    %p150 = por %p148, %p149
    %p151 = scmp.ne.s32.totalorder %s143, %s146
    %p152 = scmp.eq.s32.totalorder %s13, 0
    %p153 = por %p151, %p152
    %p154 = scmp.ne.s32.totalorder %s143, %s146
    %p155 = scmp.eq.s32.totalorder %s18, 1
    %p156 = por %p154, %p155
    %p157 = scmp.ne.s32.totalorder %s146, %s147
    %p158 = scmp.eq.s32.totalorder %s18, 0
    %p159 = por %p157, %p158
    %p160 = scmp.ne.s32.totalorder %s146, %s147
    %p161 = scmp.eq.s32.totalorder %s19, 1
    %p162 = por %p160, %p161
    %p164 = scmp.ne.s32.totalorder %s147, %s163
    %p165 = scmp.eq.s32.totalorder %s19, 0
    %p166 = por %p164, %p165
    %s167 = ssub.s32 %s13, %s20
    %p168 = scmp.eq.s32.totalorder %s167, 0
    %s170 = sadd.s32 %s169, 1
    %s171 = scalar_select %p168, %s169, %s170
    %p174 = pneg %p168
    %p175 = scmp.eq.s32.totalorder %s13, 1
    %p176 = por %p174, %p175
    %p177 = scmp.ne.s32.totalorder %s169, %s172
    %p178 = scmp.eq.s32.totalorder %s13, 0
    %p179 = por %p177, %p178
    %p180 = scmp.ne.s32.totalorder %s169, %s172
    %p181 = scmp.eq.s32.totalorder %s18, 1
    %p182 = por %p180, %p181
    %p183 = scmp.ne.s32.totalorder %s172, %s173
    %p184 = scmp.eq.s32.totalorder %s18, 0
    %p185 = por %p183, %p184
    %p186 = scmp.ne.s32.totalorder %s172, %s173
    %p187 = scmp.eq.s32.totalorder %s19, 1
    %p188 = por %p186, %p187
    %p190 = scmp.ne.s32.totalorder %s173, %s189
    %p191 = scmp.eq.s32.totalorder %s19, 0
    %p192 = por %p190, %p191
    %p193 = scmp.le.s32.totalorder 1, %s13
    %p194 = scmp.lt.s32.totalorder %s13, 3
    %p195 = pnand %p193, %p194
    %p196 = pneg %p195
    // Predicated region
    $region9: #{residual_block.3} parent=5 // pred_check
      _
    $region10: #{residual_block.3} parent=5 // pred_check_branch
      %198 = sbr.rel (%p195) target = $region12
    $region11: #{residual_block.3} parent=5 // pred_region
      %s199 = ssub.s32 %s13, 1
      // Predicated region
      $region13: #{residual_block.3} parent=11 // pred_check
        %p200 = pneg %p60
      $region14: #{residual_block.3} parent=11 // pred_check_branch
        %202 = sbr.rel (%p200) target = $region16
      $region15: #{residual_block.3} parent=11 // pred_region
        _
      $region16: #{residual_block.3} parent=11 // pred_fallthru
        _
      // Predicated region
      $region17: #{residual_block.3} parent=11 // pred_check
        %p203 = pneg %p81
      $region18: #{residual_block.3} parent=11 // pred_check_branch
        %205 = sbr.rel (%p203) target = $region20
      $region19: #{residual_block.3} parent=11 // pred_region
        _
      $region20: #{residual_block.3} parent=11 // pred_fallthru
        _
    $region12: #{residual_block.3} parent=5 // pred_fallthru
      _
    %p206 = scmp.lt.s32.totalorder %s13, 2
    // Predicated region
    $region21: #{residual_block.3} parent=5 // pred_check
      %p207 = pneg %p206
    $region22: #{residual_block.3} parent=5 // pred_check_branch
      %209 = sbr.rel (%p207) target = $region24
    $region23: #{residual_block.3} parent=5 // pred_region
      // Predicated region
      $region25: #{residual_block.3} parent=23 // pred_check
        %p210 = pneg %p33
      $region26: #{residual_block.3} parent=23 // pred_check_branch
        %212 = sbr.rel (%p210) target = $region28
      $region27: #{residual_block.3} parent=23 // pred_region
        %p213 = scmp.lt.s32.totalorder %s13, 1
        %s214 = scalar_select %p213, %s13, 1
        %s215 = smul.addr %s214, 32
        %s216 = smul.addr %s215, 8
        %s217 = scalar_lea.vmem %s0, %s216
      $region28: #{residual_block.3} parent=23 // pred_fallthru
        _
    $region24: #{residual_block.3} parent=5 // pred_fallthru
      _
    %p218 = scmp.le.s32.totalorder 1, %s13
    %p219 = scmp.lt.s32.totalorder %s13, 3
    %p220 = pnand %p218, %p219
    %p221 = pneg %p220
    // Predicated region
    $region29: #{residual_block.3} parent=5 // pred_check
      _
    $region30: #{residual_block.3} parent=5 // pred_check_branch
      %223 = sbr.rel (%p220) target = $region32
    $region31: #{residual_block.3} parent=5 // pred_region
      %s224 = ssub.s32 %s13, 1
      %p225 = scmp.lt.s32.totalorder %s18, 1
      %s226 = scalar_select %p225, %s18, 1
      %s227 = smul.addr %s226, 32
      %s228 = smul.addr %s227, 8
      %s229 = scalar_lea.vmem %s0, %s228
      %p230 = pneg %p39
      %p231 = pneg %p36
      %p232 = pneg %p60
      %p233 = pneg %p57
      %p234 = pneg %p81
      %p235 = pneg %p78
      %p236 = pneg %p107
      %p237 = pneg %p104
      %p238 = scmp.lt.s32.totalorder %s18, 1
      %s239 = scalar_select %p238, %s18, 1
      %s240 = smul.addr %s239, 32
      %s241 = smul.addr %s240, 8
      %s242 = scalar_lea.vmem %s3, %s241
      %p243 = pneg %p133
      %p244 = pneg %p130
      %p245 = scmp.lt.s32.totalorder %s18, 1
      %s246 = scalar_select %p245, %s18, 1
      %s247 = smul.addr %s246, 2
      %s248 = scalar_lea.vmem %s4, %s247
      %p249 = pneg %p159
      %p250 = pneg %p156
      %p251 = scmp.lt.s32.totalorder %s18, 1
      %s252 = scalar_select %p251, %s18, 1
      %s253 = smul.addr %s252, 32
      %s254 = smul.addr %s253, 8
      %s255 = scalar_lea.vmem %s5, %s254
      %p256 = pneg %p185
      %p257 = pneg %p182
      %p258 = scmp.lt.s32.totalorder %s18, 1
      %s259 = scalar_select %p258, %s18, 1
      %s260 = smul.addr %s259, 2
      %s261 = scalar_lea.vmem %s6, %s260
      %p262 = scmp.lt.s32.totalorder %s18, 1
      %s263 = scalar_select %p262, %s18, 1
      %s264 = smul.addr %s263, 32
      %s265 = smul.addr %s264, 8
      %s266 = scalar_lea.vmem %s0, %s265
      %p267 = scmp.lt.s32.totalorder %s18, 1
      %s268 = scalar_select %p267, %s18, 1
      %s269 = smul.addr %s268, 32
      %s270 = smul.addr %s269, 8
      %s271 = scalar_lea.vmem %s3, %s270
      %p272 = scmp.lt.s32.totalorder %s18, 1
      %s273 = scalar_select %p272, %s18, 1
      %s274 = smul.addr %s273, 2
      %s275 = scalar_lea.vmem %s4, %s274
      %p276 = scmp.lt.s32.totalorder %s18, 1
      %s277 = scalar_select %p276, %s18, 1
      %s278 = smul.addr %s277, 32
      %s279 = smul.addr %s278, 8
      %s280 = scalar_lea.vmem %s5, %s279
      %p281 = scmp.lt.s32.totalorder %s18, 1
      %s282 = scalar_select %p281, %s18, 1
      %s283 = smul.addr %s282, 2
      %s284 = scalar_lea.vmem %s6, %s283
      %vm286 = vcmask 31744
      %287 = vst.msk [vmem:[#allocation2] sm:$0xff] %vm286, 0.0
      %288 = vst.msk [vmem:[#allocation2 + $0x8] sm:$0xff] %vm286, 0.0
      %vm289 = vcmask 25600
      %290 = vst.msk [vmem:[#allocation2 + $0x10] sm:$0x3] %vm289, 0.0
      %s291 = scalar_lea.vmem [#allocation2], 408
      %292 = vst.msk [vmem:[%s291] sm:$0xff] %vm286, 0.0
      %293 = vst.msk [vmem:[%s291 + $0x8] sm:$0xff] %vm286, 0.0
      %294 = vst.msk [vmem:[%s291 + $0x10] sm:$0x3] %vm289, 0.0
      %vm295 = vcmask 24576
      %296 = vst.msk [vmem:[#allocation2] sm:$0x1] %vm295, 0.0
      %297 = vst.msk [vmem:[#allocation2 + $0x18] sm:$0x1] %vm295, 0.0
      %298 = vst.msk [vmem:[#allocation2 + $0x30] sm:$0x1] %vm295, 0.0
      %299 = vst.msk [vmem:[#allocation2 + $0x48] sm:$0x1] %vm295, 0.0
      %300 = vst.msk [vmem:[#allocation2 + $0x60] sm:$0x1] %vm295, 0.0
      %301 = vst.msk [vmem:[#allocation2 + $0x78] sm:$0x1] %vm295, 0.0
      %302 = vst.msk [vmem:[#allocation2 + $0x90] sm:$0x1] %vm295, 0.0
      %303 = vst.msk [vmem:[#allocation2 + $0xa8] sm:$0x1] %vm295, 0.0
      %304 = vst.msk [vmem:[#allocation2 + $0xc0] sm:$0x1] %vm295, 0.0
      %305 = vst.msk [vmem:[#allocation2 + $0xd8] sm:$0x1] %vm295, 0.0
      %306 = vst.msk [vmem:[#allocation2 + $0xf0] sm:$0x1] %vm295, 0.0
      %307 = vst.msk [vmem:[#allocation2 + $0x108] sm:$0x1] %vm295, 0.0
      %308 = vst.msk [vmem:[#allocation2 + $0x120] sm:$0x1] %vm295, 0.0
      %309 = vst.msk [vmem:[#allocation2 + $0x138] sm:$0x1] %vm295, 0.0
      %310 = vst.msk [vmem:[#allocation2 + $0x150] sm:$0x1] %vm295, 0.0
      %311 = vst.msk [vmem:[#allocation2 + $0x168] sm:$0x1] %vm295, 0.0
      %312 = vst.msk [vmem:[#allocation2 + $0x180] sm:$0x1] %vm295, 0.0
      %313 = vst.msk [vmem:[#allocation2 + $0x198] sm:$0x1] %vm295, 0.0
      %314 = vst.msk [vmem:[#allocation2 + $0x11] sm:$0x1] %vm295, 0.0
      %315 = vst.msk [vmem:[#allocation2 + $0x29] sm:$0x1] %vm295, 0.0
      %316 = vst.msk [vmem:[#allocation2 + $0x41] sm:$0x1] %vm295, 0.0
      %317 = vst.msk [vmem:[#allocation2 + $0x59] sm:$0x1] %vm295, 0.0
      %318 = vst.msk [vmem:[#allocation2 + $0x71] sm:$0x1] %vm295, 0.0
      %319 = vst.msk [vmem:[#allocation2 + $0x89] sm:$0x1] %vm295, 0.0
      %320 = vst.msk [vmem:[#allocation2 + $0xa1] sm:$0x1] %vm295, 0.0
      %321 = vst.msk [vmem:[#allocation2 + $0xb9] sm:$0x1] %vm295, 0.0
      %322 = vst.msk [vmem:[#allocation2 + $0xd1] sm:$0x1] %vm295, 0.0
      %323 = vst.msk [vmem:[#allocation2 + $0xe9] sm:$0x1] %vm295, 0.0
      %324 = vst.msk [vmem:[#allocation2 + $0x101] sm:$0x1] %vm295, 0.0
      %325 = vst.msk [vmem:[#allocation2 + $0x119] sm:$0x1] %vm295, 0.0
      %326 = vst.msk [vmem:[#allocation2 + $0x131] sm:$0x1] %vm295, 0.0
      %327 = vst.msk [vmem:[#allocation2 + $0x149] sm:$0x1] %vm295, 0.0
      %328 = vst.msk [vmem:[#allocation2 + $0x161] sm:$0x1] %vm295, 0.0
      %329 = vst.msk [vmem:[#allocation2 + $0x179] sm:$0x1] %vm295, 0.0
      %330 = vst.msk [vmem:[#allocation2 + $0x191] sm:$0x1] %vm295, 0.0
      %331 = vst.msk [vmem:[#allocation2 + $0x1a9] sm:$0x1] %vm295, 0.0
      %v332 = vld [vmem:[%s266] sm:$0xff]
      %v333 = vld [vmem:[%s266 + $0x8] sm:$0xff]
      %v334 = vld [vmem:[%s266 + $0x10] sm:$0xff]
      %v335 = vld [vmem:[%s266 + $0x18] sm:$0xff]
      %v336 = vld [vmem:[%s266 + $0x20] sm:$0xff]
      %v337 = vld [vmem:[%s266 + $0x28] sm:$0xff]
      %v338 = vld [vmem:[%s266 + $0x30] sm:$0xff]
      %v339 = vld [vmem:[%s266 + $0x38] sm:$0xff]
      %v340 = vld [vmem:[%s266 + $0x40] sm:$0xff]
      %v341 = vld [vmem:[%s266 + $0x48] sm:$0xff]
      %v342 = vld [vmem:[%s266 + $0x50] sm:$0xff]
      %v343 = vld [vmem:[%s266 + $0x58] sm:$0xff]
      %v344 = vld [vmem:[%s266 + $0x60] sm:$0xff]
      %v345 = vld [vmem:[%s266 + $0x68] sm:$0xff]
      %v346 = vld [vmem:[%s266 + $0x70] sm:$0xff]
      %v347 = vld [vmem:[%s266 + $0x78] sm:$0xff]
      %v348 = vld [vmem:[%s266 + $0x80] sm:$0xff]
      %v349 = vld [vmem:[%s266 + $0x88] sm:$0xff]
      %v350 = vld [vmem:[%s266 + $0x90] sm:$0xff]
      %v351 = vld [vmem:[%s266 + $0x98] sm:$0xff]
      %v352 = vld [vmem:[%s266 + $0xa0] sm:$0xff]
      %v353 = vld [vmem:[%s266 + $0xa8] sm:$0xff]
      %v354 = vld [vmem:[%s266 + $0xb0] sm:$0xff]
      %v355 = vld [vmem:[%s266 + $0xb8] sm:$0xff]
      %v356 = vld [vmem:[%s266 + $0xc0] sm:$0xff]
      %v357 = vld [vmem:[%s266 + $0xc8] sm:$0xff]
      %v358 = vld [vmem:[%s266 + $0xd0] sm:$0xff]
      %v359 = vld [vmem:[%s266 + $0xd8] sm:$0xff]
      %v360 = vld [vmem:[%s266 + $0xe0] sm:$0xff]
      %v361 = vld [vmem:[%s266 + $0xe8] sm:$0xff]
      %v362 = vld [vmem:[%s266 + $0xf0] sm:$0xff]
      %v363 = vld [vmem:[%s266 + $0xf8] sm:$0xff]
      %s364 = scalar_lea.vmem [#allocation2], 24
      %365 = vst.msk [vmem:[%s364 + $0x1] sm:$0xff] %vm286, %v332
      %366 = vst.msk [vmem:[%s364 + $0x9] sm:$0xff] %vm286, %v333
      %367 = vst.msk [vmem:[%s364 + $0x19] sm:$0xff] %vm286, %v334
      %368 = vst.msk [vmem:[%s364 + $0x21] sm:$0xff] %vm286, %v335
      %369 = vst.msk [vmem:[%s364 + $0x31] sm:$0xff] %vm286, %v336
      %370 = vst.msk [vmem:[%s364 + $0x39] sm:$0xff] %vm286, %v337
      %371 = vst.msk [vmem:[%s364 + $0x49] sm:$0xff] %vm286, %v338
      %372 = vst.msk [vmem:[%s364 + $0x51] sm:$0xff] %vm286, %v339
      %373 = vst.msk [vmem:[%s364 + $0x61] sm:$0xff] %vm286, %v340
      %374 = vst.msk [vmem:[%s364 + $0x69] sm:$0xff] %vm286, %v341
      %375 = vst.msk [vmem:[%s364 + $0x79] sm:$0xff] %vm286, %v342
      %376 = vst.msk [vmem:[%s364 + $0x81] sm:$0xff] %vm286, %v343
      %377 = vst.msk [vmem:[%s364 + $0x91] sm:$0xff] %vm286, %v344
      %378 = vst.msk [vmem:[%s364 + $0x99] sm:$0xff] %vm286, %v345
      %379 = vst.msk [vmem:[%s364 + $0xa9] sm:$0xff] %vm286, %v346
      %380 = vst.msk [vmem:[%s364 + $0xb1] sm:$0xff] %vm286, %v347
      %381 = vst.msk [vmem:[%s364 + $0xc1] sm:$0xff] %vm286, %v348
      %382 = vst.msk [vmem:[%s364 + $0xc9] sm:$0xff] %vm286, %v349
      %383 = vst.msk [vmem:[%s364 + $0xd9] sm:$0xff] %vm286, %v350
      %384 = vst.msk [vmem:[%s364 + $0xe1] sm:$0xff] %vm286, %v351
      %385 = vst.msk [vmem:[%s364 + $0xf1] sm:$0xff] %vm286, %v352
      %386 = vst.msk [vmem:[%s364 + $0xf9] sm:$0xff] %vm286, %v353
      %387 = vst.msk [vmem:[%s364 + $0x109] sm:$0xff] %vm286, %v354
      %388 = vst.msk [vmem:[%s364 + $0x111] sm:$0xff] %vm286, %v355
      %389 = vst.msk [vmem:[%s364 + $0x121] sm:$0xff] %vm286, %v356
      %390 = vst.msk [vmem:[%s364 + $0x129] sm:$0xff] %vm286, %v357
      %391 = vst.msk [vmem:[%s364 + $0x139] sm:$0xff] %vm286, %v358
      %392 = vst.msk [vmem:[%s364 + $0x141] sm:$0xff] %vm286, %v359
      %393 = vst.msk [vmem:[%s364 + $0x151] sm:$0xff] %vm286, %v360
      %394 = vst.msk [vmem:[%s364 + $0x159] sm:$0xff] %vm286, %v361
      %395 = vst.msk [vmem:[%s364 + $0x169] sm:$0xff] %vm286, %v362
      %396 = vst.msk [vmem:[%s364 + $0x171] sm:$0xff] %vm286, %v363
      %v397 = vld [vmem:[#allocation2] sm:$0xff]
      %v398 = vld [vmem:[#allocation2 + $0x8] sm:$0xff]
      %v399 = vld [vmem:[#allocation2 + $0x10] sm:$0x3]
      %v400 = vld [vmem:[#allocation2 + $0x18] sm:$0xff]
      %v401 = vld [vmem:[#allocation2 + $0x20] sm:$0xff]
      %v402 = vld [vmem:[#allocation2 + $0x28] sm:$0x3]
      %v403 = vld [vmem:[#allocation2 + $0x30] sm:$0xff]
      %v404 = vld [vmem:[#allocation2 + $0x38] sm:$0xff]
      %v405 = vld [vmem:[#allocation2 + $0x40] sm:$0x3]
      %v406 = vld [vmem:[#allocation2 + $0x48] sm:$0xff]
      %v407 = vld [vmem:[#allocation2 + $0x50] sm:$0xff]
      %v408 = vld [vmem:[#allocation2 + $0x58] sm:$0x3]
      %v409 = vld [vmem:[#allocation2 + $0x60] sm:$0xff]
      %v410 = vld [vmem:[#allocation2 + $0x68] sm:$0xff]
      %v411 = vld [vmem:[#allocation2 + $0x70] sm:$0x3]
      %v412 = vld [vmem:[#allocation2 + $0x78] sm:$0xff]
      %v413 = vld [vmem:[#allocation2 + $0x80] sm:$0xff]
      %v414 = vld [vmem:[#allocation2 + $0x88] sm:$0x3]
      %v415 = vld [vmem:[#allocation2 + $0x90] sm:$0xff]
      %v416 = vld [vmem:[#allocation2 + $0x98] sm:$0xff]
      %v417 = vld [vmem:[#allocation2 + $0xa0] sm:$0x3]
      %v418 = vld [vmem:[#allocation2 + $0xa8] sm:$0xff]
      %v419 = vld [vmem:[#allocation2 + $0xb0] sm:$0xff]
      %v420 = vld [vmem:[#allocation2 + $0xb8] sm:$0x3]
      %v421 = vld [vmem:[#allocation2 + $0xc0] sm:$0xff]
      %v422 = vld [vmem:[#allocation2 + $0xc8] sm:$0xff]
      %v423 = vld [vmem:[#allocation2 + $0xd0] sm:$0x3]
      %v424 = vld [vmem:[#allocation2 + $0xd8] sm:$0xff]
      %v425 = vld [vmem:[#allocation2 + $0xe0] sm:$0xff]
      %v426 = vld [vmem:[#allocation2 + $0xe8] sm:$0x3]
      %v427 = vld [vmem:[#allocation2 + $0xf0] sm:$0xff]
      %v428 = vld [vmem:[#allocation2 + $0xf8] sm:$0xff]
      %v429 = vld [vmem:[#allocation2 + $0x100] sm:$0x3]
      %v430 = vld [vmem:[#allocation2 + $0x108] sm:$0xff]
      %v431 = vld [vmem:[#allocation2 + $0x110] sm:$0xff]
      %v432 = vld [vmem:[#allocation2 + $0x118] sm:$0x3]
      %v433 = vld [vmem:[#allocation2 + $0x120] sm:$0xff]
      %v434 = vld [vmem:[#allocation2 + $0x128] sm:$0xff]
      %v435 = vld [vmem:[#allocation2 + $0x130] sm:$0x3]
      %v436 = vld [vmem:[#allocation2 + $0x138] sm:$0xff]
      %v437 = vld [vmem:[#allocation2 + $0x140] sm:$0xff]
      %v438 = vld [vmem:[#allocation2 + $0x148] sm:$0x3]
      %v439 = vld [vmem:[#allocation2 + $0x150] sm:$0xff]
      %v440 = vld [vmem:[#allocation2 + $0x158] sm:$0xff]
      %v441 = vld [vmem:[#allocation2 + $0x160] sm:$0x3]
      %v442 = vld [vmem:[#allocation2 + $0x168] sm:$0xff]
      %v443 = vld [vmem:[#allocation2 + $0x170] sm:$0xff]
      %v444 = vld [vmem:[#allocation2 + $0x178] sm:$0x3]
      %v445 = vld [vmem:[#allocation2 + $0x180] sm:$0xff]
      %v446 = vld [vmem:[#allocation2 + $0x188] sm:$0xff]
      %v447 = vld [vmem:[#allocation2 + $0x190] sm:$0x3]
      %v448 = vld [vmem:[#allocation2 + $0x198] sm:$0xff]
      %v449 = vld [vmem:[#allocation2 + $0x1a0] sm:$0xff]
      %v450 = vld [vmem:[#allocation2 + $0x1a8] sm:$0x3]
      %vm499 = vcmask 1046528
      %v500 = vrot.slane %v397, 1
      %v501 = vrot.slane %v398, 1
      %v502 = vsel %vm499, %v500, %v501
      %v503 = vrot.slane %v399, 1
      %v504 = vsel %vm499, %v501, %v503
      %v505 = vrot.slane %v400, 1
      %v506 = vrot.slane %v401, 1
      %v507 = vsel %vm499, %v505, %v506
      %v508 = vrot.slane %v402, 1
      %v509 = vsel %vm499, %v506, %v508
      %v510 = vrot.slane %v403, 1
      %v511 = vrot.slane %v404, 1
      %v512 = vsel %vm499, %v510, %v511
      %v513 = vrot.slane %v405, 1
      %v514 = vsel %vm499, %v511, %v513
      %v515 = vrot.slane %v406, 1
      %v516 = vrot.slane %v407, 1
      %v517 = vsel %vm499, %v515, %v516
      %v518 = vrot.slane %v408, 1
      %v519 = vsel %vm499, %v516, %v518
      %v520 = vrot.slane %v409, 1
      %v521 = vrot.slane %v410, 1
      %v522 = vsel %vm499, %v520, %v521
      %v523 = vrot.slane %v411, 1
      %v524 = vsel %vm499, %v521, %v523
      %v525 = vrot.slane %v412, 1
      %v526 = vrot.slane %v413, 1
      %v527 = vsel %vm499, %v525, %v526
      %v528 = vrot.slane %v414, 1
      %v529 = vsel %vm499, %v526, %v528
      %v530 = vrot.slane %v415, 1
      %v531 = vrot.slane %v416, 1
      %v532 = vsel %vm499, %v530, %v531
      %v533 = vrot.slane %v417, 1
      %v534 = vsel %vm499, %v531, %v533
      %v535 = vrot.slane %v418, 1
      %v536 = vrot.slane %v419, 1
      %v537 = vsel %vm499, %v535, %v536
      %v538 = vrot.slane %v420, 1
      %v539 = vsel %vm499, %v536, %v538
      %v540 = vrot.slane %v421, 1
      %v541 = vrot.slane %v422, 1
      %v542 = vsel %vm499, %v540, %v541
      %v543 = vrot.slane %v423, 1
      %v544 = vsel %vm499, %v541, %v543
      %v545 = vrot.slane %v424, 1
      %v546 = vrot.slane %v425, 1
      %v547 = vsel %vm499, %v545, %v546
      %v548 = vrot.slane %v426, 1
      %v549 = vsel %vm499, %v546, %v548
      %v550 = vrot.slane %v427, 1
      %v551 = vrot.slane %v428, 1
      %v552 = vsel %vm499, %v550, %v551
      %v553 = vrot.slane %v429, 1
      %v554 = vsel %vm499, %v551, %v553
      %v555 = vrot.slane %v430, 1
      %v556 = vrot.slane %v431, 1
      %v557 = vsel %vm499, %v555, %v556
      %v558 = vrot.slane %v432, 1
      %v559 = vsel %vm499, %v556, %v558
      %v560 = vrot.slane %v433, 1
      %v561 = vrot.slane %v434, 1
      %v562 = vsel %vm499, %v560, %v561
      %v563 = vrot.slane %v435, 1
      %v564 = vsel %vm499, %v561, %v563
      %v565 = vrot.slane %v436, 1
      %v566 = vrot.slane %v437, 1
      %v567 = vsel %vm499, %v565, %v566
      %v568 = vrot.slane %v438, 1
      %v569 = vsel %vm499, %v566, %v568
      %v570 = vrot.slane %v439, 1
      %v571 = vrot.slane %v440, 1
      %v572 = vsel %vm499, %v570, %v571
      %v573 = vrot.slane %v441, 1
      %v574 = vsel %vm499, %v571, %v573
      %v575 = vrot.slane %v442, 1
      %v576 = vrot.slane %v443, 1
      %v577 = vsel %vm499, %v575, %v576
      %v578 = vrot.slane %v444, 1
      %v579 = vsel %vm499, %v576, %v578
      %580 = vrot.lane.b32.xlu0 %v502, 4
      %v581 = vpop.permute.xlu0 %580
      %582 = vrot.lane.b32.xlu0 %v504, 4
      %v583 = vpop.permute.xlu0 %582
      %584 = vrot.lane.b32.xlu0 %v507, 4
      %v585 = vpop.permute.xlu0 %584
      %586 = vrot.lane.b32.xlu0 %v509, 4
      %v587 = vpop.permute.xlu0 %586
      %588 = vrot.lane.b32.xlu0 %v512, 4
      %v589 = vpop.permute.xlu0 %588
      %590 = vrot.lane.b32.xlu0 %v514, 4
      %v591 = vpop.permute.xlu0 %590
      %592 = vrot.lane.b32.xlu0 %v517, 4
      %v593 = vpop.permute.xlu0 %592
      %594 = vrot.lane.b32.xlu0 %v519, 4
      %v595 = vpop.permute.xlu0 %594
      %596 = vrot.lane.b32.xlu0 %v522, 4
      %v597 = vpop.permute.xlu0 %596
      %598 = vrot.lane.b32.xlu0 %v524, 4
      %v599 = vpop.permute.xlu0 %598
      %600 = vrot.lane.b32.xlu0 %v527, 4
      %v601 = vpop.permute.xlu0 %600
      %602 = vrot.lane.b32.xlu0 %v529, 4
      %v603 = vpop.permute.xlu0 %602
      %604 = vrot.lane.b32.xlu0 %v532, 4
      %v605 = vpop.permute.xlu0 %604
      %606 = vrot.lane.b32.xlu0 %v534, 4
      %v607 = vpop.permute.xlu0 %606
      %608 = vrot.lane.b32.xlu0 %v537, 4
      %v609 = vpop.permute.xlu0 %608
      %610 = vrot.lane.b32.xlu0 %v539, 4
      %v611 = vpop.permute.xlu0 %610
      %612 = vrot.lane.b32.xlu0 %v542, 4
      %v613 = vpop.permute.xlu0 %612
      %614 = vrot.lane.b32.xlu0 %v544, 4
      %v615 = vpop.permute.xlu0 %614
      %616 = vrot.lane.b32.xlu0 %v547, 4
      %v617 = vpop.permute.xlu0 %616
      %618 = vrot.lane.b32.xlu0 %v549, 4
      %v619 = vpop.permute.xlu0 %618
      %620 = vrot.lane.b32.xlu0 %v552, 4
      %v621 = vpop.permute.xlu0 %620
      %622 = vrot.lane.b32.xlu0 %v554, 4
      %v623 = vpop.permute.xlu0 %622
      %624 = vrot.lane.b32.xlu0 %v557, 4
      %v625 = vpop.permute.xlu0 %624
      %626 = vrot.lane.b32.xlu0 %v559, 4
      %v627 = vpop.permute.xlu0 %626
      %628 = vrot.lane.b32.xlu0 %v562, 4
      %v629 = vpop.permute.xlu0 %628
      %630 = vrot.lane.b32.xlu0 %v564, 4
      %v631 = vpop.permute.xlu0 %630
      %632 = vrot.lane.b32.xlu0 %v567, 4
      %v633 = vpop.permute.xlu0 %632
      %634 = vrot.lane.b32.xlu0 %v569, 4
      %v635 = vpop.permute.xlu0 %634
      %636 = vrot.lane.b32.xlu0 %v572, 4
      %v637 = vpop.permute.xlu0 %636
      %638 = vrot.lane.b32.xlu0 %v574, 4
      %v639 = vpop.permute.xlu0 %638
      %640 = vrot.lane.b32.xlu0 %v577, 4
      %v641 = vpop.permute.xlu0 %640
      %642 = vrot.lane.b32.xlu0 %v579, 4
      %v643 = vpop.permute.xlu0 %642
      %vm676 = vcmask 1045504
      %v677 = vrot.slane %v397, 2
      %v678 = vrot.slane %v398, 2
      %v679 = vsel %vm676, %v677, %v678
      %v680 = vrot.slane %v399, 2
      %v681 = vsel %vm676, %v678, %v680
      %v682 = vrot.slane %v400, 2
      %v683 = vrot.slane %v401, 2
      %v684 = vsel %vm676, %v682, %v683
      %v685 = vrot.slane %v402, 2
      %v686 = vsel %vm676, %v683, %v685
      %v687 = vrot.slane %v403, 2
      %v688 = vrot.slane %v404, 2
      %v689 = vsel %vm676, %v687, %v688
      %v690 = vrot.slane %v405, 2
      %v691 = vsel %vm676, %v688, %v690
      %v692 = vrot.slane %v406, 2
      %v693 = vrot.slane %v407, 2
      %v694 = vsel %vm676, %v692, %v693
      %v695 = vrot.slane %v408, 2
      %v696 = vsel %vm676, %v693, %v695
      %v697 = vrot.slane %v409, 2
      %v698 = vrot.slane %v410, 2
      %v699 = vsel %vm676, %v697, %v698
      %v700 = vrot.slane %v411, 2
      %v701 = vsel %vm676, %v698, %v700
      %v702 = vrot.slane %v412, 2
      %v703 = vrot.slane %v413, 2
      %v704 = vsel %vm676, %v702, %v703
      %v705 = vrot.slane %v414, 2
      %v706 = vsel %vm676, %v703, %v705
      %v707 = vrot.slane %v415, 2
      %v708 = vrot.slane %v416, 2
      %v709 = vsel %vm676, %v707, %v708
      %v710 = vrot.slane %v417, 2
      %v711 = vsel %vm676, %v708, %v710
      %v712 = vrot.slane %v418, 2
      %v713 = vrot.slane %v419, 2
      %v714 = vsel %vm676, %v712, %v713
      %v715 = vrot.slane %v420, 2
      %v716 = vsel %vm676, %v713, %v715
      %v717 = vrot.slane %v421, 2
      %v718 = vrot.slane %v422, 2
      %v719 = vsel %vm676, %v717, %v718
      %v720 = vrot.slane %v423, 2
      %v721 = vsel %vm676, %v718, %v720
      %v722 = vrot.slane %v424, 2
      %v723 = vrot.slane %v425, 2
      %v724 = vsel %vm676, %v722, %v723
      %v725 = vrot.slane %v426, 2
      %v726 = vsel %vm676, %v723, %v725
      %v727 = vrot.slane %v427, 2
      %v728 = vrot.slane %v428, 2
      %v729 = vsel %vm676, %v727, %v728
      %v730 = vrot.slane %v429, 2
      %v731 = vsel %vm676, %v728, %v730
      %v732 = vrot.slane %v430, 2
      %v733 = vrot.slane %v431, 2
      %v734 = vsel %vm676, %v732, %v733
      %v735 = vrot.slane %v432, 2
      %v736 = vsel %vm676, %v733, %v735
      %v737 = vrot.slane %v433, 2
      %v738 = vrot.slane %v434, 2
      %v739 = vsel %vm676, %v737, %v738
      %v740 = vrot.slane %v435, 2
      %v741 = vsel %vm676, %v738, %v740
      %v742 = vrot.slane %v436, 2
      %v743 = vrot.slane %v437, 2
      %v744 = vsel %vm676, %v742, %v743
      %v745 = vrot.slane %v438, 2
      %v746 = vsel %vm676, %v743, %v745
      %v747 = vrot.slane %v439, 2
      %v748 = vrot.slane %v440, 2
      %v749 = vsel %vm676, %v747, %v748
      %v750 = vrot.slane %v441, 2
      %v751 = vsel %vm676, %v748, %v750
      %v752 = vrot.slane %v442, 2
      %v753 = vrot.slane %v443, 2
      %v754 = vsel %vm676, %v752, %v753
      %v755 = vrot.slane %v444, 2
      %v756 = vsel %vm676, %v753, %v755
      %757 = vrot.lane.b32.xlu0 %v679, 8
      %v758 = vpop.permute.xlu0 %757
      %759 = vrot.lane.b32.xlu0 %v681, 8
      %v760 = vpop.permute.xlu0 %759
      %761 = vrot.lane.b32.xlu0 %v684, 8
      %v762 = vpop.permute.xlu0 %761
      %763 = vrot.lane.b32.xlu0 %v686, 8
      %v764 = vpop.permute.xlu0 %763
      %765 = vrot.lane.b32.xlu0 %v689, 8
      %v766 = vpop.permute.xlu0 %765
      %767 = vrot.lane.b32.xlu0 %v691, 8
      %v768 = vpop.permute.xlu0 %767
      %769 = vrot.lane.b32.xlu0 %v694, 8
      %v770 = vpop.permute.xlu0 %769
      %771 = vrot.lane.b32.xlu0 %v696, 8
      %v772 = vpop.permute.xlu0 %771
      %773 = vrot.lane.b32.xlu0 %v699, 8
      %v774 = vpop.permute.xlu0 %773
      %775 = vrot.lane.b32.xlu0 %v701, 8
      %v776 = vpop.permute.xlu0 %775
      %777 = vrot.lane.b32.xlu0 %v704, 8
      %v778 = vpop.permute.xlu0 %777
      %779 = vrot.lane.b32.xlu0 %v706, 8
      %v780 = vpop.permute.xlu0 %779
      %781 = vrot.lane.b32.xlu0 %v709, 8
      %v782 = vpop.permute.xlu0 %781
      %783 = vrot.lane.b32.xlu0 %v711, 8
      %v784 = vpop.permute.xlu0 %783
      %785 = vrot.lane.b32.xlu0 %v714, 8
      %v786 = vpop.permute.xlu0 %785
      %787 = vrot.lane.b32.xlu0 %v716, 8
      %v788 = vpop.permute.xlu0 %787
      %789 = vrot.lane.b32.xlu0 %v719, 8
      %v790 = vpop.permute.xlu0 %789
      %791 = vrot.lane.b32.xlu0 %v721, 8
      %v792 = vpop.permute.xlu0 %791
      %793 = vrot.lane.b32.xlu0 %v724, 8
      %v794 = vpop.permute.xlu0 %793
      %795 = vrot.lane.b32.xlu0 %v726, 8
      %v796 = vpop.permute.xlu0 %795
      %797 = vrot.lane.b32.xlu0 %v729, 8
      %v798 = vpop.permute.xlu0 %797
      %799 = vrot.lane.b32.xlu0 %v731, 8
      %v800 = vpop.permute.xlu0 %799
      %801 = vrot.lane.b32.xlu0 %v734, 8
      %v802 = vpop.permute.xlu0 %801
      %803 = vrot.lane.b32.xlu0 %v736, 8
      %v804 = vpop.permute.xlu0 %803
      %805 = vrot.lane.b32.xlu0 %v739, 8
      %v806 = vpop.permute.xlu0 %805
      %807 = vrot.lane.b32.xlu0 %v741, 8
      %v808 = vpop.permute.xlu0 %807
      %809 = vrot.lane.b32.xlu0 %v744, 8
      %v810 = vpop.permute.xlu0 %809
      %811 = vrot.lane.b32.xlu0 %v746, 8
      %v812 = vpop.permute.xlu0 %811
      %813 = vrot.lane.b32.xlu0 %v749, 8
      %v814 = vpop.permute.xlu0 %813
      %815 = vrot.lane.b32.xlu0 %v751, 8
      %v816 = vpop.permute.xlu0 %815
      %817 = vrot.lane.b32.xlu0 %v754, 8
      %v818 = vpop.permute.xlu0 %817
      %819 = vrot.lane.b32.xlu0 %v756, 8
      %v820 = vpop.permute.xlu0 %819
      %855 = vrot.lane.b32.xlu0 %v400, 12
      %v856 = vpop.permute.xlu0 %855
      %857 = vrot.lane.b32.xlu0 %v401, 12
      %v858 = vpop.permute.xlu0 %857
      %859 = vrot.lane.b32.xlu0 %v403, 12
      %v860 = vpop.permute.xlu0 %859
      %861 = vrot.lane.b32.xlu0 %v404, 12
      %v862 = vpop.permute.xlu0 %861
      %863 = vrot.lane.b32.xlu0 %v406, 12
      %v864 = vpop.permute.xlu0 %863
      %865 = vrot.lane.b32.xlu0 %v407, 12
      %v866 = vpop.permute.xlu0 %865
      %867 = vrot.lane.b32.xlu0 %v409, 12
      %v868 = vpop.permute.xlu0 %867
      %869 = vrot.lane.b32.xlu0 %v410, 12
      %v870 = vpop.permute.xlu0 %869
      %871 = vrot.lane.b32.xlu0 %v412, 12
      %v872 = vpop.permute.xlu0 %871
      %873 = vrot.lane.b32.xlu0 %v413, 12
      %v874 = vpop.permute.xlu0 %873
      %875 = vrot.lane.b32.xlu0 %v415, 12
      %v876 = vpop.permute.xlu0 %875
      %877 = vrot.lane.b32.xlu0 %v416, 12
      %v878 = vpop.permute.xlu0 %877
      %879 = vrot.lane.b32.xlu0 %v418, 12
      %v880 = vpop.permute.xlu0 %879
      %881 = vrot.lane.b32.xlu0 %v419, 12
      %v882 = vpop.permute.xlu0 %881
      %883 = vrot.lane.b32.xlu0 %v421, 12
      %v884 = vpop.permute.xlu0 %883
      %885 = vrot.lane.b32.xlu0 %v422, 12
      %v886 = vpop.permute.xlu0 %885
      %887 = vrot.lane.b32.xlu0 %v424, 12
      %v888 = vpop.permute.xlu0 %887
      %889 = vrot.lane.b32.xlu0 %v425, 12
      %v890 = vpop.permute.xlu0 %889
      %891 = vrot.lane.b32.xlu0 %v427, 12
      %v892 = vpop.permute.xlu0 %891
      %893 = vrot.lane.b32.xlu0 %v428, 12
      %v894 = vpop.permute.xlu0 %893
      %895 = vrot.lane.b32.xlu0 %v430, 12
      %v896 = vpop.permute.xlu0 %895
      %897 = vrot.lane.b32.xlu0 %v431, 12
      %v898 = vpop.permute.xlu0 %897
      %899 = vrot.lane.b32.xlu0 %v433, 12
      %v900 = vpop.permute.xlu0 %899
      %901 = vrot.lane.b32.xlu0 %v434, 12
      %v902 = vpop.permute.xlu0 %901
      %903 = vrot.lane.b32.xlu0 %v436, 12
      %v904 = vpop.permute.xlu0 %903
      %905 = vrot.lane.b32.xlu0 %v437, 12
      %v906 = vpop.permute.xlu0 %905
      %907 = vrot.lane.b32.xlu0 %v439, 12
      %v908 = vpop.permute.xlu0 %907
      %909 = vrot.lane.b32.xlu0 %v440, 12
      %v910 = vpop.permute.xlu0 %909
      %911 = vrot.lane.b32.xlu0 %v442, 12
      %v912 = vpop.permute.xlu0 %911
      %913 = vrot.lane.b32.xlu0 %v443, 12
      %v914 = vpop.permute.xlu0 %913
      %915 = vrot.lane.b32.xlu0 %v445, 12
      %v916 = vpop.permute.xlu0 %915
      %917 = vrot.lane.b32.xlu0 %v446, 12
      %v918 = vpop.permute.xlu0 %917
      %v952 = vrot.slane %v445, 1
      %v953 = vrot.slane %v446, 1
      %v954 = vsel %vm499, %v952, %v953
      %v955 = vrot.slane %v447, 1
      %v956 = vsel %vm499, %v953, %v955
      %957 = vrot.lane.b32.xlu0 %v507, 16
      %v958 = vpop.permute.xlu0 %957
      %959 = vrot.lane.b32.xlu0 %v509, 16
      %v960 = vpop.permute.xlu0 %959
      %961 = vrot.lane.b32.xlu0 %v512, 16
      %v962 = vpop.permute.xlu0 %961
      %963 = vrot.lane.b32.xlu0 %v514, 16
      %v964 = vpop.permute.xlu0 %963
      %965 = vrot.lane.b32.xlu0 %v517, 16
      %v966 = vpop.permute.xlu0 %965
      %967 = vrot.lane.b32.xlu0 %v519, 16
      %v968 = vpop.permute.xlu0 %967
      %969 = vrot.lane.b32.xlu0 %v522, 16
      %v970 = vpop.permute.xlu0 %969
      %971 = vrot.lane.b32.xlu0 %v524, 16
      %v972 = vpop.permute.xlu0 %971
      %973 = vrot.lane.b32.xlu0 %v527, 16
      %v974 = vpop.permute.xlu0 %973
      %975 = vrot.lane.b32.xlu0 %v529, 16
      %v976 = vpop.permute.xlu0 %975
      %977 = vrot.lane.b32.xlu0 %v532, 16
      %v978 = vpop.permute.xlu0 %977
      %979 = vrot.lane.b32.xlu0 %v534, 16
      %v980 = vpop.permute.xlu0 %979
      %981 = vrot.lane.b32.xlu0 %v537, 16
      %v982 = vpop.permute.xlu0 %981
      %983 = vrot.lane.b32.xlu0 %v539, 16
      %v984 = vpop.permute.xlu0 %983
      %985 = vrot.lane.b32.xlu0 %v542, 16
      %v986 = vpop.permute.xlu0 %985
      %987 = vrot.lane.b32.xlu0 %v544, 16
      %v988 = vpop.permute.xlu0 %987
      %989 = vrot.lane.b32.xlu0 %v547, 16
      %v990 = vpop.permute.xlu0 %989
      %991 = vrot.lane.b32.xlu0 %v549, 16
      %v992 = vpop.permute.xlu0 %991
      %993 = vrot.lane.b32.xlu0 %v552, 16
      %v994 = vpop.permute.xlu0 %993
      %995 = vrot.lane.b32.xlu0 %v554, 16
      %v996 = vpop.permute.xlu0 %995
      %997 = vrot.lane.b32.xlu0 %v557, 16
      %v998 = vpop.permute.xlu0 %997
      %999 = vrot.lane.b32.xlu0 %v559, 16
      %v1000 = vpop.permute.xlu0 %999
      %1001 = vrot.lane.b32.xlu0 %v562, 16
      %v1002 = vpop.permute.xlu0 %1001
      %1003 = vrot.lane.b32.xlu0 %v564, 16
      %v1004 = vpop.permute.xlu0 %1003
      %1005 = vrot.lane.b32.xlu0 %v567, 16
      %v1006 = vpop.permute.xlu0 %1005
      %1007 = vrot.lane.b32.xlu0 %v569, 16
      %v1008 = vpop.permute.xlu0 %1007
      %1009 = vrot.lane.b32.xlu0 %v572, 16
      %v1010 = vpop.permute.xlu0 %1009
      %1011 = vrot.lane.b32.xlu0 %v574, 16
      %v1012 = vpop.permute.xlu0 %1011
      %1013 = vrot.lane.b32.xlu0 %v577, 16
      %v1014 = vpop.permute.xlu0 %1013
      %1015 = vrot.lane.b32.xlu0 %v579, 16
      %v1016 = vpop.permute.xlu0 %1015
      %1017 = vrot.lane.b32.xlu0 %v954, 16
      %v1018 = vpop.permute.xlu0 %1017
      %1019 = vrot.lane.b32.xlu0 %v956, 16
      %v1020 = vpop.permute.xlu0 %1019
      %v1053 = vrot.slane %v445, 2
      %v1054 = vrot.slane %v446, 2
      %v1055 = vsel %vm676, %v1053, %v1054
      %v1056 = vrot.slane %v447, 2
      %v1057 = vsel %vm676, %v1054, %v1056
      %1058 = vrot.lane.b32.xlu0 %v684, 20
      %v1059 = vpop.permute.xlu0 %1058
      %1060 = vrot.lane.b32.xlu0 %v686, 20
      %v1061 = vpop.permute.xlu0 %1060
      %1062 = vrot.lane.b32.xlu0 %v689, 20
      %v1063 = vpop.permute.xlu0 %1062
      %1064 = vrot.lane.b32.xlu0 %v691, 20
      %v1065 = vpop.permute.xlu0 %1064
      %1066 = vrot.lane.b32.xlu0 %v694, 20
      %v1067 = vpop.permute.xlu0 %1066
      %1068 = vrot.lane.b32.xlu0 %v696, 20
      %v1069 = vpop.permute.xlu0 %1068
      %1070 = vrot.lane.b32.xlu0 %v699, 20
      %v1071 = vpop.permute.xlu0 %1070
      %1072 = vrot.lane.b32.xlu0 %v701, 20
      %v1073 = vpop.permute.xlu0 %1072
      %1074 = vrot.lane.b32.xlu0 %v704, 20
      %v1075 = vpop.permute.xlu0 %1074
      %1076 = vrot.lane.b32.xlu0 %v706, 20
      %v1077 = vpop.permute.xlu0 %1076
      %1078 = vrot.lane.b32.xlu0 %v709, 20
      %v1079 = vpop.permute.xlu0 %1078
      %1080 = vrot.lane.b32.xlu0 %v711, 20
      %v1081 = vpop.permute.xlu0 %1080
      %1082 = vrot.lane.b32.xlu0 %v714, 20
      %v1083 = vpop.permute.xlu0 %1082
      %1084 = vrot.lane.b32.xlu0 %v716, 20
      %v1085 = vpop.permute.xlu0 %1084
      %1086 = vrot.lane.b32.xlu0 %v719, 20
      %v1087 = vpop.permute.xlu0 %1086
      %1088 = vrot.lane.b32.xlu0 %v721, 20
      %v1089 = vpop.permute.xlu0 %1088
      %1090 = vrot.lane.b32.xlu0 %v724, 20
      %v1091 = vpop.permute.xlu0 %1090
      %1092 = vrot.lane.b32.xlu0 %v726, 20
      %v1093 = vpop.permute.xlu0 %1092
      %1094 = vrot.lane.b32.xlu0 %v729, 20
      %v1095 = vpop.permute.xlu0 %1094
      %1096 = vrot.lane.b32.xlu0 %v731, 20
      %v1097 = vpop.permute.xlu0 %1096
      %1098 = vrot.lane.b32.xlu0 %v734, 20
      %v1099 = vpop.permute.xlu0 %1098
      %1100 = vrot.lane.b32.xlu0 %v736, 20
      %v1101 = vpop.permute.xlu0 %1100
      %1102 = vrot.lane.b32.xlu0 %v739, 20
      %v1103 = vpop.permute.xlu0 %1102
      %1104 = vrot.lane.b32.xlu0 %v741, 20
      %v1105 = vpop.permute.xlu0 %1104
      %1106 = vrot.lane.b32.xlu0 %v744, 20
      %v1107 = vpop.permute.xlu0 %1106
      %1108 = vrot.lane.b32.xlu0 %v746, 20
      %v1109 = vpop.permute.xlu0 %1108
      %1110 = vrot.lane.b32.xlu0 %v749, 20
      %v1111 = vpop.permute.xlu0 %1110
      %1112 = vrot.lane.b32.xlu0 %v751, 20
      %v1113 = vpop.permute.xlu0 %1112
      %1114 = vrot.lane.b32.xlu0 %v754, 20
      %v1115 = vpop.permute.xlu0 %1114
      %1116 = vrot.lane.b32.xlu0 %v756, 20
      %v1117 = vpop.permute.xlu0 %1116
      %1118 = vrot.lane.b32.xlu0 %v1055, 20
      %v1119 = vpop.permute.xlu0 %1118
      %1120 = vrot.lane.b32.xlu0 %v1057, 20
      %v1121 = vpop.permute.xlu0 %1120
      %1156 = vrot.lane.b32.xlu0 %v403, 24
      %v1157 = vpop.permute.xlu0 %1156
      %1158 = vrot.lane.b32.xlu0 %v404, 24
      %v1159 = vpop.permute.xlu0 %1158
      %1160 = vrot.lane.b32.xlu0 %v406, 24
      %v1161 = vpop.permute.xlu0 %1160
      %1162 = vrot.lane.b32.xlu0 %v407, 24
      %v1163 = vpop.permute.xlu0 %1162
      %1164 = vrot.lane.b32.xlu0 %v409, 24
      %v1165 = vpop.permute.xlu0 %1164
      %1166 = vrot.lane.b32.xlu0 %v410, 24
      %v1167 = vpop.permute.xlu0 %1166
      %1168 = vrot.lane.b32.xlu0 %v412, 24
      %v1169 = vpop.permute.xlu0 %1168
      %1170 = vrot.lane.b32.xlu0 %v413, 24
      %v1171 = vpop.permute.xlu0 %1170
      %1172 = vrot.lane.b32.xlu0 %v415, 24
      %v1173 = vpop.permute.xlu0 %1172
      %1174 = vrot.lane.b32.xlu0 %v416, 24
      %v1175 = vpop.permute.xlu0 %1174
      %1176 = vrot.lane.b32.xlu0 %v418, 24
      %v1177 = vpop.permute.xlu0 %1176
      %1178 = vrot.lane.b32.xlu0 %v419, 24
      %v1179 = vpop.permute.xlu0 %1178
      %1180 = vrot.lane.b32.xlu0 %v421, 24
      %v1181 = vpop.permute.xlu0 %1180
      %1182 = vrot.lane.b32.xlu0 %v422, 24
      %v1183 = vpop.permute.xlu0 %1182
      %1184 = vrot.lane.b32.xlu0 %v424, 24
      %v1185 = vpop.permute.xlu0 %1184
      %1186 = vrot.lane.b32.xlu0 %v425, 24
      %v1187 = vpop.permute.xlu0 %1186
      %1188 = vrot.lane.b32.xlu0 %v427, 24
      %v1189 = vpop.permute.xlu0 %1188
      %1190 = vrot.lane.b32.xlu0 %v428, 24
      %v1191 = vpop.permute.xlu0 %1190
      %1192 = vrot.lane.b32.xlu0 %v430, 24
      %v1193 = vpop.permute.xlu0 %1192
      %1194 = vrot.lane.b32.xlu0 %v431, 24
      %v1195 = vpop.permute.xlu0 %1194
      %1196 = vrot.lane.b32.xlu0 %v433, 24
      %v1197 = vpop.permute.xlu0 %1196
      %1198 = vrot.lane.b32.xlu0 %v434, 24
      %v1199 = vpop.permute.xlu0 %1198
      %1200 = vrot.lane.b32.xlu0 %v436, 24
      %v1201 = vpop.permute.xlu0 %1200
      %1202 = vrot.lane.b32.xlu0 %v437, 24
      %v1203 = vpop.permute.xlu0 %1202
      %1204 = vrot.lane.b32.xlu0 %v439, 24
      %v1205 = vpop.permute.xlu0 %1204
      %1206 = vrot.lane.b32.xlu0 %v440, 24
      %v1207 = vpop.permute.xlu0 %1206
      %1208 = vrot.lane.b32.xlu0 %v442, 24
      %v1209 = vpop.permute.xlu0 %1208
      %1210 = vrot.lane.b32.xlu0 %v443, 24
      %v1211 = vpop.permute.xlu0 %1210
      %1212 = vrot.lane.b32.xlu0 %v445, 24
      %v1213 = vpop.permute.xlu0 %1212
      %1214 = vrot.lane.b32.xlu0 %v446, 24
      %v1215 = vpop.permute.xlu0 %1214
      %1216 = vrot.lane.b32.xlu0 %v448, 24
      %v1217 = vpop.permute.xlu0 %1216
      %1218 = vrot.lane.b32.xlu0 %v449, 24
      %v1219 = vpop.permute.xlu0 %1218
      %v1253 = vrot.slane %v448, 1
      %v1254 = vrot.slane %v449, 1
      %v1255 = vsel %vm499, %v1253, %v1254
      %v1256 = vrot.slane %v450, 1
      %v1257 = vsel %vm499, %v1254, %v1256
      %1258 = vrot.lane.b32.xlu0 %v512, 28
      %v1259 = vpop.permute.xlu0 %1258
      %1260 = vrot.lane.b32.xlu0 %v514, 28
      %v1261 = vpop.permute.xlu0 %1260
      %1262 = vrot.lane.b32.xlu0 %v517, 28
      %v1263 = vpop.permute.xlu0 %1262
      %1264 = vrot.lane.b32.xlu0 %v519, 28
      %v1265 = vpop.permute.xlu0 %1264
      %1266 = vrot.lane.b32.xlu0 %v522, 28
      %v1267 = vpop.permute.xlu0 %1266
      %1268 = vrot.lane.b32.xlu0 %v524, 28
      %v1269 = vpop.permute.xlu0 %1268
      %1270 = vrot.lane.b32.xlu0 %v527, 28
      %v1271 = vpop.permute.xlu0 %1270
      %1272 = vrot.lane.b32.xlu0 %v529, 28
      %v1273 = vpop.permute.xlu0 %1272
      %1274 = vrot.lane.b32.xlu0 %v532, 28
      %v1275 = vpop.permute.xlu0 %1274
      %1276 = vrot.lane.b32.xlu0 %v534, 28
      %v1277 = vpop.permute.xlu0 %1276
      %1278 = vrot.lane.b32.xlu0 %v537, 28
      %v1279 = vpop.permute.xlu0 %1278
      %1280 = vrot.lane.b32.xlu0 %v539, 28
      %v1281 = vpop.permute.xlu0 %1280
      %1282 = vrot.lane.b32.xlu0 %v542, 28
      %v1283 = vpop.permute.xlu0 %1282
      %1284 = vrot.lane.b32.xlu0 %v544, 28
      %v1285 = vpop.permute.xlu0 %1284
      %1286 = vrot.lane.b32.xlu0 %v547, 28
      %v1287 = vpop.permute.xlu0 %1286
      %1288 = vrot.lane.b32.xlu0 %v549, 28
      %v1289 = vpop.permute.xlu0 %1288
      %1290 = vrot.lane.b32.xlu0 %v552, 28
      %v1291 = vpop.permute.xlu0 %1290
      %1292 = vrot.lane.b32.xlu0 %v554, 28
      %v1293 = vpop.permute.xlu0 %1292
      %1294 = vrot.lane.b32.xlu0 %v557, 28
      %v1295 = vpop.permute.xlu0 %1294
      %1296 = vrot.lane.b32.xlu0 %v559, 28
      %v1297 = vpop.permute.xlu0 %1296
      %1298 = vrot.lane.b32.xlu0 %v562, 28
      %v1299 = vpop.permute.xlu0 %1298
      %1300 = vrot.lane.b32.xlu0 %v564, 28
      %v1301 = vpop.permute.xlu0 %1300
      %1302 = vrot.lane.b32.xlu0 %v567, 28
      %v1303 = vpop.permute.xlu0 %1302
      %1304 = vrot.lane.b32.xlu0 %v569, 28
      %v1305 = vpop.permute.xlu0 %1304
      %1306 = vrot.lane.b32.xlu0 %v572, 28
      %v1307 = vpop.permute.xlu0 %1306
      %1308 = vrot.lane.b32.xlu0 %v574, 28
      %v1309 = vpop.permute.xlu0 %1308
      %1310 = vrot.lane.b32.xlu0 %v577, 28
      %v1311 = vpop.permute.xlu0 %1310
      %1312 = vrot.lane.b32.xlu0 %v579, 28
      %v1313 = vpop.permute.xlu0 %1312
      %1314 = vrot.lane.b32.xlu0 %v954, 28
      %v1315 = vpop.permute.xlu0 %1314
      %1316 = vrot.lane.b32.xlu0 %v956, 28
      %v1317 = vpop.permute.xlu0 %1316
      %1318 = vrot.lane.b32.xlu0 %v1255, 28
      %v1319 = vpop.permute.xlu0 %1318
      %1320 = vrot.lane.b32.xlu0 %v1257, 28
      %v1321 = vpop.permute.xlu0 %1320
      %v1354 = vrot.slane %v448, 2
      %v1355 = vrot.slane %v449, 2
      %v1356 = vsel %vm676, %v1354, %v1355
      %v1357 = vrot.slane %v450, 2
      %v1358 = vsel %vm676, %v1355, %v1357
      %1359 = vrot.lane.b32.xlu0 %v689, 32
      %v1360 = vpop.permute.xlu0 %1359
      %1361 = vrot.lane.b32.xlu0 %v691, 32
      %v1362 = vpop.permute.xlu0 %1361
      %1363 = vrot.lane.b32.xlu0 %v694, 32
      %v1364 = vpop.permute.xlu0 %1363
      %1365 = vrot.lane.b32.xlu0 %v696, 32
      %v1366 = vpop.permute.xlu0 %1365
      %1367 = vrot.lane.b32.xlu0 %v699, 32
      %v1368 = vpop.permute.xlu0 %1367
      %1369 = vrot.lane.b32.xlu0 %v701, 32
      %v1370 = vpop.permute.xlu0 %1369
      %1371 = vrot.lane.b32.xlu0 %v704, 32
      %v1372 = vpop.permute.xlu0 %1371
      %1373 = vrot.lane.b32.xlu0 %v706, 32
      %v1374 = vpop.permute.xlu0 %1373
      %1375 = vrot.lane.b32.xlu0 %v709, 32
      %v1376 = vpop.permute.xlu0 %1375
      %1377 = vrot.lane.b32.xlu0 %v711, 32
      %v1378 = vpop.permute.xlu0 %1377
      %1379 = vrot.lane.b32.xlu0 %v714, 32
      %v1380 = vpop.permute.xlu0 %1379
      %1381 = vrot.lane.b32.xlu0 %v716, 32
      %v1382 = vpop.permute.xlu0 %1381
      %1383 = vrot.lane.b32.xlu0 %v719, 32
      %v1384 = vpop.permute.xlu0 %1383
      %1385 = vrot.lane.b32.xlu0 %v721, 32
      %v1386 = vpop.permute.xlu0 %1385
      %1387 = vrot.lane.b32.xlu0 %v724, 32
      %v1388 = vpop.permute.xlu0 %1387
      %1389 = vrot.lane.b32.xlu0 %v726, 32
      %v1390 = vpop.permute.xlu0 %1389
      %1391 = vrot.lane.b32.xlu0 %v729, 32
      %v1392 = vpop.permute.xlu0 %1391
      %1393 = vrot.lane.b32.xlu0 %v731, 32
      %v1394 = vpop.permute.xlu0 %1393
      %1395 = vrot.lane.b32.xlu0 %v734, 32
      %v1396 = vpop.permute.xlu0 %1395
      %1397 = vrot.lane.b32.xlu0 %v736, 32
      %v1398 = vpop.permute.xlu0 %1397
      %1399 = vrot.lane.b32.xlu0 %v739, 32
      %v1400 = vpop.permute.xlu0 %1399
      %1401 = vrot.lane.b32.xlu0 %v741, 32
      %v1402 = vpop.permute.xlu0 %1401
      %1403 = vrot.lane.b32.xlu0 %v744, 32
      %v1404 = vpop.permute.xlu0 %1403
      %1405 = vrot.lane.b32.xlu0 %v746, 32
      %v1406 = vpop.permute.xlu0 %1405
      %1407 = vrot.lane.b32.xlu0 %v749, 32
      %v1408 = vpop.permute.xlu0 %1407
      %1409 = vrot.lane.b32.xlu0 %v751, 32
      %v1410 = vpop.permute.xlu0 %1409
      %1411 = vrot.lane.b32.xlu0 %v754, 32
      %v1412 = vpop.permute.xlu0 %1411
      %1413 = vrot.lane.b32.xlu0 %v756, 32
      %v1414 = vpop.permute.xlu0 %1413
      %1415 = vrot.lane.b32.xlu0 %v1055, 32
      %v1416 = vpop.permute.xlu0 %1415
      %1417 = vrot.lane.b32.xlu0 %v1057, 32
      %v1418 = vpop.permute.xlu0 %1417
      %1419 = vrot.lane.b32.xlu0 %v1356, 32
      %v1420 = vpop.permute.xlu0 %1419
      %1421 = vrot.lane.b32.xlu0 %v1358, 32
      %v1422 = vpop.permute.xlu0 %1421
      %v1455 = vsel %vm286, %v397, %v581
      %v1456 = vsel %vm286, %v398, %v583
      %v1457 = vsel %vm286, %v400, %v585
      %v1458 = vsel %vm286, %v401, %v587
      %v1459 = vsel %vm286, %v403, %v589
      %v1460 = vsel %vm286, %v404, %v591
      %v1461 = vsel %vm286, %v406, %v593
      %v1462 = vsel %vm286, %v407, %v595
      %v1463 = vsel %vm286, %v409, %v597
      %v1464 = vsel %vm286, %v410, %v599
      %v1465 = vsel %vm286, %v412, %v601
      %v1466 = vsel %vm286, %v413, %v603
      %v1467 = vsel %vm286, %v415, %v605
      %v1468 = vsel %vm286, %v416, %v607
      %v1469 = vsel %vm286, %v418, %v609
      %v1470 = vsel %vm286, %v419, %v611
      %v1471 = vsel %vm286, %v421, %v613
      %v1472 = vsel %vm286, %v422, %v615
      %v1473 = vsel %vm286, %v424, %v617
      %v1474 = vsel %vm286, %v425, %v619
      %v1475 = vsel %vm286, %v427, %v621
      %v1476 = vsel %vm286, %v428, %v623
      %v1477 = vsel %vm286, %v430, %v625
      %v1478 = vsel %vm286, %v431, %v627
      %v1479 = vsel %vm286, %v433, %v629
      %v1480 = vsel %vm286, %v434, %v631
      %v1481 = vsel %vm286, %v436, %v633
      %v1482 = vsel %vm286, %v437, %v635
      %v1483 = vsel %vm286, %v439, %v637
      %v1484 = vsel %vm286, %v440, %v639
      %v1485 = vsel %vm286, %v442, %v641
      %v1486 = vsel %vm286, %v443, %v643
      %vm1487 = vcmask 64512
      %v1488 = vsel %vm1487, %v1455, %v758
      %v1489 = vsel %vm1487, %v1456, %v760
      %v1490 = vsel %vm1487, %v1457, %v762
      %v1491 = vsel %vm1487, %v1458, %v764
      %v1492 = vsel %vm1487, %v1459, %v766
      %v1493 = vsel %vm1487, %v1460, %v768
      %v1494 = vsel %vm1487, %v1461, %v770
      %v1495 = vsel %vm1487, %v1462, %v772
      %v1496 = vsel %vm1487, %v1463, %v774
      %v1497 = vsel %vm1487, %v1464, %v776
      %v1498 = vsel %vm1487, %v1465, %v778
      %v1499 = vsel %vm1487, %v1466, %v780
      %v1500 = vsel %vm1487, %v1467, %v782
      %v1501 = vsel %vm1487, %v1468, %v784
      %v1502 = vsel %vm1487, %v1469, %v786
      %v1503 = vsel %vm1487, %v1470, %v788
      %v1504 = vsel %vm1487, %v1471, %v790
      %v1505 = vsel %vm1487, %v1472, %v792
      %v1506 = vsel %vm1487, %v1473, %v794
      %v1507 = vsel %vm1487, %v1474, %v796
      %v1508 = vsel %vm1487, %v1475, %v798
      %v1509 = vsel %vm1487, %v1476, %v800
      %v1510 = vsel %vm1487, %v1477, %v802
      %v1511 = vsel %vm1487, %v1478, %v804
      %v1512 = vsel %vm1487, %v1479, %v806
      %v1513 = vsel %vm1487, %v1480, %v808
      %v1514 = vsel %vm1487, %v1481, %v810
      %v1515 = vsel %vm1487, %v1482, %v812
      %v1516 = vsel %vm1487, %v1483, %v814
      %v1517 = vsel %vm1487, %v1484, %v816
      %v1518 = vsel %vm1487, %v1485, %v818
      %v1519 = vsel %vm1487, %v1486, %v820
      %vm1520 = vcmask 97280
      %v1521 = vsel %vm1520, %v1488, %v856
      %v1522 = vsel %vm1520, %v1489, %v858
      %v1523 = vsel %vm1520, %v1490, %v860
      %v1524 = vsel %vm1520, %v1491, %v862
      %v1525 = vsel %vm1520, %v1492, %v864
      %v1526 = vsel %vm1520, %v1493, %v866
      %v1527 = vsel %vm1520, %v1494, %v868
      %v1528 = vsel %vm1520, %v1495, %v870
      %v1529 = vsel %vm1520, %v1496, %v872
      %v1530 = vsel %vm1520, %v1497, %v874
      %v1531 = vsel %vm1520, %v1498, %v876
      %v1532 = vsel %vm1520, %v1499, %v878
      %v1533 = vsel %vm1520, %v1500, %v880
      %v1534 = vsel %vm1520, %v1501, %v882
      %v1535 = vsel %vm1520, %v1502, %v884
      %v1536 = vsel %vm1520, %v1503, %v886
      %v1537 = vsel %vm1520, %v1504, %v888
      %v1538 = vsel %vm1520, %v1505, %v890
      %v1539 = vsel %vm1520, %v1506, %v892
      %v1540 = vsel %vm1520, %v1507, %v894
      %v1541 = vsel %vm1520, %v1508, %v896
      %v1542 = vsel %vm1520, %v1509, %v898
      %v1543 = vsel %vm1520, %v1510, %v900
      %v1544 = vsel %vm1520, %v1511, %v902
      %v1545 = vsel %vm1520, %v1512, %v904
      %v1546 = vsel %vm1520, %v1513, %v906
      %v1547 = vsel %vm1520, %v1514, %v908
      %v1548 = vsel %vm1520, %v1515, %v910
      %v1549 = vsel %vm1520, %v1516, %v912
      %v1550 = vsel %vm1520, %v1517, %v914
      %v1551 = vsel %vm1520, %v1518, %v916
      %v1552 = vsel %vm1520, %v1519, %v918
      %vm1553 = vcmask 130048
      %v1554 = vsel %vm1553, %v1521, %v958
      %v1555 = vsel %vm1553, %v1522, %v960
      %v1556 = vsel %vm1553, %v1523, %v962
      %v1557 = vsel %vm1553, %v1524, %v964
      %v1558 = vsel %vm1553, %v1525, %v966
      %v1559 = vsel %vm1553, %v1526, %v968
      %v1560 = vsel %vm1553, %v1527, %v970
      %v1561 = vsel %vm1553, %v1528, %v972
      %v1562 = vsel %vm1553, %v1529, %v974
      %v1563 = vsel %vm1553, %v1530, %v976
      %v1564 = vsel %vm1553, %v1531, %v978
      %v1565 = vsel %vm1553, %v1532, %v980
      %v1566 = vsel %vm1553, %v1533, %v982
      %v1567 = vsel %vm1553, %v1534, %v984
      %v1568 = vsel %vm1553, %v1535, %v986
      %v1569 = vsel %vm1553, %v1536, %v988
      %v1570 = vsel %vm1553, %v1537, %v990
      %v1571 = vsel %vm1553, %v1538, %v992
      %v1572 = vsel %vm1553, %v1539, %v994
      %v1573 = vsel %vm1553, %v1540, %v996
      %v1574 = vsel %vm1553, %v1541, %v998
      %v1575 = vsel %vm1553, %v1542, %v1000
      %v1576 = vsel %vm1553, %v1543, %v1002
      %v1577 = vsel %vm1553, %v1544, %v1004
      %v1578 = vsel %vm1553, %v1545, %v1006
      %v1579 = vsel %vm1553, %v1546, %v1008
      %v1580 = vsel %vm1553, %v1547, %v1010
      %v1581 = vsel %vm1553, %v1548, %v1012
      %v1582 = vsel %vm1553, %v1549, %v1014
      %v1583 = vsel %vm1553, %v1550, %v1016
      %v1584 = vsel %vm1553, %v1551, %v1018
      %v1585 = vsel %vm1553, %v1552, %v1020
      %vm1586 = vcmask 162816
      %v1587 = vsel %vm1586, %v1554, %v1059
      %v1588 = vsel %vm1586, %v1555, %v1061
      %v1589 = vsel %vm1586, %v1556, %v1063
      %v1590 = vsel %vm1586, %v1557, %v1065
      %v1591 = vsel %vm1586, %v1558, %v1067
      %v1592 = vsel %vm1586, %v1559, %v1069
      %v1593 = vsel %vm1586, %v1560, %v1071
      %v1594 = vsel %vm1586, %v1561, %v1073
      %v1595 = vsel %vm1586, %v1562, %v1075
      %v1596 = vsel %vm1586, %v1563, %v1077
      %v1597 = vsel %vm1586, %v1564, %v1079
      %v1598 = vsel %vm1586, %v1565, %v1081
      %v1599 = vsel %vm1586, %v1566, %v1083
      %v1600 = vsel %vm1586, %v1567, %v1085
      %v1601 = vsel %vm1586, %v1568, %v1087
      %v1602 = vsel %vm1586, %v1569, %v1089
      %v1603 = vsel %vm1586, %v1570, %v1091
      %v1604 = vsel %vm1586, %v1571, %v1093
      %v1605 = vsel %vm1586, %v1572, %v1095
      %v1606 = vsel %vm1586, %v1573, %v1097
      %v1607 = vsel %vm1586, %v1574, %v1099
      %v1608 = vsel %vm1586, %v1575, %v1101
      %v1609 = vsel %vm1586, %v1576, %v1103
      %v1610 = vsel %vm1586, %v1577, %v1105
      %v1611 = vsel %vm1586, %v1578, %v1107
      %v1612 = vsel %vm1586, %v1579, %v1109
      %v1613 = vsel %vm1586, %v1580, %v1111
      %v1614 = vsel %vm1586, %v1581, %v1113
      %v1615 = vsel %vm1586, %v1582, %v1115
      %v1616 = vsel %vm1586, %v1583, %v1117
      %v1617 = vsel %vm1586, %v1584, %v1119
      %v1618 = vsel %vm1586, %v1585, %v1121
      %vm1619 = vcmask 195584
      %v1620 = vsel %vm1619, %v1587, %v1157
      %v1621 = vsel %vm1619, %v1588, %v1159
      %v1622 = vsel %vm1619, %v1589, %v1161
      %v1623 = vsel %vm1619, %v1590, %v1163
      %v1624 = vsel %vm1619, %v1591, %v1165
      %v1625 = vsel %vm1619, %v1592, %v1167
      %v1626 = vsel %vm1619, %v1593, %v1169
      %v1627 = vsel %vm1619, %v1594, %v1171
      %v1628 = vsel %vm1619, %v1595, %v1173
      %v1629 = vsel %vm1619, %v1596, %v1175
      %v1630 = vsel %vm1619, %v1597, %v1177
      %v1631 = vsel %vm1619, %v1598, %v1179
      %v1632 = vsel %vm1619, %v1599, %v1181
      %v1633 = vsel %vm1619, %v1600, %v1183
      %v1634 = vsel %vm1619, %v1601, %v1185
      %v1635 = vsel %vm1619, %v1602, %v1187
      %v1636 = vsel %vm1619, %v1603, %v1189
      %v1637 = vsel %vm1619, %v1604, %v1191
      %v1638 = vsel %vm1619, %v1605, %v1193
      %v1639 = vsel %vm1619, %v1606, %v1195
      %v1640 = vsel %vm1619, %v1607, %v1197
      %v1641 = vsel %vm1619, %v1608, %v1199
      %v1642 = vsel %vm1619, %v1609, %v1201
      %v1643 = vsel %vm1619, %v1610, %v1203
      %v1644 = vsel %vm1619, %v1611, %v1205
      %v1645 = vsel %vm1619, %v1612, %v1207
      %v1646 = vsel %vm1619, %v1613, %v1209
      %v1647 = vsel %vm1619, %v1614, %v1211
      %v1648 = vsel %vm1619, %v1615, %v1213
      %v1649 = vsel %vm1619, %v1616, %v1215
      %v1650 = vsel %vm1619, %v1617, %v1217
      %v1651 = vsel %vm1619, %v1618, %v1219
      %vm1652 = vcmask 228352
      %v1653 = vsel %vm1652, %v1620, %v1259
      %v1654 = vsel %vm1652, %v1621, %v1261
      %v1655 = vsel %vm1652, %v1622, %v1263
      %v1656 = vsel %vm1652, %v1623, %v1265
      %v1657 = vsel %vm1652, %v1624, %v1267
      %v1658 = vsel %vm1652, %v1625, %v1269
      %v1659 = vsel %vm1652, %v1626, %v1271
      %v1660 = vsel %vm1652, %v1627, %v1273
      %v1661 = vsel %vm1652, %v1628, %v1275
      %v1662 = vsel %vm1652, %v1629, %v1277
      %v1663 = vsel %vm1652, %v1630, %v1279
      %v1664 = vsel %vm1652, %v1631, %v1281
      %v1665 = vsel %vm1652, %v1632, %v1283
      %v1666 = vsel %vm1652, %v1633, %v1285
      %v1667 = vsel %vm1652, %v1634, %v1287
      %v1668 = vsel %vm1652, %v1635, %v1289
      %v1669 = vsel %vm1652, %v1636, %v1291
      %v1670 = vsel %vm1652, %v1637, %v1293
      %v1671 = vsel %vm1652, %v1638, %v1295
      %v1672 = vsel %vm1652, %v1639, %v1297
      %v1673 = vsel %vm1652, %v1640, %v1299
      %v1674 = vsel %vm1652, %v1641, %v1301
      %v1675 = vsel %vm1652, %v1642, %v1303
      %v1676 = vsel %vm1652, %v1643, %v1305
      %v1677 = vsel %vm1652, %v1644, %v1307
      %v1678 = vsel %vm1652, %v1645, %v1309
      %v1679 = vsel %vm1652, %v1646, %v1311
      %v1680 = vsel %vm1652, %v1647, %v1313
      %v1681 = vsel %vm1652, %v1648, %v1315
      %v1682 = vsel %vm1652, %v1649, %v1317
      %v1683 = vsel %vm1652, %v1650, %v1319
      %v1684 = vsel %vm1652, %v1651, %v1321
      %vm1685 = vcmask 261120
      %v1686 = vsel %vm1685, %v1653, %v1360
      %v1687 = vsel %vm1685, %v1654, %v1362
      %v1688 = vsel %vm1685, %v1655, %v1364
      %v1689 = vsel %vm1685, %v1656, %v1366
      %v1690 = vsel %vm1685, %v1657, %v1368
      %v1691 = vsel %vm1685, %v1658, %v1370
      %v1692 = vsel %vm1685, %v1659, %v1372
      %v1693 = vsel %vm1685, %v1660, %v1374
      %v1694 = vsel %vm1685, %v1661, %v1376
      %v1695 = vsel %vm1685, %v1662, %v1378
      %v1696 = vsel %vm1685, %v1663, %v1380
      %v1697 = vsel %vm1685, %v1664, %v1382
      %v1698 = vsel %vm1685, %v1665, %v1384
      %v1699 = vsel %vm1685, %v1666, %v1386
      %v1700 = vsel %vm1685, %v1667, %v1388
      %v1701 = vsel %vm1685, %v1668, %v1390
      %v1702 = vsel %vm1685, %v1669, %v1392
      %v1703 = vsel %vm1685, %v1670, %v1394
      %v1704 = vsel %vm1685, %v1671, %v1396
      %v1705 = vsel %vm1685, %v1672, %v1398
      %v1706 = vsel %vm1685, %v1673, %v1400
      %v1707 = vsel %vm1685, %v1674, %v1402
      %v1708 = vsel %vm1685, %v1675, %v1404
      %v1709 = vsel %vm1685, %v1676, %v1406
      %v1710 = vsel %vm1685, %v1677, %v1408
      %v1711 = vsel %vm1685, %v1678, %v1410
      %v1712 = vsel %vm1685, %v1679, %v1412
      %v1713 = vsel %vm1685, %v1680, %v1414
      %v1714 = vsel %vm1685, %v1681, %v1416
      %v1715 = vsel %vm1685, %v1682, %v1418
      %v1716 = vsel %vm1685, %v1683, %v1420
      %v1717 = vsel %vm1685, %v1684, %v1422
      %v1718 = vpack.c.bf16 %v1687, %v1686
      %v1719 = vpack.c.bf16 %v1689, %v1688
      %v1720 = vpack.c.bf16 %v1691, %v1690
      %v1721 = vpack.c.bf16 %v1693, %v1692
      %v1722 = vpack.c.bf16 %v1695, %v1694
      %v1723 = vpack.c.bf16 %v1697, %v1696
      %v1724 = vpack.c.bf16 %v1699, %v1698
      %v1725 = vpack.c.bf16 %v1701, %v1700
      %v1726 = vpack.c.bf16 %v1703, %v1702
      %v1727 = vpack.c.bf16 %v1705, %v1704
      %v1728 = vpack.c.bf16 %v1707, %v1706
      %v1729 = vpack.c.bf16 %v1709, %v1708
      %v1730 = vpack.c.bf16 %v1711, %v1710
      %v1731 = vpack.c.bf16 %v1713, %v1712
      %v1732 = vpack.c.bf16 %v1715, %v1714
      %v1733 = vpack.c.bf16 %v1717, %v1716
      %v1734 = vld [vmem:[%s1] sm:$0xf]
      %v1735 = vld [vmem:[%s1 + $0x4] sm:$0xf]
      %v1736 = vld [vmem:[%s1 + $0x8] sm:$0xf]
      %v1737 = vld [vmem:[%s1 + $0xc] sm:$0xf]
      %v1738 = vld [vmem:[%s1 + $0x10] sm:$0x3]
      %v1744 = vunpack.c.l.b16 %v1734
      %v1745 = vunpack.c.l.b16 %v1735
      %v1746 = vunpack.c.l.b16 %v1736
      %v1747 = vunpack.c.l.b16 %v1737
      %v1748 = vunpack.c.l.b16 %v1738
      %v1749 = vpack.c.b16 %v1745, %v1744
      %v1750 = vpack.c.b16 %v1747, %v1746
      %v1751 = vpack.c.b16 %v1748, %v1748
      %vm1754 = vcmask 293888
      %v1756 = vsel %vm1754, %v1718, 0
      %v1759 = vsel %vm1754, %v1719, 0
      %v1762 = vsel %vm1754, %v1720, 0
      %v1765 = vsel %vm1754, %v1721, 0
      %v1768 = vsel %vm1754, %v1722, 0
      %v1771 = vsel %vm1754, %v1723, 0
      %v1774 = vsel %vm1754, %v1724, 0
      %v1777 = vsel %vm1754, %v1725, 0
      %v1780 = vsel %vm1754, %v1726, 0
      %v1783 = vsel %vm1754, %v1727, 0
      %v1786 = vsel %vm1754, %v1728, 0
      %v1789 = vsel %vm1754, %v1729, 0
      %v1792 = vsel %vm1754, %v1730, 0
      %v1795 = vsel %vm1754, %v1731, 0
      %v1798 = vsel %vm1754, %v1732, 0
      %v1801 = vsel %vm1754, %v1733, 0
      %vm1803 = vcmask 1041408
      %v1805 = vsel %vm1803, %v1751, 0
      %1807 = vmatprep.subr.bf16.mxu0 0
      %1808 = vmatpush1.bf16.msra.mxu0 0
      %1809 = vmatprep.subr.bf16.mxu0 0
      %1810 = vmatpush1.bf16.msra.mxu0 0
      %1811 = vmatprep.subr.bf16.mxu0 0
      %1812 = vmatpush1.bf16.msra.mxu0 0
      %1813 = vmatprep.subr.bf16.mxu0 0
      %1814 = vmatpush1.bf16.msra.mxu0 0
      %1815 = vmatprep.subr.bf16.mxu0 0
      %1816 = vmatpush1.bf16.msra.mxu0 0
      %1817 = vmatprep.subr.bf16.mxu0 0
      %1818 = vmatpush1.bf16.msra.mxu0 %v1805
      %1819 = vmatprep.subr.bf16.mxu0 0
      %1820 = vmatpush1.bf16.msra.mxu0 %v1750
      %1821 = vmatprep.subr.bf16.mxu0 0
      %1822 = vmatpush1.bf16.msra.mxu0 %v1749
      %1823 = vmatprep.subr.bf16.mxu0 0
      %1824 = vmatpush2.bf16.msra.mxu0 0
      %1825 = vmatprep.subr.bf16.mxu0 0
      %1826 = vmatpush2.bf16.msra.mxu0 0
      %1827 = vmatprep.subr.bf16.mxu0 0
      %1828 = vmatpush2.bf16.msra.mxu0 0
      %1829 = vmatprep.subr.bf16.mxu0 0
      %1830 = vmatpush2.bf16.msra.mxu0 0
      %1831 = vmatprep.subr.bf16.mxu0 0
      %1832 = vmatpush2.bf16.msra.mxu0 0
      %1833 = vmatprep.subr.bf16.mxu0 0
      %1834 = vmatpush2.bf16.msra.mxu0 0
      %1835 = vmatprep.subr.bf16.mxu0 0
      %1836 = vmatpush2.bf16.msra.mxu0 0
      %1837 = vmatprep.subr.bf16.mxu0 0
      %1838 = vmatpush2.bf16.msra.mxu0 0
      %1839 = vmatprep.mubr.bf16.mxu0 0
      %1840 = vmatmul.mubr.bf16.gmra.mxu0 %v1756
      %v1841 = vpop.f32.mrf.mxu0
      %v1842 = vadd.f32 0.0, %v1841
      %v1843 = vpop.f32.mrf.mxu0
      %v1844 = vpop.f32.mrf.mxu0
      %v1845 = vadd.f32 0.0, %v1844
      %v1846 = vpop.f32.mrf.mxu0
      %1847 = vmatprep.mubr.bf16.mxu0 0
      %1848 = vmatmul.mubr.bf16.gmra.mxu0 %v1759
      %v1849 = vpop.f32.mrf.mxu0
      %v1850 = vadd.f32 0.0, %v1849
      %v1851 = vpop.f32.mrf.mxu0
      %v1852 = vpop.f32.mrf.mxu0
      %v1853 = vadd.f32 0.0, %v1852
      %v1854 = vpop.f32.mrf.mxu0
      %1855 = vmatprep.mubr.bf16.mxu0 0
      %1856 = vmatmul.mubr.bf16.gmra.mxu0 %v1762
      %v1857 = vpop.f32.mrf.mxu0
      %v1858 = vadd.f32 0.0, %v1857
      %v1859 = vpop.f32.mrf.mxu0
      %v1860 = vpop.f32.mrf.mxu0
      %v1861 = vadd.f32 0.0, %v1860
      %v1862 = vpop.f32.mrf.mxu0
      %1863 = vmatprep.mubr.bf16.mxu0 0
      %1864 = vmatmul.mubr.bf16.gmra.mxu0 %v1765
      %v1865 = vpop.f32.mrf.mxu0
      %v1866 = vadd.f32 0.0, %v1865
      %v1867 = vpop.f32.mrf.mxu0
      %v1868 = vpop.f32.mrf.mxu0
      %v1869 = vadd.f32 0.0, %v1868
      %v1870 = vpop.f32.mrf.mxu0
      %1871 = vmatprep.mubr.bf16.mxu0 0
      %1872 = vmatmul.mubr.bf16.gmra.mxu0 %v1768
      %v1873 = vpop.f32.mrf.mxu0
      %v1874 = vadd.f32 0.0, %v1873
      %v1875 = vpop.f32.mrf.mxu0
      %v1876 = vpop.f32.mrf.mxu0
      %v1877 = vadd.f32 0.0, %v1876
      %v1878 = vpop.f32.mrf.mxu0
      %1879 = vmatprep.mubr.bf16.mxu0 0
      %1880 = vmatmul.mubr.bf16.gmra.mxu0 %v1771
      %v1881 = vpop.f32.mrf.mxu0
      %v1882 = vadd.f32 0.0, %v1881
      %v1883 = vpop.f32.mrf.mxu0
      %v1884 = vpop.f32.mrf.mxu0
      %v1885 = vadd.f32 0.0, %v1884
      %v1886 = vpop.f32.mrf.mxu0
      %1887 = vmatprep.mubr.bf16.mxu0 0
      %1888 = vmatmul.mubr.bf16.gmra.mxu0 %v1774
      %v1889 = vpop.f32.mrf.mxu0
      %v1890 = vadd.f32 0.0, %v1889
      %v1891 = vpop.f32.mrf.mxu0
      %v1892 = vpop.f32.mrf.mxu0
      %v1893 = vadd.f32 0.0, %v1892
      %v1894 = vpop.f32.mrf.mxu0
      %1895 = vmatprep.mubr.bf16.mxu0 0
      %1896 = vmatmul.mubr.bf16.gmra.mxu0 %v1777
      %v1897 = vpop.f32.mrf.mxu0
      %v1898 = vadd.f32 0.0, %v1897
      %v1899 = vpop.f32.mrf.mxu0
      %v1900 = vpop.f32.mrf.mxu0
      %v1901 = vadd.f32 0.0, %v1900
      %v1902 = vpop.f32.mrf.mxu0
      %1903 = vmatprep.mubr.bf16.mxu0 0
      %1904 = vmatmul.mubr.bf16.gmra.mxu0 %v1780
      %v1905 = vpop.f32.mrf.mxu0
      %v1906 = vadd.f32 0.0, %v1905
      %v1907 = vpop.f32.mrf.mxu0
      %v1908 = vpop.f32.mrf.mxu0
      %v1909 = vadd.f32 0.0, %v1908
      %v1910 = vpop.f32.mrf.mxu0
      %1911 = vmatprep.mubr.bf16.mxu0 0
      %1912 = vmatmul.mubr.bf16.gmra.mxu0 %v1783
      %v1913 = vpop.f32.mrf.mxu0
      %v1914 = vadd.f32 0.0, %v1913
      %v1915 = vpop.f32.mrf.mxu0
      %v1916 = vpop.f32.mrf.mxu0
      %v1917 = vadd.f32 0.0, %v1916
      %v1918 = vpop.f32.mrf.mxu0
      %1919 = vmatprep.mubr.bf16.mxu0 0
      %1920 = vmatmul.mubr.bf16.gmra.mxu0 %v1786
      %v1921 = vpop.f32.mrf.mxu0
      %v1922 = vadd.f32 0.0, %v1921
      %v1923 = vpop.f32.mrf.mxu0
      %v1924 = vpop.f32.mrf.mxu0
      %v1925 = vadd.f32 0.0, %v1924
      %v1926 = vpop.f32.mrf.mxu0
      %1927 = vmatprep.mubr.bf16.mxu0 0
      %1928 = vmatmul.mubr.bf16.gmra.mxu0 %v1789
      %v1929 = vpop.f32.mrf.mxu0
      %v1930 = vadd.f32 0.0, %v1929
      %v1931 = vpop.f32.mrf.mxu0
      %v1932 = vpop.f32.mrf.mxu0
      %v1933 = vadd.f32 0.0, %v1932
      %v1934 = vpop.f32.mrf.mxu0
      %1935 = vmatprep.mubr.bf16.mxu0 0
      %1936 = vmatmul.mubr.bf16.gmra.mxu0 %v1792
      %v1937 = vpop.f32.mrf.mxu0
      %v1938 = vadd.f32 0.0, %v1937
      %v1939 = vpop.f32.mrf.mxu0
      %v1940 = vpop.f32.mrf.mxu0
      %v1941 = vadd.f32 0.0, %v1940
      %v1942 = vpop.f32.mrf.mxu0
      %1943 = vmatprep.mubr.bf16.mxu0 0
      %1944 = vmatmul.mubr.bf16.gmra.mxu0 %v1795
      %v1945 = vpop.f32.mrf.mxu0
      %v1946 = vadd.f32 0.0, %v1945
      %v1947 = vpop.f32.mrf.mxu0
      %v1948 = vpop.f32.mrf.mxu0
      %v1949 = vadd.f32 0.0, %v1948
      %v1950 = vpop.f32.mrf.mxu0
      %1951 = vmatprep.mubr.bf16.mxu0 0
      %1952 = vmatmul.mubr.bf16.gmra.mxu0 %v1798
      %v1953 = vpop.f32.mrf.mxu0
      %v1954 = vadd.f32 0.0, %v1953
      %v1955 = vpop.f32.mrf.mxu0
      %v1956 = vpop.f32.mrf.mxu0
      %v1957 = vadd.f32 0.0, %v1956
      %v1958 = vpop.f32.mrf.mxu0
      %1959 = vmatprep.mubr.bf16.mxu0 0
      %1960 = vmatmul.mubr.bf16.gmra.mxu0 %v1801
      %v1961 = vpop.f32.mrf.mxu0
      %v1962 = vadd.f32 0.0, %v1961
      %v1963 = vpop.f32.mrf.mxu0
      %v1964 = vpop.f32.mrf.mxu0
      %v1965 = vadd.f32 0.0, %v1964
      %v1966 = vpop.f32.mrf.mxu0
      %1967 = vdwg.mxu0
      %1968 = vst.msk [vmem:[%s271] sm:$0xff] %vm1487, %v1842
      %1969 = vst.msk [vmem:[%s271 + $0x8] sm:$0xff] %vm1487, %v1845
      %1970 = vst.msk [vmem:[%s271 + $0x10] sm:$0xff] %vm1487, %v1850
      %1971 = vst.msk [vmem:[%s271 + $0x18] sm:$0xff] %vm1487, %v1853
      %1972 = vst.msk [vmem:[%s271 + $0x20] sm:$0xff] %vm1487, %v1858
      %1973 = vst.msk [vmem:[%s271 + $0x28] sm:$0xff] %vm1487, %v1861
      %1974 = vst.msk [vmem:[%s271 + $0x30] sm:$0xff] %vm1487, %v1866
      %1975 = vst.msk [vmem:[%s271 + $0x38] sm:$0xff] %vm1487, %v1869
      %1976 = vst.msk [vmem:[%s271 + $0x40] sm:$0xff] %vm1487, %v1874
      %1977 = vst.msk [vmem:[%s271 + $0x48] sm:$0xff] %vm1487, %v1877
      %1978 = vst.msk [vmem:[%s271 + $0x50] sm:$0xff] %vm1487, %v1882
      %1979 = vst.msk [vmem:[%s271 + $0x58] sm:$0xff] %vm1487, %v1885
      %1980 = vst.msk [vmem:[%s271 + $0x60] sm:$0xff] %vm1487, %v1890
      %1981 = vst.msk [vmem:[%s271 + $0x68] sm:$0xff] %vm1487, %v1893
      %1982 = vst.msk [vmem:[%s271 + $0x70] sm:$0xff] %vm1487, %v1898
      %1983 = vst.msk [vmem:[%s271 + $0x78] sm:$0xff] %vm1487, %v1901
      %1984 = vst.msk [vmem:[%s271 + $0x80] sm:$0xff] %vm1487, %v1906
      %1985 = vst.msk [vmem:[%s271 + $0x88] sm:$0xff] %vm1487, %v1909
      %1986 = vst.msk [vmem:[%s271 + $0x90] sm:$0xff] %vm1487, %v1914
      %1987 = vst.msk [vmem:[%s271 + $0x98] sm:$0xff] %vm1487, %v1917
      %1988 = vst.msk [vmem:[%s271 + $0xa0] sm:$0xff] %vm1487, %v1922
      %1989 = vst.msk [vmem:[%s271 + $0xa8] sm:$0xff] %vm1487, %v1925
      %1990 = vst.msk [vmem:[%s271 + $0xb0] sm:$0xff] %vm1487, %v1930
      %1991 = vst.msk [vmem:[%s271 + $0xb8] sm:$0xff] %vm1487, %v1933
      %1992 = vst.msk [vmem:[%s271 + $0xc0] sm:$0xff] %vm1487, %v1938
      %1993 = vst.msk [vmem:[%s271 + $0xc8] sm:$0xff] %vm1487, %v1941
      %1994 = vst.msk [vmem:[%s271 + $0xd0] sm:$0xff] %vm1487, %v1946
      %1995 = vst.msk [vmem:[%s271 + $0xd8] sm:$0xff] %vm1487, %v1949
      %1996 = vst.msk [vmem:[%s271 + $0xe0] sm:$0xff] %vm1487, %v1954
      %1997 = vst.msk [vmem:[%s271 + $0xe8] sm:$0xff] %vm1487, %v1957
      %1998 = vst.msk [vmem:[%s271 + $0xf0] sm:$0xff] %vm1487, %v1962
      %1999 = vst.msk [vmem:[%s271 + $0xf8] sm:$0xff] %vm1487, %v1965
      %v2000 = vsel %vm1487, %v1842, 0.0
      %v2001 = vsel %vm1487, %v1845, 0.0
      %v2002 = vadd.f32 %v2000, %v2001
      %v2003 = vsel %vm1487, %v1850, 0.0
      %v2004 = vadd.f32 %v2002, %v2003
      %v2005 = vsel %vm1487, %v1853, 0.0
      %v2006 = vadd.f32 %v2004, %v2005
      %v2007 = vsel %vm1487, %v1858, 0.0
      %v2008 = vadd.f32 %v2006, %v2007
      %v2009 = vsel %vm1487, %v1861, 0.0
      %v2010 = vadd.f32 %v2008, %v2009
      %v2011 = vsel %vm1487, %v1866, 0.0
      %v2012 = vadd.f32 %v2010, %v2011
      %v2013 = vsel %vm1487, %v1869, 0.0
      %v2014 = vadd.f32 %v2012, %v2013
      %v2015 = vsel %vm1487, %v1874, 0.0
      %v2016 = vadd.f32 %v2014, %v2015
      %v2017 = vsel %vm1487, %v1877, 0.0
      %v2018 = vadd.f32 %v2016, %v2017
      %v2019 = vsel %vm1487, %v1882, 0.0
      %v2020 = vadd.f32 %v2018, %v2019
      %v2021 = vsel %vm1487, %v1885, 0.0
      %v2022 = vadd.f32 %v2020, %v2021
      %v2023 = vsel %vm1487, %v1890, 0.0
      %v2024 = vadd.f32 %v2022, %v2023
      %v2025 = vsel %vm1487, %v1893, 0.0
      %v2026 = vadd.f32 %v2024, %v2025
      %v2027 = vsel %vm1487, %v1898, 0.0
      %v2028 = vadd.f32 %v2026, %v2027
      %v2029 = vsel %vm1487, %v1901, 0.0
      %v2030 = vadd.f32 %v2028, %v2029
      %v2031 = vsel %vm1487, %v1906, 0.0
      %v2032 = vadd.f32 %v2030, %v2031
      %v2033 = vsel %vm1487, %v1909, 0.0
      %v2034 = vadd.f32 %v2032, %v2033
      %v2035 = vsel %vm1487, %v1914, 0.0
      %v2036 = vadd.f32 %v2034, %v2035
      %v2037 = vsel %vm1487, %v1917, 0.0
      %v2038 = vadd.f32 %v2036, %v2037
      %v2039 = vsel %vm1487, %v1922, 0.0
      %v2040 = vadd.f32 %v2038, %v2039
      %v2041 = vsel %vm1487, %v1925, 0.0
      %v2042 = vadd.f32 %v2040, %v2041
      %v2043 = vsel %vm1487, %v1930, 0.0
      %v2044 = vadd.f32 %v2042, %v2043
      %v2045 = vsel %vm1487, %v1933, 0.0
      %v2046 = vadd.f32 %v2044, %v2045
      %v2047 = vsel %vm1487, %v1938, 0.0
      %v2048 = vadd.f32 %v2046, %v2047
      %v2049 = vsel %vm1487, %v1941, 0.0
      %v2050 = vadd.f32 %v2048, %v2049
      %v2051 = vsel %vm1487, %v1946, 0.0
      %v2052 = vadd.f32 %v2050, %v2051
      %v2053 = vsel %vm1487, %v1949, 0.0
      %v2054 = vadd.f32 %v2052, %v2053
      %v2055 = vsel %vm1487, %v1954, 0.0
      %v2056 = vadd.f32 %v2054, %v2055
      %v2057 = vsel %vm1487, %v1957, 0.0
      %v2058 = vadd.f32 %v2056, %v2057
      %v2059 = vsel %vm1487, %v1962, 0.0
      %v2060 = vadd.f32 %v2058, %v2059
      %v2061 = vsel %vm1487, %v1965, 0.0
      %v2062 = vadd.f32 %v2060, %v2061
      %v2063 = vrot.slane %v2062, 4
      %v2064 = vadd.f32 %v2062, %v2063
      %v2065 = vrot.slane %v2064, 2
      %v2066 = vadd.f32 %v2064, %v2065
      %v2067 = vrot.slane %v2066, 1
      %v2068 = vadd.f32 %v2066, %v2067
      %vm2069 = vcmask 57344
      %2070 = vst.msk [vmem:[%s275] sm:$0x1] %vm2069, %v2068
      %v2071 = vmul.f32 %v1842, %v1842
      %v2072 = vmul.f32 %v1845, %v1845
      %v2073 = vmul.f32 %v1850, %v1850
      %v2074 = vmul.f32 %v1853, %v1853
      %v2075 = vmul.f32 %v1858, %v1858
      %v2076 = vmul.f32 %v1861, %v1861
      %v2077 = vmul.f32 %v1866, %v1866
      %v2078 = vmul.f32 %v1869, %v1869
      %v2079 = vmul.f32 %v1874, %v1874
      %v2080 = vmul.f32 %v1877, %v1877
      %v2081 = vmul.f32 %v1882, %v1882
      %v2082 = vmul.f32 %v1885, %v1885
      %v2083 = vmul.f32 %v1890, %v1890
      %v2084 = vmul.f32 %v1893, %v1893
      %v2085 = vmul.f32 %v1898, %v1898
      %v2086 = vmul.f32 %v1901, %v1901
      %v2087 = vmul.f32 %v1906, %v1906
      %v2088 = vmul.f32 %v1909, %v1909
      %v2089 = vmul.f32 %v1914, %v1914
      %v2090 = vmul.f32 %v1917, %v1917
      %v2091 = vmul.f32 %v1922, %v1922
      %v2092 = vmul.f32 %v1925, %v1925
      %v2093 = vmul.f32 %v1930, %v1930
      %v2094 = vmul.f32 %v1933, %v1933
      %v2095 = vmul.f32 %v1938, %v1938
      %v2096 = vmul.f32 %v1941, %v1941
      %v2097 = vmul.f32 %v1946, %v1946
      %v2098 = vmul.f32 %v1949, %v1949
      %v2099 = vmul.f32 %v1954, %v1954
      %v2100 = vmul.f32 %v1957, %v1957
      %v2101 = vmul.f32 %v1962, %v1962
      %v2102 = vmul.f32 %v1965, %v1965
      %v2103 = vsel %vm1487, %v2071, 0.0
      %v2104 = vsel %vm1487, %v2072, 0.0
      %v2105 = vadd.f32 %v2103, %v2104
      %v2106 = vsel %vm1487, %v2073, 0.0
      %v2107 = vadd.f32 %v2105, %v2106
      %v2108 = vsel %vm1487, %v2074, 0.0
      %v2109 = vadd.f32 %v2107, %v2108
      %v2110 = vsel %vm1487, %v2075, 0.0
      %v2111 = vadd.f32 %v2109, %v2110
      %v2112 = vsel %vm1487, %v2076, 0.0
      %v2113 = vadd.f32 %v2111, %v2112
      %v2114 = vsel %vm1487, %v2077, 0.0
      %v2115 = vadd.f32 %v2113, %v2114
      %v2116 = vsel %vm1487, %v2078, 0.0
      %v2117 = vadd.f32 %v2115, %v2116
      %v2118 = vsel %vm1487, %v2079, 0.0
      %v2119 = vadd.f32 %v2117, %v2118
      %v2120 = vsel %vm1487, %v2080, 0.0
      %v2121 = vadd.f32 %v2119, %v2120
      %v2122 = vsel %vm1487, %v2081, 0.0
      %v2123 = vadd.f32 %v2121, %v2122
      %v2124 = vsel %vm1487, %v2082, 0.0
      %v2125 = vadd.f32 %v2123, %v2124
      %v2126 = vsel %vm1487, %v2083, 0.0
      %v2127 = vadd.f32 %v2125, %v2126
      %v2128 = vsel %vm1487, %v2084, 0.0
      %v2129 = vadd.f32 %v2127, %v2128
      %v2130 = vsel %vm1487, %v2085, 0.0
      %v2131 = vadd.f32 %v2129, %v2130
      %v2132 = vsel %vm1487, %v2086, 0.0
      %v2133 = vadd.f32 %v2131, %v2132
      %v2134 = vsel %vm1487, %v2087, 0.0
      %v2135 = vadd.f32 %v2133, %v2134
      %v2136 = vsel %vm1487, %v2088, 0.0
      %v2137 = vadd.f32 %v2135, %v2136
      %v2138 = vsel %vm1487, %v2089, 0.0
      %v2139 = vadd.f32 %v2137, %v2138
      %v2140 = vsel %vm1487, %v2090, 0.0
      %v2141 = vadd.f32 %v2139, %v2140
      %v2142 = vsel %vm1487, %v2091, 0.0
      %v2143 = vadd.f32 %v2141, %v2142
      %v2144 = vsel %vm1487, %v2092, 0.0
      %v2145 = vadd.f32 %v2143, %v2144
      %v2146 = vsel %vm1487, %v2093, 0.0
      %v2147 = vadd.f32 %v2145, %v2146
      %v2148 = vsel %vm1487, %v2094, 0.0
      %v2149 = vadd.f32 %v2147, %v2148
      %v2150 = vsel %vm1487, %v2095, 0.0
      %v2151 = vadd.f32 %v2149, %v2150
      %v2152 = vsel %vm1487, %v2096, 0.0
      %v2153 = vadd.f32 %v2151, %v2152
      %v2154 = vsel %vm1487, %v2097, 0.0
      %v2155 = vadd.f32 %v2153, %v2154
      %v2156 = vsel %vm1487, %v2098, 0.0
      %v2157 = vadd.f32 %v2155, %v2156
      %v2158 = vsel %vm1487, %v2099, 0.0
      %v2159 = vadd.f32 %v2157, %v2158
      %v2160 = vsel %vm1487, %v2100, 0.0
      %v2161 = vadd.f32 %v2159, %v2160
      %v2162 = vsel %vm1487, %v2101, 0.0
      %v2163 = vadd.f32 %v2161, %v2162
      %v2164 = vsel %vm1487, %v2102, 0.0
      %v2165 = vadd.f32 %v2163, %v2164
      %v2166 = vrot.slane %v2165, 4
      %v2167 = vadd.f32 %v2165, %v2166
      %v2168 = vrot.slane %v2167, 2
      %v2169 = vadd.f32 %v2167, %v2168
      %v2170 = vrot.slane %v2169, 1
      %v2171 = vadd.f32 %v2169, %v2170
      %2172 = vst.msk [vmem:[%s275 + $0x1] sm:$0x1] %vm2069, %v2171
      %v2173 = vld [vmem:[%s266] sm:$0xff]
      %v2174 = vld [vmem:[%s266 + $0x8] sm:$0xff]
      %v2175 = vld [vmem:[%s266 + $0x10] sm:$0xff]
      %v2176 = vld [vmem:[%s266 + $0x18] sm:$0xff]
      %v2177 = vld [vmem:[%s266 + $0x20] sm:$0xff]
      %v2178 = vld [vmem:[%s266 + $0x28] sm:$0xff]
      %v2179 = vld [vmem:[%s266 + $0x30] sm:$0xff]
      %v2180 = vld [vmem:[%s266 + $0x38] sm:$0xff]
      %v2181 = vld [vmem:[%s266 + $0x40] sm:$0xff]
      %v2182 = vld [vmem:[%s266 + $0x48] sm:$0xff]
      %v2183 = vld [vmem:[%s266 + $0x50] sm:$0xff]
      %v2184 = vld [vmem:[%s266 + $0x58] sm:$0xff]
      %v2185 = vld [vmem:[%s266 + $0x60] sm:$0xff]
      %v2186 = vld [vmem:[%s266 + $0x68] sm:$0xff]
      %v2187 = vld [vmem:[%s266 + $0x70] sm:$0xff]
      %v2188 = vld [vmem:[%s266 + $0x78] sm:$0xff]
      %v2189 = vld [vmem:[%s266 + $0x80] sm:$0xff]
      %v2190 = vld [vmem:[%s266 + $0x88] sm:$0xff]
      %v2191 = vld [vmem:[%s266 + $0x90] sm:$0xff]
      %v2192 = vld [vmem:[%s266 + $0x98] sm:$0xff]
      %v2193 = vld [vmem:[%s266 + $0xa0] sm:$0xff]
      %v2194 = vld [vmem:[%s266 + $0xa8] sm:$0xff]
      %v2195 = vld [vmem:[%s266 + $0xb0] sm:$0xff]
      %v2196 = vld [vmem:[%s266 + $0xb8] sm:$0xff]
      %v2197 = vld [vmem:[%s266 + $0xc0] sm:$0xff]
      %v2198 = vld [vmem:[%s266 + $0xc8] sm:$0xff]
      %v2199 = vld [vmem:[%s266 + $0xd0] sm:$0xff]
      %v2200 = vld [vmem:[%s266 + $0xd8] sm:$0xff]
      %v2201 = vld [vmem:[%s266 + $0xe0] sm:$0xff]
      %v2202 = vld [vmem:[%s266 + $0xe8] sm:$0xff]
      %v2203 = vld [vmem:[%s266 + $0xf0] sm:$0xff]
      %v2204 = vld [vmem:[%s266 + $0xf8] sm:$0xff]
      %v2205 = vpack.c.bf16 %v2174, %v2173
      %v2206 = vpack.c.bf16 %v2176, %v2175
      %v2207 = vpack.c.bf16 %v2178, %v2177
      %v2208 = vpack.c.bf16 %v2180, %v2179
      %v2209 = vpack.c.bf16 %v2182, %v2181
      %v2210 = vpack.c.bf16 %v2184, %v2183
      %v2211 = vpack.c.bf16 %v2186, %v2185
      %v2212 = vpack.c.bf16 %v2188, %v2187
      %v2213 = vpack.c.bf16 %v2190, %v2189
      %v2214 = vpack.c.bf16 %v2192, %v2191
      %v2215 = vpack.c.bf16 %v2194, %v2193
      %v2216 = vpack.c.bf16 %v2196, %v2195
      %v2217 = vpack.c.bf16 %v2198, %v2197
      %v2218 = vpack.c.bf16 %v2200, %v2199
      %v2219 = vpack.c.bf16 %v2202, %v2201
      %v2220 = vpack.c.bf16 %v2204, %v2203
      %v2221 = vld [vmem:[%s2] sm:$0x3]
      %v2223 = vsel %vm286, %v2205, 0
      %v2226 = vsel %vm286, %v2206, 0
      %v2229 = vsel %vm286, %v2207, 0
      %v2232 = vsel %vm286, %v2208, 0
      %v2235 = vsel %vm286, %v2209, 0
      %v2238 = vsel %vm286, %v2210, 0
      %v2241 = vsel %vm286, %v2211, 0
      %v2244 = vsel %vm286, %v2212, 0
      %v2247 = vsel %vm286, %v2213, 0
      %v2250 = vsel %vm286, %v2214, 0
      %v2253 = vsel %vm286, %v2215, 0
      %v2256 = vsel %vm286, %v2216, 0
      %v2259 = vsel %vm286, %v2217, 0
      %v2262 = vsel %vm286, %v2218, 0
      %v2265 = vsel %vm286, %v2219, 0
      %v2268 = vsel %vm286, %v2220, 0
      %v2271 = vsel %vm1803, %v2221, 0
      %2273 = vmatprep.subr.bf16.mxu0 0
      %2274 = vmatpush1.bf16.msra.mxu0 0
      %2275 = vmatprep.subr.bf16.mxu0 0
      %2276 = vmatpush1.bf16.msra.mxu0 0
      %2277 = vmatprep.subr.bf16.mxu0 0
      %2278 = vmatpush1.bf16.msra.mxu0 0
      %2279 = vmatprep.subr.bf16.mxu0 0
      %2280 = vmatpush1.bf16.msra.mxu0 0
      %2281 = vmatprep.subr.bf16.mxu0 0
      %2282 = vmatpush1.bf16.msra.mxu0 0
      %2283 = vmatprep.subr.bf16.mxu0 0
      %2284 = vmatpush1.bf16.msra.mxu0 0
      %2285 = vmatprep.subr.bf16.mxu0 0
      %2286 = vmatpush1.bf16.msra.mxu0 0
      %2287 = vmatprep.subr.bf16.mxu0 0
      %2288 = vmatpush1.bf16.msra.mxu0 %v2271
      %2289 = vmatprep.subr.bf16.mxu0 0
      %2290 = vmatpush2.bf16.msra.mxu0 0
      %2291 = vmatprep.subr.bf16.mxu0 0
      %2292 = vmatpush2.bf16.msra.mxu0 0
      %2293 = vmatprep.subr.bf16.mxu0 0
      %2294 = vmatpush2.bf16.msra.mxu0 0
      %2295 = vmatprep.subr.bf16.mxu0 0
      %2296 = vmatpush2.bf16.msra.mxu0 0
      %2297 = vmatprep.subr.bf16.mxu0 0
      %2298 = vmatpush2.bf16.msra.mxu0 0
      %2299 = vmatprep.subr.bf16.mxu0 0
      %2300 = vmatpush2.bf16.msra.mxu0 0
      %2301 = vmatprep.subr.bf16.mxu0 0
      %2302 = vmatpush2.bf16.msra.mxu0 0
      %2303 = vmatprep.subr.bf16.mxu0 0
      %2304 = vmatpush2.bf16.msra.mxu0 0
      %2305 = vmatprep.mubr.bf16.mxu0 0
      %2306 = vmatmul.mubr.bf16.gmra.mxu0 %v2223
      %v2307 = vpop.f32.mrf.mxu0
      %v2308 = vadd.f32 0.0, %v2307
      %v2309 = vpop.f32.mrf.mxu0
      %v2310 = vpop.f32.mrf.mxu0
      %v2311 = vadd.f32 0.0, %v2310
      %v2312 = vpop.f32.mrf.mxu0
      %2313 = vmatprep.mubr.bf16.mxu0 0
      %2314 = vmatmul.mubr.bf16.gmra.mxu0 %v2226
      %v2315 = vpop.f32.mrf.mxu0
      %v2316 = vadd.f32 0.0, %v2315
      %v2317 = vpop.f32.mrf.mxu0
      %v2318 = vpop.f32.mrf.mxu0
      %v2319 = vadd.f32 0.0, %v2318
      %v2320 = vpop.f32.mrf.mxu0
      %2321 = vmatprep.mubr.bf16.mxu0 0
      %2322 = vmatmul.mubr.bf16.gmra.mxu0 %v2229
      %v2323 = vpop.f32.mrf.mxu0
      %v2324 = vadd.f32 0.0, %v2323
      %v2325 = vpop.f32.mrf.mxu0
      %v2326 = vpop.f32.mrf.mxu0
      %v2327 = vadd.f32 0.0, %v2326
      %v2328 = vpop.f32.mrf.mxu0
      %2329 = vmatprep.mubr.bf16.mxu0 0
      %2330 = vmatmul.mubr.bf16.gmra.mxu0 %v2232
      %v2331 = vpop.f32.mrf.mxu0
      %v2332 = vadd.f32 0.0, %v2331
      %v2333 = vpop.f32.mrf.mxu0
      %v2334 = vpop.f32.mrf.mxu0
      %v2335 = vadd.f32 0.0, %v2334
      %v2336 = vpop.f32.mrf.mxu0
      %2337 = vmatprep.mubr.bf16.mxu0 0
      %2338 = vmatmul.mubr.bf16.gmra.mxu0 %v2235
      %v2339 = vpop.f32.mrf.mxu0
      %v2340 = vadd.f32 0.0, %v2339
      %v2341 = vpop.f32.mrf.mxu0
      %v2342 = vpop.f32.mrf.mxu0
      %v2343 = vadd.f32 0.0, %v2342
      %v2344 = vpop.f32.mrf.mxu0
      %2345 = vmatprep.mubr.bf16.mxu0 0
      %2346 = vmatmul.mubr.bf16.gmra.mxu0 %v2238
      %v2347 = vpop.f32.mrf.mxu0
      %v2348 = vadd.f32 0.0, %v2347
      %v2349 = vpop.f32.mrf.mxu0
      %v2350 = vpop.f32.mrf.mxu0
      %v2351 = vadd.f32 0.0, %v2350
      %v2352 = vpop.f32.mrf.mxu0
      %2353 = vmatprep.mubr.bf16.mxu0 0
      %2354 = vmatmul.mubr.bf16.gmra.mxu0 %v2241
      %v2355 = vpop.f32.mrf.mxu0
      %v2356 = vadd.f32 0.0, %v2355
      %v2357 = vpop.f32.mrf.mxu0
      %v2358 = vpop.f32.mrf.mxu0
      %v2359 = vadd.f32 0.0, %v2358
      %v2360 = vpop.f32.mrf.mxu0
      %2361 = vmatprep.mubr.bf16.mxu0 0
      %2362 = vmatmul.mubr.bf16.gmra.mxu0 %v2244
      %v2363 = vpop.f32.mrf.mxu0
      %v2364 = vadd.f32 0.0, %v2363
      %v2365 = vpop.f32.mrf.mxu0
      %v2366 = vpop.f32.mrf.mxu0
      %v2367 = vadd.f32 0.0, %v2366
      %v2368 = vpop.f32.mrf.mxu0
      %2369 = vmatprep.mubr.bf16.mxu0 0
      %2370 = vmatmul.mubr.bf16.gmra.mxu0 %v2247
      %v2371 = vpop.f32.mrf.mxu0
      %v2372 = vadd.f32 0.0, %v2371
      %v2373 = vpop.f32.mrf.mxu0
      %v2374 = vpop.f32.mrf.mxu0
      %v2375 = vadd.f32 0.0, %v2374
      %v2376 = vpop.f32.mrf.mxu0
      %2377 = vmatprep.mubr.bf16.mxu0 0
      %2378 = vmatmul.mubr.bf16.gmra.mxu0 %v2250
      %v2379 = vpop.f32.mrf.mxu0
      %v2380 = vadd.f32 0.0, %v2379
      %v2381 = vpop.f32.mrf.mxu0
      %v2382 = vpop.f32.mrf.mxu0
      %v2383 = vadd.f32 0.0, %v2382
      %v2384 = vpop.f32.mrf.mxu0
      %2385 = vmatprep.mubr.bf16.mxu0 0
      %2386 = vmatmul.mubr.bf16.gmra.mxu0 %v2253
      %v2387 = vpop.f32.mrf.mxu0
      %v2388 = vadd.f32 0.0, %v2387
      %v2389 = vpop.f32.mrf.mxu0
      %v2390 = vpop.f32.mrf.mxu0
      %v2391 = vadd.f32 0.0, %v2390
      %v2392 = vpop.f32.mrf.mxu0
      %2393 = vmatprep.mubr.bf16.mxu0 0
      %2394 = vmatmul.mubr.bf16.gmra.mxu0 %v2256
      %v2395 = vpop.f32.mrf.mxu0
      %v2396 = vadd.f32 0.0, %v2395
      %v2397 = vpop.f32.mrf.mxu0
      %v2398 = vpop.f32.mrf.mxu0
      %v2399 = vadd.f32 0.0, %v2398
      %v2400 = vpop.f32.mrf.mxu0
      %2401 = vmatprep.mubr.bf16.mxu0 0
      %2402 = vmatmul.mubr.bf16.gmra.mxu0 %v2259
      %v2403 = vpop.f32.mrf.mxu0
      %v2404 = vadd.f32 0.0, %v2403
      %v2405 = vpop.f32.mrf.mxu0
      %v2406 = vpop.f32.mrf.mxu0
      %v2407 = vadd.f32 0.0, %v2406
      %v2408 = vpop.f32.mrf.mxu0
      %2409 = vmatprep.mubr.bf16.mxu0 0
      %2410 = vmatmul.mubr.bf16.gmra.mxu0 %v2262
      %v2411 = vpop.f32.mrf.mxu0
      %v2412 = vadd.f32 0.0, %v2411
      %v2413 = vpop.f32.mrf.mxu0
      %v2414 = vpop.f32.mrf.mxu0
      %v2415 = vadd.f32 0.0, %v2414
      %v2416 = vpop.f32.mrf.mxu0
      %2417 = vmatprep.mubr.bf16.mxu0 0
      %2418 = vmatmul.mubr.bf16.gmra.mxu0 %v2265
      %v2419 = vpop.f32.mrf.mxu0
      %v2420 = vadd.f32 0.0, %v2419
      %v2421 = vpop.f32.mrf.mxu0
      %v2422 = vpop.f32.mrf.mxu0
      %v2423 = vadd.f32 0.0, %v2422
      %v2424 = vpop.f32.mrf.mxu0
      %2425 = vmatprep.mubr.bf16.mxu0 0
      %2426 = vmatmul.mubr.bf16.gmra.mxu0 %v2268
      %v2427 = vpop.f32.mrf.mxu0
      %v2428 = vadd.f32 0.0, %v2427
      %v2429 = vpop.f32.mrf.mxu0
      %v2430 = vpop.f32.mrf.mxu0
      %v2431 = vadd.f32 0.0, %v2430
      %v2432 = vpop.f32.mrf.mxu0
      %2433 = vdwg.mxu0
      %2434 = vst.msk [vmem:[%s280] sm:$0xff] %vm1487, %v2308
      %2435 = vst.msk [vmem:[%s280 + $0x8] sm:$0xff] %vm1487, %v2311
      %2436 = vst.msk [vmem:[%s280 + $0x10] sm:$0xff] %vm1487, %v2316
      %2437 = vst.msk [vmem:[%s280 + $0x18] sm:$0xff] %vm1487, %v2319
      %2438 = vst.msk [vmem:[%s280 + $0x20] sm:$0xff] %vm1487, %v2324
      %2439 = vst.msk [vmem:[%s280 + $0x28] sm:$0xff] %vm1487, %v2327
      %2440 = vst.msk [vmem:[%s280 + $0x30] sm:$0xff] %vm1487, %v2332
      %2441 = vst.msk [vmem:[%s280 + $0x38] sm:$0xff] %vm1487, %v2335
      %2442 = vst.msk [vmem:[%s280 + $0x40] sm:$0xff] %vm1487, %v2340
      %2443 = vst.msk [vmem:[%s280 + $0x48] sm:$0xff] %vm1487, %v2343
      %2444 = vst.msk [vmem:[%s280 + $0x50] sm:$0xff] %vm1487, %v2348
      %2445 = vst.msk [vmem:[%s280 + $0x58] sm:$0xff] %vm1487, %v2351
      %2446 = vst.msk [vmem:[%s280 + $0x60] sm:$0xff] %vm1487, %v2356
      %2447 = vst.msk [vmem:[%s280 + $0x68] sm:$0xff] %vm1487, %v2359
      %2448 = vst.msk [vmem:[%s280 + $0x70] sm:$0xff] %vm1487, %v2364
      %2449 = vst.msk [vmem:[%s280 + $0x78] sm:$0xff] %vm1487, %v2367
      %2450 = vst.msk [vmem:[%s280 + $0x80] sm:$0xff] %vm1487, %v2372
      %2451 = vst.msk [vmem:[%s280 + $0x88] sm:$0xff] %vm1487, %v2375
      %2452 = vst.msk [vmem:[%s280 + $0x90] sm:$0xff] %vm1487, %v2380
      %2453 = vst.msk [vmem:[%s280 + $0x98] sm:$0xff] %vm1487, %v2383
      %2454 = vst.msk [vmem:[%s280 + $0xa0] sm:$0xff] %vm1487, %v2388
      %2455 = vst.msk [vmem:[%s280 + $0xa8] sm:$0xff] %vm1487, %v2391
      %2456 = vst.msk [vmem:[%s280 + $0xb0] sm:$0xff] %vm1487, %v2396
      %2457 = vst.msk [vmem:[%s280 + $0xb8] sm:$0xff] %vm1487, %v2399
      %2458 = vst.msk [vmem:[%s280 + $0xc0] sm:$0xff] %vm1487, %v2404
      %2459 = vst.msk [vmem:[%s280 + $0xc8] sm:$0xff] %vm1487, %v2407
      %2460 = vst.msk [vmem:[%s280 + $0xd0] sm:$0xff] %vm1487, %v2412
      %2461 = vst.msk [vmem:[%s280 + $0xd8] sm:$0xff] %vm1487, %v2415
      %2462 = vst.msk [vmem:[%s280 + $0xe0] sm:$0xff] %vm1487, %v2420
      %2463 = vst.msk [vmem:[%s280 + $0xe8] sm:$0xff] %vm1487, %v2423
      %2464 = vst.msk [vmem:[%s280 + $0xf0] sm:$0xff] %vm1487, %v2428
      %2465 = vst.msk [vmem:[%s280 + $0xf8] sm:$0xff] %vm1487, %v2431
      %v2466 = vsel %vm1487, %v2308, 0.0
      %v2467 = vsel %vm1487, %v2311, 0.0
      %v2468 = vadd.f32 %v2466, %v2467
      %v2469 = vsel %vm1487, %v2316, 0.0
      %v2470 = vadd.f32 %v2468, %v2469
      %v2471 = vsel %vm1487, %v2319, 0.0
      %v2472 = vadd.f32 %v2470, %v2471
      %v2473 = vsel %vm1487, %v2324, 0.0
      %v2474 = vadd.f32 %v2472, %v2473
      %v2475 = vsel %vm1487, %v2327, 0.0
      %v2476 = vadd.f32 %v2474, %v2475
      %v2477 = vsel %vm1487, %v2332, 0.0
      %v2478 = vadd.f32 %v2476, %v2477
      %v2479 = vsel %vm1487, %v2335, 0.0
      %v2480 = vadd.f32 %v2478, %v2479
      %v2481 = vsel %vm1487, %v2340, 0.0
      %v2482 = vadd.f32 %v2480, %v2481
      %v2483 = vsel %vm1487, %v2343, 0.0
      %v2484 = vadd.f32 %v2482, %v2483
      %v2485 = vsel %vm1487, %v2348, 0.0
      %v2486 = vadd.f32 %v2484, %v2485
      %v2487 = vsel %vm1487, %v2351, 0.0
      %v2488 = vadd.f32 %v2486, %v2487
      %v2489 = vsel %vm1487, %v2356, 0.0
      %v2490 = vadd.f32 %v2488, %v2489
      %v2491 = vsel %vm1487, %v2359, 0.0
      %v2492 = vadd.f32 %v2490, %v2491
      %v2493 = vsel %vm1487, %v2364, 0.0
      %v2494 = vadd.f32 %v2492, %v2493
      %v2495 = vsel %vm1487, %v2367, 0.0
      %v2496 = vadd.f32 %v2494, %v2495
      %v2497 = vsel %vm1487, %v2372, 0.0
      %v2498 = vadd.f32 %v2496, %v2497
      %v2499 = vsel %vm1487, %v2375, 0.0
      %v2500 = vadd.f32 %v2498, %v2499
      %v2501 = vsel %vm1487, %v2380, 0.0
      %v2502 = vadd.f32 %v2500, %v2501
      %v2503 = vsel %vm1487, %v2383, 0.0
      %v2504 = vadd.f32 %v2502, %v2503
      %v2505 = vsel %vm1487, %v2388, 0.0
      %v2506 = vadd.f32 %v2504, %v2505
      %v2507 = vsel %vm1487, %v2391, 0.0
      %v2508 = vadd.f32 %v2506, %v2507
      %v2509 = vsel %vm1487, %v2396, 0.0
      %v2510 = vadd.f32 %v2508, %v2509
      %v2511 = vsel %vm1487, %v2399, 0.0
      %v2512 = vadd.f32 %v2510, %v2511
      %v2513 = vsel %vm1487, %v2404, 0.0
      %v2514 = vadd.f32 %v2512, %v2513
      %v2515 = vsel %vm1487, %v2407, 0.0
      %v2516 = vadd.f32 %v2514, %v2515
      %v2517 = vsel %vm1487, %v2412, 0.0
      %v2518 = vadd.f32 %v2516, %v2517
      %v2519 = vsel %vm1487, %v2415, 0.0
      %v2520 = vadd.f32 %v2518, %v2519
      %v2521 = vsel %vm1487, %v2420, 0.0
      %v2522 = vadd.f32 %v2520, %v2521
      %v2523 = vsel %vm1487, %v2423, 0.0
      %v2524 = vadd.f32 %v2522, %v2523
      %v2525 = vsel %vm1487, %v2428, 0.0
      %v2526 = vadd.f32 %v2524, %v2525
      %v2527 = vsel %vm1487, %v2431, 0.0
      %v2528 = vadd.f32 %v2526, %v2527
      %v2529 = vrot.slane %v2528, 4
      %v2530 = vadd.f32 %v2528, %v2529
      %v2531 = vrot.slane %v2530, 2
      %v2532 = vadd.f32 %v2530, %v2531
      %v2533 = vrot.slane %v2532, 1
      %v2534 = vadd.f32 %v2532, %v2533
      %2535 = vst.msk [vmem:[%s284] sm:$0x1] %vm2069, %v2534
      %v2536 = vmul.f32 %v2308, %v2308
      %v2537 = vmul.f32 %v2311, %v2311
      %v2538 = vmul.f32 %v2316, %v2316
      %v2539 = vmul.f32 %v2319, %v2319
      %v2540 = vmul.f32 %v2324, %v2324
      %v2541 = vmul.f32 %v2327, %v2327
      %v2542 = vmul.f32 %v2332, %v2332
      %v2543 = vmul.f32 %v2335, %v2335
      %v2544 = vmul.f32 %v2340, %v2340
      %v2545 = vmul.f32 %v2343, %v2343
      %v2546 = vmul.f32 %v2348, %v2348
      %v2547 = vmul.f32 %v2351, %v2351
      %v2548 = vmul.f32 %v2356, %v2356
      %v2549 = vmul.f32 %v2359, %v2359
      %v2550 = vmul.f32 %v2364, %v2364
      %v2551 = vmul.f32 %v2367, %v2367
      %v2552 = vmul.f32 %v2372, %v2372
      %v2553 = vmul.f32 %v2375, %v2375
      %v2554 = vmul.f32 %v2380, %v2380
      %v2555 = vmul.f32 %v2383, %v2383
      %v2556 = vmul.f32 %v2388, %v2388
      %v2557 = vmul.f32 %v2391, %v2391
      %v2558 = vmul.f32 %v2396, %v2396
      %v2559 = vmul.f32 %v2399, %v2399
      %v2560 = vmul.f32 %v2404, %v2404
      %v2561 = vmul.f32 %v2407, %v2407
      %v2562 = vmul.f32 %v2412, %v2412
      %v2563 = vmul.f32 %v2415, %v2415
      %v2564 = vmul.f32 %v2420, %v2420
      %v2565 = vmul.f32 %v2423, %v2423
      %v2566 = vmul.f32 %v2428, %v2428
      %v2567 = vmul.f32 %v2431, %v2431
      %v2568 = vsel %vm1487, %v2536, 0.0
      %v2569 = vsel %vm1487, %v2537, 0.0
      %v2570 = vadd.f32 %v2568, %v2569
      %v2571 = vsel %vm1487, %v2538, 0.0
      %v2572 = vadd.f32 %v2570, %v2571
      %v2573 = vsel %vm1487, %v2539, 0.0
      %v2574 = vadd.f32 %v2572, %v2573
      %v2575 = vsel %vm1487, %v2540, 0.0
      %v2576 = vadd.f32 %v2574, %v2575
      %v2577 = vsel %vm1487, %v2541, 0.0
      %v2578 = vadd.f32 %v2576, %v2577
      %v2579 = vsel %vm1487, %v2542, 0.0
      %v2580 = vadd.f32 %v2578, %v2579
      %v2581 = vsel %vm1487, %v2543, 0.0
      %v2582 = vadd.f32 %v2580, %v2581
      %v2583 = vsel %vm1487, %v2544, 0.0
      %v2584 = vadd.f32 %v2582, %v2583
      %v2585 = vsel %vm1487, %v2545, 0.0
      %v2586 = vadd.f32 %v2584, %v2585
      %v2587 = vsel %vm1487, %v2546, 0.0
      %v2588 = vadd.f32 %v2586, %v2587
      %v2589 = vsel %vm1487, %v2547, 0.0
      %v2590 = vadd.f32 %v2588, %v2589
      %v2591 = vsel %vm1487, %v2548, 0.0
      %v2592 = vadd.f32 %v2590, %v2591
      %v2593 = vsel %vm1487, %v2549, 0.0
      %v2594 = vadd.f32 %v2592, %v2593
      %v2595 = vsel %vm1487, %v2550, 0.0
      %v2596 = vadd.f32 %v2594, %v2595
      %v2597 = vsel %vm1487, %v2551, 0.0
      %v2598 = vadd.f32 %v2596, %v2597
      %v2599 = vsel %vm1487, %v2552, 0.0
      %v2600 = vadd.f32 %v2598, %v2599
      %v2601 = vsel %vm1487, %v2553, 0.0
      %v2602 = vadd.f32 %v2600, %v2601
      %v2603 = vsel %vm1487, %v2554, 0.0
      %v2604 = vadd.f32 %v2602, %v2603
      %v2605 = vsel %vm1487, %v2555, 0.0
      %v2606 = vadd.f32 %v2604, %v2605
      %v2607 = vsel %vm1487, %v2556, 0.0
      %v2608 = vadd.f32 %v2606, %v2607
      %v2609 = vsel %vm1487, %v2557, 0.0
      %v2610 = vadd.f32 %v2608, %v2609
      %v2611 = vsel %vm1487, %v2558, 0.0
      %v2612 = vadd.f32 %v2610, %v2611
      %v2613 = vsel %vm1487, %v2559, 0.0
      %v2614 = vadd.f32 %v2612, %v2613
      %v2615 = vsel %vm1487, %v2560, 0.0
      %v2616 = vadd.f32 %v2614, %v2615
      %v2617 = vsel %vm1487, %v2561, 0.0
      %v2618 = vadd.f32 %v2616, %v2617
      %v2619 = vsel %vm1487, %v2562, 0.0
      %v2620 = vadd.f32 %v2618, %v2619
      %v2621 = vsel %vm1487, %v2563, 0.0
      %v2622 = vadd.f32 %v2620, %v2621
      %v2623 = vsel %vm1487, %v2564, 0.0
      %v2624 = vadd.f32 %v2622, %v2623
      %v2625 = vsel %vm1487, %v2565, 0.0
      %v2626 = vadd.f32 %v2624, %v2625
      %v2627 = vsel %vm1487, %v2566, 0.0
      %v2628 = vadd.f32 %v2626, %v2627
      %v2629 = vsel %vm1487, %v2567, 0.0
      %v2630 = vadd.f32 %v2628, %v2629
      %v2631 = vrot.slane %v2630, 4
      %v2632 = vadd.f32 %v2630, %v2631
      %v2633 = vrot.slane %v2632, 2
      %v2634 = vadd.f32 %v2632, %v2633
      %v2635 = vrot.slane %v2634, 1
      %v2636 = vadd.f32 %v2634, %v2635
      %2637 = vst.msk [vmem:[%s284 + $0x1] sm:$0x1] %vm2069, %v2636
      %p2638 = scmp.lt.s32.totalorder %s18, 1
      %s2639 = scalar_select %p2638, %s18, 1
      %s2640 = smul.addr %s2639, 32
      %s2641 = smul.addr %s2640, 8
      %s2642 = scalar_lea.vmem %s3, %s2641
      %p2643 = scmp.lt.s32.totalorder %s18, 1
      %s2644 = scalar_select %p2643, %s18, 1
      %s2645 = smul.addr %s2644, 2
      %s2646 = scalar_lea.vmem %s4, %s2645
      %p2647 = scmp.lt.s32.totalorder %s18, 1
      %s2648 = scalar_select %p2647, %s18, 1
      %s2649 = smul.addr %s2648, 32
      %s2650 = smul.addr %s2649, 8
      %s2651 = scalar_lea.vmem %s5, %s2650
      %p2652 = scmp.lt.s32.totalorder %s18, 1
      %s2653 = scalar_select %p2652, %s18, 1
      %s2654 = smul.addr %s2653, 2
      %s2655 = scalar_lea.vmem %s6, %s2654
      // Predicated region
      $region33: #{residual_block.3} parent=31 // pred_check
        %p2656 = pneg %p104
      $region34: #{residual_block.3} parent=31 // pred_check_branch
        %2658 = sbr.rel (%p2656) target = $region36
      $region35: #{residual_block.3} parent=31 // pred_region
        _
      $region36: #{residual_block.3} parent=31 // pred_fallthru
        _
      // Predicated region
      $region37: #{residual_block.3} parent=31 // pred_check
        %p2659 = pneg %p130
      $region38: #{residual_block.3} parent=31 // pred_check_branch
        %2661 = sbr.rel (%p2659) target = $region40
      $region39: #{residual_block.3} parent=31 // pred_region
        _
      $region40: #{residual_block.3} parent=31 // pred_fallthru
        _
      // Predicated region
      $region41: #{residual_block.3} parent=31 // pred_check
        %p2662 = pneg %p156
      $region42: #{residual_block.3} parent=31 // pred_check_branch
        %2664 = sbr.rel (%p2662) target = $region44
      $region43: #{residual_block.3} parent=31 // pred_region
        _
      $region44: #{residual_block.3} parent=31 // pred_fallthru
        _
      // Predicated region
      $region45: #{residual_block.3} parent=31 // pred_check
        %p2665 = pneg %p182
      $region46: #{residual_block.3} parent=31 // pred_check_branch
        %2667 = sbr.rel (%p2665) target = $region48
      $region47: #{residual_block.3} parent=31 // pred_region
        _
      $region48: #{residual_block.3} parent=31 // pred_fallthru
        _
    $region32: #{residual_block.3} parent=5 // pred_fallthru
      _
    %p2668 = scmp.le.s32.totalorder 2, %s13
    // Predicated region
    $region49: #{residual_block.3} parent=5 // pred_check
      %p2669 = pneg %p2668
    $region50: #{residual_block.3} parent=5 // pred_check_branch
      %2671 = sbr.rel (%p2669) target = $region52
    $region51: #{residual_block.3} parent=5 // pred_region
      %s2672 = ssub.s32 %s13, 2
      // Predicated region
      $region53: #{residual_block.3} parent=51 // pred_check
        %p2673 = pneg %p110
      $region54: #{residual_block.3} parent=51 // pred_check_branch
        %2675 = sbr.rel (%p2673) target = $region56
      $region55: #{residual_block.3} parent=51 // pred_region
        %p2676 = scmp.lt.s32.totalorder %s19, 1
        %s2677 = scalar_select %p2676, %s19, 1
        %s2678 = smul.addr %s2677, 32
        %s2679 = smul.addr %s2678, 8
        %s2680 = scalar_lea.vmem %s3, %s2679
      $region56: #{residual_block.3} parent=51 // pred_fallthru
        _
      // Predicated region
      $region57: #{residual_block.3} parent=51 // pred_check
        %p2681 = pneg %p136
      $region58: #{residual_block.3} parent=51 // pred_check_branch
        %2683 = sbr.rel (%p2681) target = $region60
      $region59: #{residual_block.3} parent=51 // pred_region
        %p2684 = scmp.lt.s32.totalorder %s19, 1
        %s2685 = scalar_select %p2684, %s19, 1
        %s2686 = smul.addr %s2685, 2
        %s2687 = scalar_lea.vmem %s4, %s2686
      $region60: #{residual_block.3} parent=51 // pred_fallthru
        _
      // Predicated region
      $region61: #{residual_block.3} parent=51 // pred_check
        %p2688 = pneg %p162
      $region62: #{residual_block.3} parent=51 // pred_check_branch
        %2690 = sbr.rel (%p2688) target = $region64
      $region63: #{residual_block.3} parent=51 // pred_region
        %p2691 = scmp.lt.s32.totalorder %s19, 1
        %s2692 = scalar_select %p2691, %s19, 1
        %s2693 = smul.addr %s2692, 32
        %s2694 = smul.addr %s2693, 8
        %s2695 = scalar_lea.vmem %s5, %s2694
      $region64: #{residual_block.3} parent=51 // pred_fallthru
        _
      // Predicated region
      $region65: #{residual_block.3} parent=51 // pred_check
        %p2696 = pneg %p188
      $region66: #{residual_block.3} parent=51 // pred_check_branch
        %2698 = sbr.rel (%p2696) target = $region68
      $region67: #{residual_block.3} parent=51 // pred_region
        %p2699 = scmp.lt.s32.totalorder %s19, 1
        %s2700 = scalar_select %p2699, %s19, 1
        %s2701 = smul.addr %s2700, 2
        %s2702 = scalar_lea.vmem %s6, %s2701
      $region68: #{residual_block.3} parent=51 // pred_fallthru
        _
    $region52: #{residual_block.3} parent=5 // pred_fallthru
      _
  $region6: #{residual_block.3} parent=0 // loop_footer
    %s17 = sadd.s32 1, %s13
  $region7: #{residual_block.3} parent=0 // loop_footer_branch
    %12 = sbr.rel target = $region3
  $region8: #{residual_block.3} parent=0 // loop_exit
    _

</llo_original>
